<compile_context>
chip_gen: v7x
topology: tpu7x:2x2x1
jax: 0.10.0
libtpu: 0.0.40
codegen_flags: <defaults>
</compile_context>

<pallas_src>
import numpy as np
import jax
import jax.numpy as jnp
from jax.experimental import pallas as pl
from jax.experimental.pallas import tpu as pltpu

LANE = 128
SUBLANE = 8
_K = 3        # ConvTranspose2d kernel size
_S = 2        # ConvTranspose2d stride
_BN_EPS = 1e-5


def _pad_to(n, m):
    return ((n + m - 1) // m) * m


def _full_spec(shape):
    nd = len(shape)
    return pl.BlockSpec(shape, lambda i, _nd=nd: (0,) * _nd)


# ---------------------------- parameter construction ----------------------------

def build_decoder_params(key, z_size, image_size):
    """Mirror the while-loop in Decoder.__init__ (stride=2, kernel=3)."""
    layers = []
    in_c = z_size
    h_in = 1
    i = 0
    while True:
        h_out = _S * (h_in - 1) + _K
        if h_out > image_size:
            raise ValueError(
                "image_size must lie on the 2*(h-1)+3 recursion (3, 7, 15, 31, ...)")
        is_last = (h_out == image_size)
        if is_last:
            out_c = 3
        elif i == 0:
            out_c = in_c * 100 // 2
        else:
            out_c = in_c // 2
        key, kw_, kb_ = jax.random.split(key, 3)
        w = jax.random.normal(kw_, (in_c, out_c, _K, _K), jnp.float32) / np.sqrt(in_c * _K * _K)
        b = 0.1 * jax.random.normal(kb_, (out_c,), jnp.float32)
        layer = {'w': w, 'b': b, 'is_last': is_last, 'h_in': h_in}
        if not is_last:
            # PyTorch BatchNorm2d defaults: gamma=1, beta=0
            layer['gamma'] = jnp.ones((out_c,), jnp.float32)
            layer['beta'] = jnp.zeros((out_c,), jnp.float32)
        layers.append(layer)
        in_c = out_c
        h_in = h_out
        if is_last:
            break
        i += 1
    return layers


def pack_decoder_params(layers):
    """Pack params into lane-dense kernel operands (done once, outside jit).

    Returns:
      weights : list of per-layer (Cin_pad, 9*Cout_pad) bf16 tap-packed matrices
                (column block k = kh*3+kw holds W[:, :, kh, kw]).
      vec     : single (rows_pad8, Cmax_pad) f32 array holding every bias /
                gamma / beta as one row each (zero padded lanes -- REQUIRED,
                see header comment about padded-channel BN safety).
      cfg     : per-layer static shape / row-index metadata.
    """
    weights = []
    vec_rows = []
    cfg = []
    cmax_p = max(_pad_to(L['w'].shape[1], LANE) for L in layers)

    def vrow(v):
        return jnp.pad(v.astype(jnp.float32), (0, cmax_p - v.shape[0]))

    for L in layers:
        w, b = L['w'], L['b']
        cin, cout = w.shape[0], w.shape[1]
        cin_p, cout_p = _pad_to(cin, LANE), _pad_to(cout, LANE)
        wt = jnp.transpose(w, (2, 3, 0, 1)).reshape(_K * _K, cin, cout)
        wt = jnp.pad(wt, ((0, 0), (0, cin_p - cin), (0, cout_p - cout)))
        wcat = jnp.transpose(wt, (1, 0, 2)).reshape(cin_p, _K * _K * cout_p)
        weights.append(wcat.astype(jnp.bfloat16))               # bf16 MXU operand

        bias_row = len(vec_rows); vec_rows.append(vrow(b))
        gamma_row = beta_row = -1
        if not L['is_last']:
            gamma_row = len(vec_rows); vec_rows.append(vrow(L['gamma']))
            beta_row = len(vec_rows); vec_rows.append(vrow(L['beta']))

        h_in = L['h_in']
        h_out = _S * (h_in - 1) + _K
        cfg.append(dict(cin=cin, cout=cout, cin_p=cin_p, cout_p=cout_p,
                        h_in=h_in, h_out=h_out, is_last=L['is_last'],
                        bias_row=bias_row, gamma_row=gamma_row, beta_row=beta_row))

    n_rows = len(vec_rows)
    vec = jnp.stack(vec_rows, axis=0)
    vec = jnp.pad(vec, ((0, _pad_to(n_rows, SUBLANE) - n_rows), (0, 0)))
    return weights, vec, cfg


# ---------------------------- fused Pallas kernel ----------------------------

def _make_fused_decoder_kernel(cfg, batch):
    """Fully-fused decoder body for a static layer config and batch size."""
    B = batch
    L = len(cfg)

    def kernel(*refs):
        x_ref = refs[0]
        w_refs = refs[1:1 + L]
        vec_ref = refs[1 + L]
        out_ref = refs[2 + L]
        scratch_refs = refs[3 + L:]

        vecs = vec_ref[...]                          # (rows_pad, Cmax_p) f32, one load
        x_bf = x_ref[...].astype(jnp.bfloat16)       # (pad8(B), Cin0_p) bf16 slab

        s_i = 0
        for li, c in enumerate(cfg):
            hin, hout = c['h_in'], c['h_out']
            win, wout = hin, hout
            cout_p = c['cout_p']
            m_out = hout * wout * B
            m_out_pad = _pad_to(m_out, SUBLANE)
            is_last = c['is_last']

            # ---- ONE stacked MXU matmul for the whole layer -----------------
            # x_bf: (pad8(B*Hin*Win), Cin_p) bf16, w: (Cin_p, 9*Cout_p) bf16
            # Tap block k = lanes [k*Cout_p : (k+1)*Cout_p] of the result.
            y = jnp.dot(x_bf, w_refs[li][...], preferred_element_type=jnp.float32)

            acc_ref = out_ref if is_last else scratch_refs[s_i]
            if not is_last:
                s_i += 1

            # ---- stride-2 transposed conv, gather-form polyphase scatter ----
            # out[2*ih+kh, 2*iw+kw] += x[ih, iw] @ W[:, :, kh, kw]
            # Each output-pixel row block of the slab is written exactly once
            # as the sum of its (<= 4) contributing static slices of y.
            for oh in range(hout):
                for ow in range(wout):
                    val = None
                    for kh in range(_K):
                        dih = oh - kh
                        if dih < 0 or (dih % _S) != 0 or dih // _S >= hin:
                            continue
                        ih = dih // _S
                        for kw in range(_K):
                            diw = ow - kw
                            if diw < 0 or (diw % _S) != 0 or diw // _S >= win:
                                continue
                            iw = diw // _S
                            k = kh * _K + kw
                            src = (ih * win + iw) * B
                            piece = y[src:src + B, k * cout_p:(k + 1) * cout_p]
                            val = piece if val is None else val + piece
                    dst = (oh * wout + ow) * B
                    acc_ref[dst:dst + B, :] = val
            if m_out_pad > m_out:
                acc_ref[m_out:m_out_pad, :] = jnp.zeros(
                    (m_out_pad - m_out, cout_p), jnp.float32)

            # ---- layer epilogue on the dense slab ---------------------------
            bias = vecs[c['bias_row']:c['bias_row'] + 1, :cout_p]        # (1, Cout_p)
            if is_last:
                # bias once + sigmoid (f32, EUP) over the whole output slab
                out_ref[...] = jax.nn.sigmoid(out_ref[...] + bias)
            else:
                # bias + ReLU + fused train-mode BatchNorm (biased variance),
                # single-pass statistics over the real rows of the slab.
                h = jnp.maximum(acc_ref[...] + bias, 0.0)                # (Mp, Cout_p)
                hr = h[:m_out]
                inv_n = 1.0 / float(m_out)
                mean = jnp.sum(hr, axis=0, keepdims=True) * inv_n
                ex2 = jnp.sum(hr * hr, axis=0, keepdims=True) * inv_n
                var = ex2 - mean * mean
                gamma = vecs[c['gamma_row']:c['gamma_row'] + 1, :cout_p]
                beta = vecs[c['beta_row']:c['beta_row'] + 1, :cout_p]
                scale = gamma * jax.lax.rsqrt(var + _BN_EPS)             # (1, Cout_p)
                shift = beta - mean * scale
                # bf16 inter-layer activation slab (next matmul consumes bf16)
                x_bf = (h * scale + shift).astype(jnp.bfloat16)

    return kernel


def decoder_forward(x, weights, vec, cfg):
    """Latent (B, z) [or (B, z, 1, 1)] -> image (B, 3, H, W), NCHW like PyTorch."""
    B = x.shape[0]
    x2 = x.reshape(B, -1).astype(jnp.float32)
    cin0, cin0_p = cfg[0]['cin'], cfg[0]['cin_p']
    m0_pad = _pad_to(B, SUBLANE)
    x_pad = jnp.pad(x2, ((0, m0_pad - B), (0, cin0_p - cin0)))   # lane/sublane dense

    last = cfg[-1]
    hout = last['h_out']
    cout, cout_p = last['cout'], last['cout_p']
    m_out = hout * hout * B
    m_out_pad = _pad_to(m_out, SUBLANE)

    kernel = _make_fused_decoder_kernel(cfg, B)
    inputs = (x_pad,) + tuple(weights) + (vec,)
    scratch_shapes = [
        pltpu.VMEM((_pad_to(c['h_out'] * c['h_out'] * B, SUBLANE), c['cout_p']),
                   jnp.float32)
        for c in cfg if not c['is_last']
    ]

    out_flat = pl.pallas_call(
        kernel,
        out_shape=jax.ShapeDtypeStruct((m_out_pad, cout_p), jnp.float32),
        grid=(1,),
        in_specs=[_full_spec(a.shape) for a in inputs],
        out_specs=_full_spec((m_out_pad, cout_p)),
        scratch_shapes=scratch_shapes,
        compiler_params=pltpu.CompilerParams(
            dimension_semantics=("arbitrary",)),
    )(*inputs)

    # layout glue only: drop row/lane padding, reorder (oh, ow, b, c) -> NCHW
    out = out_flat[:m_out, :cout].reshape(hout, hout, B, cout).transpose(2, 3, 0, 1)
    return out


# ---------------------------- pure-JAX reference ----------------------------

def reference_forward(x, layers):
    B = x.shape[0]
    h = x.reshape(B, -1, 1, 1).astype(jnp.float32)
    s = _S
    for L in layers:
        w, b = L['w'], L['b']
        Ci, Co, K, _ = w.shape
        _, _, Hin, Win = h.shape
        Ho, Wo = s * (Hin - 1) + K, s * (Win - 1) + K
        out = jnp.zeros((B, Co, Ho, Wo), jnp.float32)
        for kh in range(K):
            for kw in range(K):
                contrib = jnp.einsum('nchw,cd->ndhw', h, w[:, :, kh, kw],
                                     precision=jax.lax.Precision.HIGHEST)
                out = out.at[:, :, kh:kh + s * Hin:s, kw:kw + s * Win:s].add(contrib)
        h = out + b[None, :, None, None]
        if not L['is_last']:
            h = jnp.maximum(h, 0.0)
            mu = jnp.mean(h, axis=(0, 2, 3), keepdims=True)
            var = jnp.mean((h - mu) ** 2, axis=(0, 2, 3), keepdims=True)
            h = (h - mu) * jax.lax.rsqrt(var + _BN_EPS)
            h = h * L['gamma'][None, :, None, None] + L['beta'][None, :, None, None]
    return jax.nn.sigmoid(h)


# ---------------------------- main ----------------------------

if __name__ == "__main__":
    class Args:
        z_size = 4
        image_size = 7   # layer chain: 1 -> 3 -> 7  (two transposed-conv layers)

    args = Args()
    B = 2

    key = jax.random.PRNGKey(0)
    kx, kp = jax.random.split(key)
    x = jax.random.normal(kx, (B, args.z_size), jnp.float32)

    layers = build_decoder_params(kp, args.z_size, args.image_size)
    weights, vec, cfg = pack_decoder_params(layers)   # host-side packing, done once

    fwd = jax.jit(lambda inp: decoder_forward(inp, weights, vec, cfg))
    out = jax.block_until_ready(fwd(x))
    assert out.shape == (B, 3, args.image_size, args.image_size), out.shape

    ref = jax.block_until_ready(reference_forward(x, layers))
    # bf16 MXU operands with f32 accumulation; BN stats / sigmoid in f32
    np.testing.assert_allclose(np.asarray(out), np.asarray(ref), rtol=0, atol=2e-2)

    print("KERNEL_OK")
</pallas_src>

<mosaic_0001>
module attributes {stable_mosaic.version = 11 : i64} {
  func.func @kernel(%arg0: i32, %arg1: memref<8x128xf32, #tpu.memory_space<vmem>>, %arg2: memref<128x2304xbf16, #tpu.memory_space<vmem>>, %arg3: memref<256x1152xbf16, #tpu.memory_space<vmem>>, %arg4: memref<8x256xf32, #tpu.memory_space<vmem>>, %arg5: memref<104x128xf32, #tpu.memory_space<vmem>>, %arg6: memref<24x256xf32, #tpu.memory_space<vmem>>) attributes {dimension_semantics = [#tpu.dimension_semantics<arbitrary>], iteration_bounds = array<i64: 1>, scalar_prefetch = 0 : i64, scratch_operands = 1 : i64, tpu.core_type = #tpu.core_type<tc>, window_params = [{pipeline_mode = #tpu.pipeline_mode<synchronous>, transform_indices = @transform_0, window_bounds = array<i64: 8, 128>}, {pipeline_mode = #tpu.pipeline_mode<synchronous>, transform_indices = @transform_1, window_bounds = array<i64: 128, 2304>}, {pipeline_mode = #tpu.pipeline_mode<synchronous>, transform_indices = @transform_2, window_bounds = array<i64: 256, 1152>}, {pipeline_mode = #tpu.pipeline_mode<synchronous>, transform_indices = @transform_3, window_bounds = array<i64: 8, 256>}, {pipeline_mode = #tpu.pipeline_mode<synchronous>, transform_indices = @transform_4, window_bounds = array<i64: 104, 128>}]} {
    %c0 = arith.constant 0 : index
    %c0_0 = arith.constant 0 : index
    %0 = vector.load %arg4[%c0, %c0_0] : memref<8x256xf32, #tpu.memory_space<vmem>>, vector<8x256xf32>
    %c0_1 = arith.constant 0 : index
    %c0_2 = arith.constant 0 : index
    %1 = vector.load %arg1[%c0_1, %c0_2] : memref<8x128xf32, #tpu.memory_space<vmem>>, vector<8x128xf32>
    %2 = arith.truncf %1 : vector<8x128xf32> to vector<8x128xbf16>
    %c0_3 = arith.constant 0 : index
    %c0_4 = arith.constant 0 : index
    %3 = vector.load %arg2[%c0_3, %c0_4] : memref<128x2304xbf16, #tpu.memory_space<vmem>>, vector<128x2304xbf16>
    %cst = arith.constant dense<0.000000e+00> : vector<8x2304xf32>
    %4 = tpu.matmul %2, %3, %cst {dimension_numbers = #tpu.dot_dimension_numbers<[1], [0], [0], [1], [0, 0, 1, 1], [], []>} : vector<8x128xbf16>, vector<128x2304xbf16>, vector<8x2304xf32> -> vector<8x2304xf32>
    %5 = vector.extract_strided_slice %4 {offsets = [0, 0], sizes = [2, 256], strides = [1, 1]} : vector<8x2304xf32> to vector<2x256xf32>
    %c0_5 = arith.constant 0 : index
    %c0_6 = arith.constant 0 : index
    %6 = vector.load %arg6[%c0_5, %c0_6] : memref<24x256xf32, #tpu.memory_space<vmem>>, vector<2x256xf32>
    tpu.vector_store %arg6[%c0_5, %c0_6], %5 {strides = array<i32>} : memref<24x256xf32, #tpu.memory_space<vmem>>, vector<2x256xf32>,
    %7 = vector.extract_strided_slice %4 {offsets = [0, 256], sizes = [2, 256], strides = [1, 1]} : vector<8x2304xf32> to vector<2x256xf32>
    %c2 = arith.constant 2 : index
    %c0_7 = arith.constant 0 : index
    %8 = vector.load %arg6[%c2, %c0_7] : memref<24x256xf32, #tpu.memory_space<vmem>>, vector<2x256xf32>
    tpu.vector_store %arg6[%c2, %c0_7], %7 {strides = array<i32>} : memref<24x256xf32, #tpu.memory_space<vmem>>, vector<2x256xf32>,
    %9 = vector.extract_strided_slice %4 {offsets = [0, 512], sizes = [2, 256], strides = [1, 1]} : vector<8x2304xf32> to vector<2x256xf32>
    %c4 = arith.constant 4 : index
    %c0_8 = arith.constant 0 : index
    %10 = vector.load %arg6[%c4, %c0_8] : memref<24x256xf32, #tpu.memory_space<vmem>>, vector<2x256xf32>
    tpu.vector_store %arg6[%c4, %c0_8], %9 {strides = array<i32>} : memref<24x256xf32, #tpu.memory_space<vmem>>, vector<2x256xf32>,
    %11 = vector.extract_strided_slice %4 {offsets = [0, 768], sizes = [2, 256], strides = [1, 1]} : vector<8x2304xf32> to vector<2x256xf32>
    %c6 = arith.constant 6 : index
    %c0_9 = arith.constant 0 : index
    %12 = vector.load %arg6[%c6, %c0_9] : memref<24x256xf32, #tpu.memory_space<vmem>>, vector<2x256xf32>
    tpu.vector_store %arg6[%c6, %c0_9], %11 {strides = array<i32>} : memref<24x256xf32, #tpu.memory_space<vmem>>, vector<2x256xf32>,
    %13 = vector.extract_strided_slice %4 {offsets = [0, 1024], sizes = [2, 256], strides = [1, 1]} : vector<8x2304xf32> to vector<2x256xf32>
    %c8 = arith.constant 8 : index
    %c0_10 = arith.constant 0 : index
    %14 = vector.load %arg6[%c8, %c0_10] : memref<24x256xf32, #tpu.memory_space<vmem>>, vector<2x256xf32>
    tpu.vector_store %arg6[%c8, %c0_10], %13 {strides = array<i32>} : memref<24x256xf32, #tpu.memory_space<vmem>>, vector<2x256xf32>,
    %15 = vector.extract_strided_slice %4 {offsets = [0, 1280], sizes = [2, 256], strides = [1, 1]} : vector<8x2304xf32> to vector<2x256xf32>
    %c10 = arith.constant 10 : index
    %c0_11 = arith.constant 0 : index
    %16 = vector.load %arg6[%c10, %c0_11] : memref<24x256xf32, #tpu.memory_space<vmem>>, vector<2x256xf32>
    tpu.vector_store %arg6[%c10, %c0_11], %15 {strides = array<i32>} : memref<24x256xf32, #tpu.memory_space<vmem>>, vector<2x256xf32>,
    %17 = vector.extract_strided_slice %4 {offsets = [0, 1536], sizes = [2, 256], strides = [1, 1]} : vector<8x2304xf32> to vector<2x256xf32>
    %c12 = arith.constant 12 : index
    %c0_12 = arith.constant 0 : index
    %18 = vector.load %arg6[%c12, %c0_12] : memref<24x256xf32, #tpu.memory_space<vmem>>, vector<2x256xf32>
    tpu.vector_store %arg6[%c12, %c0_12], %17 {strides = array<i32>} : memref<24x256xf32, #tpu.memory_space<vmem>>, vector<2x256xf32>,
    %19 = vector.extract_strided_slice %4 {offsets = [0, 1792], sizes = [2, 256], strides = [1, 1]} : vector<8x2304xf32> to vector<2x256xf32>
    %c14 = arith.constant 14 : index
    %c0_13 = arith.constant 0 : index
    %20 = vector.load %arg6[%c14, %c0_13] : memref<24x256xf32, #tpu.memory_space<vmem>>, vector<2x256xf32>
    tpu.vector_store %arg6[%c14, %c0_13], %19 {strides = array<i32>} : memref<24x256xf32, #tpu.memory_space<vmem>>, vector<2x256xf32>,
    %21 = vector.extract_strided_slice %4 {offsets = [0, 2048], sizes = [2, 256], strides = [1, 1]} : vector<8x2304xf32> to vector<2x256xf32>
    %c16 = arith.constant 16 : index
    %c0_14 = arith.constant 0 : index
    %22 = vector.load %arg6[%c16, %c0_14] : memref<24x256xf32, #tpu.memory_space<vmem>>, vector<2x256xf32>
    tpu.vector_store %arg6[%c16, %c0_14], %21 {strides = array<i32>} : memref<24x256xf32, #tpu.memory_space<vmem>>, vector<2x256xf32>,
    %cst_15 = arith.constant 0.000000e+00 : f32
    %23 = vector.broadcast %cst_15 : f32 to vector<6x256xf32>
    %c18 = arith.constant 18 : index
    %c0_16 = arith.constant 0 : index
    %24 = vector.load %arg6[%c18, %c0_16] : memref<24x256xf32, #tpu.memory_space<vmem>>, vector<6x256xf32>
    tpu.vector_store %arg6[%c18, %c0_16], %23 {strides = array<i32>} : memref<24x256xf32, #tpu.memory_space<vmem>>, vector<6x256xf32>,
    %25 = vector.extract_strided_slice %0 {offsets = [0, 0], sizes = [1, 256], strides = [1, 1]} : vector<8x256xf32> to vector<1x256xf32>
    %c0_17 = arith.constant 0 : index
    %c0_18 = arith.constant 0 : index
    %26 = vector.load %arg6[%c0_17, %c0_18] : memref<24x256xf32, #tpu.memory_space<vmem>>, vector<24x256xf32>
    %27 = vector.broadcast %25 : vector<1x256xf32> to vector<24x256xf32>
    %28 = arith.addf %26, %27 : vector<24x256xf32>
    %cst_19 = arith.constant 0.000000e+00 : f32
    %29 = vector.broadcast %cst_19 : f32 to vector<24x256xf32>
    %30 = arith.maximumf %28, %29 : vector<24x256xf32>
    %31 = vector.extract_strided_slice %30 {offsets = [0, 0], sizes = [18, 256], strides = [1, 1]} : vector<24x256xf32> to vector<18x256xf32>
    %cst_20 = arith.constant dense<0.000000e+00> : vector<256xf32>
    %32 = vector.multi_reduction <add>, %31, %cst_20 [0] : vector<18x256xf32> to vector<256xf32>
    %33 = vector.shape_cast %32 : vector<256xf32> to vector<1x256xf32>
    %cst_21 = arith.constant 0.055555556 : f32
    %34 = vector.broadcast %cst_21 : f32 to vector<1x256xf32>
    %35 = arith.mulf %33, %34 : vector<1x256xf32>
    %36 = arith.mulf %31, %31 : vector<18x256xf32>
    %cst_22 = arith.constant dense<0.000000e+00> : vector<256xf32>
    %37 = vector.multi_reduction <add>, %36, %cst_22 [0] : vector<18x256xf32> to vector<256xf32>
    %38 = vector.shape_cast %37 : vector<256xf32> to vector<1x256xf32>
    %cst_23 = arith.constant 0.055555556 : f32
    %39 = vector.broadcast %cst_23 : f32 to vector<1x256xf32>
    %40 = arith.mulf %38, %39 : vector<1x256xf32>
    %41 = arith.mulf %35, %35 : vector<1x256xf32>
    %42 = arith.subf %40, %41 : vector<1x256xf32>
    %43 = vector.extract_strided_slice %0 {offsets = [1, 0], sizes = [1, 256], strides = [1, 1]} : vector<8x256xf32> to vector<1x256xf32>
    %44 = vector.extract_strided_slice %0 {offsets = [2, 0], sizes = [1, 256], strides = [1, 1]} : vector<8x256xf32> to vector<1x256xf32>
    %cst_24 = arith.constant 9.99999974E-6 : f32
    %45 = vector.broadcast %cst_24 : f32 to vector<1x256xf32>
    %46 = arith.addf %42, %45 : vector<1x256xf32>
    %47 = math.rsqrt %46 : vector<1x256xf32>
    %48 = arith.mulf %43, %47 : vector<1x256xf32>
    %49 = arith.mulf %35, %48 : vector<1x256xf32>
    %50 = arith.subf %44, %49 : vector<1x256xf32>
    %51 = vector.broadcast %48 : vector<1x256xf32> to vector<24x256xf32>
    %52 = arith.mulf %30, %51 : vector<24x256xf32>
    %53 = vector.broadcast %50 : vector<1x256xf32> to vector<24x256xf32>
    %54 = arith.addf %52, %53 : vector<24x256xf32>
    %55 = arith.truncf %54 : vector<24x256xf32> to vector<24x256xbf16>
    %c0_25 = arith.constant 0 : index
    %c0_26 = arith.constant 0 : index
    %56 = vector.load %arg3[%c0_25, %c0_26] : memref<256x1152xbf16, #tpu.memory_space<vmem>>, vector<256x1152xbf16>
    %cst_27 = arith.constant dense<0.000000e+00> : vector<24x1152xf32>
    %57 = tpu.matmul %55, %56, %cst_27 {dimension_numbers = #tpu.dot_dimension_numbers<[1], [0], [0], [1], [0, 0, 1, 1], [], []>} : vector<24x256xbf16>, vector<256x1152xbf16>, vector<24x1152xf32> -> vector<24x1152xf32>
    %58 = vector.extract_strided_slice %57 {offsets = [0, 0], sizes = [2, 128], strides = [1, 1]} : vector<24x1152xf32> to vector<2x128xf32>
    %c0_28 = arith.constant 0 : index
    %c0_29 = arith.constant 0 : index
    %59 = vector.load %arg5[%c0_28, %c0_29] : memref<104x128xf32, #tpu.memory_space<vmem>>, vector<2x128xf32>
    tpu.vector_store %arg5[%c0_28, %c0_29], %58 {strides = array<i32>} : memref<104x128xf32, #tpu.memory_space<vmem>>, vector<2x128xf32>,
    %60 = vector.extract_strided_slice %57 {offsets = [0, 128], sizes = [2, 128], strides = [1, 1]} : vector<24x1152xf32> to vector<2x128xf32>
    %c2_30 = arith.constant 2 : index
    %c0_31 = arith.constant 0 : index
    %61 = vector.load %arg5[%c2_30, %c0_31] : memref<104x128xf32, #tpu.memory_space<vmem>>, vector<2x128xf32>
    tpu.vector_store %arg5[%c2_30, %c0_31], %60 {strides = array<i32>} : memref<104x128xf32, #tpu.memory_space<vmem>>, vector<2x128xf32>,
    %62 = vector.extract_strided_slice %57 {offsets = [2, 0], sizes = [2, 128], strides = [1, 1]} : vector<24x1152xf32> to vector<2x128xf32>
    %63 = vector.extract_strided_slice %57 {offsets = [0, 256], sizes = [2, 128], strides = [1, 1]} : vector<24x1152xf32> to vector<2x128xf32>
    %64 = arith.addf %62, %63 : vector<2x128xf32>
    %c4_32 = arith.constant 4 : index
    %c0_33 = arith.constant 0 : index
    %65 = vector.load %arg5[%c4_32, %c0_33] : memref<104x128xf32, #tpu.memory_space<vmem>>, vector<2x128xf32>
    tpu.vector_store %arg5[%c4_32, %c0_33], %64 {strides = array<i32>} : memref<104x128xf32, #tpu.memory_space<vmem>>, vector<2x128xf32>,
    %66 = vector.extract_strided_slice %57 {offsets = [2, 128], sizes = [2, 128], strides = [1, 1]} : vector<24x1152xf32> to vector<2x128xf32>
    %c6_34 = arith.constant 6 : index
    %c0_35 = arith.constant 0 : index
    %67 = vector.load %arg5[%c6_34, %c0_35] : memref<104x128xf32, #tpu.memory_space<vmem>>, vector<2x128xf32>
    tpu.vector_store %arg5[%c6_34, %c0_35], %66 {strides = array<i32>} : memref<104x128xf32, #tpu.memory_space<vmem>>, vector<2x128xf32>,
    %68 = vector.extract_strided_slice %57 {offsets = [4, 0], sizes = [2, 128], strides = [1, 1]} : vector<24x1152xf32> to vector<2x128xf32>
    %69 = vector.extract_strided_slice %57 {offsets = [2, 256], sizes = [2, 128], strides = [1, 1]} : vector<24x1152xf32> to vector<2x128xf32>
    %70 = arith.addf %68, %69 : vector<2x128xf32>
    %c8_36 = arith.constant 8 : index
    %c0_37 = arith.constant 0 : index
    %71 = vector.load %arg5[%c8_36, %c0_37] : memref<104x128xf32, #tpu.memory_space<vmem>>, vector<2x128xf32>
    tpu.vector_store %arg5[%c8_36, %c0_37], %70 {strides = array<i32>} : memref<104x128xf32, #tpu.memory_space<vmem>>, vector<2x128xf32>,
    %72 = vector.extract_strided_slice %57 {offsets = [4, 128], sizes = [2, 128], strides = [1, 1]} : vector<24x1152xf32> to vector<2x128xf32>
    %c10_38 = arith.constant 10 : index
    %c0_39 = arith.constant 0 : index
    %73 = vector.load %arg5[%c10_38, %c0_39] : memref<104x128xf32, #tpu.memory_space<vmem>>, vector<2x128xf32>
    tpu.vector_store %arg5[%c10_38, %c0_39], %72 {strides = array<i32>} : memref<104x128xf32, #tpu.memory_space<vmem>>, vector<2x128xf32>,
    %74 = vector.extract_strided_slice %57 {offsets = [4, 256], sizes = [2, 128], strides = [1, 1]} : vector<24x1152xf32> to vector<2x128xf32>
    %c12_40 = arith.constant 12 : index
    %c0_41 = arith.constant 0 : index
    %75 = vector.load %arg5[%c12_40, %c0_41] : memref<104x128xf32, #tpu.memory_space<vmem>>, vector<2x128xf32>
    tpu.vector_store %arg5[%c12_40, %c0_41], %74 {strides = array<i32>} : memref<104x128xf32, #tpu.memory_space<vmem>>, vector<2x128xf32>,
    %76 = vector.extract_strided_slice %57 {offsets = [0, 384], sizes = [2, 128], strides = [1, 1]} : vector<24x1152xf32> to vector<2x128xf32>
    %c14_42 = arith.constant 14 : index
    %c0_43 = arith.constant 0 : index
    %77 = vector.load %arg5[%c14_42, %c0_43] : memref<104x128xf32, #tpu.memory_space<vmem>>, vector<2x128xf32>
    tpu.vector_store %arg5[%c14_42, %c0_43], %76 {strides = array<i32>} : memref<104x128xf32, #tpu.memory_space<vmem>>, vector<2x128xf32>,
    %78 = vector.extract_strided_slice %57 {offsets = [0, 512], sizes = [2, 128], strides = [1, 1]} : vector<24x1152xf32> to vector<2x128xf32>
    %c16_44 = arith.constant 16 : index
    %c0_45 = arith.constant 0 : index
    %79 = vector.load %arg5[%c16_44, %c0_45] : memref<104x128xf32, #tpu.memory_space<vmem>>, vector<2x128xf32>
    tpu.vector_store %arg5[%c16_44, %c0_45], %78 {strides = array<i32>} : memref<104x128xf32, #tpu.memory_space<vmem>>, vector<2x128xf32>,
    %80 = vector.extract_strided_slice %57 {offsets = [2, 384], sizes = [2, 128], strides = [1, 1]} : vector<24x1152xf32> to vector<2x128xf32>
    %81 = vector.extract_strided_slice %57 {offsets = [0, 640], sizes = [2, 128], strides = [1, 1]} : vector<24x1152xf32> to vector<2x128xf32>
    %82 = arith.addf %80, %81 : vector<2x128xf32>
    %c18_46 = arith.constant 18 : index
    %c0_47 = arith.constant 0 : index
    %83 = vector.load %arg5[%c18_46, %c0_47] : memref<104x128xf32, #tpu.memory_space<vmem>>, vector<2x128xf32>
    tpu.vector_store %arg5[%c18_46, %c0_47], %82 {strides = array<i32>} : memref<104x128xf32, #tpu.memory_space<vmem>>, vector<2x128xf32>,
    %84 = vector.extract_strided_slice %57 {offsets = [2, 512], sizes = [2, 128], strides = [1, 1]} : vector<24x1152xf32> to vector<2x128xf32>
    %c20 = arith.constant 20 : index
    %c0_48 = arith.constant 0 : index
    %85 = vector.load %arg5[%c20, %c0_48] : memref<104x128xf32, #tpu.memory_space<vmem>>, vector<2x128xf32>
    tpu.vector_store %arg5[%c20, %c0_48], %84 {strides = array<i32>} : memref<104x128xf32, #tpu.memory_space<vmem>>, vector<2x128xf32>,
    %86 = vector.extract_strided_slice %57 {offsets = [4, 384], sizes = [2, 128], strides = [1, 1]} : vector<24x1152xf32> to vector<2x128xf32>
    %87 = vector.extract_strided_slice %57 {offsets = [2, 640], sizes = [2, 128], strides = [1, 1]} : vector<24x1152xf32> to vector<2x128xf32>
    %88 = arith.addf %86, %87 : vector<2x128xf32>
    %c22 = arith.constant 22 : index
    %c0_49 = arith.constant 0 : index
    %89 = vector.load %arg5[%c22, %c0_49] : memref<104x128xf32, #tpu.memory_space<vmem>>, vector<2x128xf32>
    tpu.vector_store %arg5[%c22, %c0_49], %88 {strides = array<i32>} : memref<104x128xf32, #tpu.memory_space<vmem>>, vector<2x128xf32>,
    %90 = vector.extract_strided_slice %57 {offsets = [4, 512], sizes = [2, 128], strides = [1, 1]} : vector<24x1152xf32> to vector<2x128xf32>
    %c24 = arith.constant 24 : index
    %c0_50 = arith.constant 0 : index
    %91 = vector.load %arg5[%c24, %c0_50] : memref<104x128xf32, #tpu.memory_space<vmem>>, vector<2x128xf32>
    tpu.vector_store %arg5[%c24, %c0_50], %90 {strides = array<i32>} : memref<104x128xf32, #tpu.memory_space<vmem>>, vector<2x128xf32>,
    %92 = vector.extract_strided_slice %57 {offsets = [4, 640], sizes = [2, 128], strides = [1, 1]} : vector<24x1152xf32> to vector<2x128xf32>
    %c26 = arith.constant 26 : index
    %c0_51 = arith.constant 0 : index
    %93 = vector.load %arg5[%c26, %c0_51] : memref<104x128xf32, #tpu.memory_space<vmem>>, vector<2x128xf32>
    tpu.vector_store %arg5[%c26, %c0_51], %92 {strides = array<i32>} : memref<104x128xf32, #tpu.memory_space<vmem>>, vector<2x128xf32>,
    %94 = vector.extract_strided_slice %57 {offsets = [6, 0], sizes = [2, 128], strides = [1, 1]} : vector<24x1152xf32> to vector<2x128xf32>
    %95 = vector.extract_strided_slice %57 {offsets = [0, 768], sizes = [2, 128], strides = [1, 1]} : vector<24x1152xf32> to vector<2x128xf32>
    %96 = arith.addf %94, %95 : vector<2x128xf32>
    %c28 = arith.constant 28 : index
    %c0_52 = arith.constant 0 : index
    %97 = vector.load %arg5[%c28, %c0_52] : memref<104x128xf32, #tpu.memory_space<vmem>>, vector<2x128xf32>
    tpu.vector_store %arg5[%c28, %c0_52], %96 {strides = array<i32>} : memref<104x128xf32, #tpu.memory_space<vmem>>, vector<2x128xf32>,
    %98 = vector.extract_strided_slice %57 {offsets = [6, 128], sizes = [2, 128], strides = [1, 1]} : vector<24x1152xf32> to vector<2x128xf32>
    %99 = vector.extract_strided_slice %57 {offsets = [0, 896], sizes = [2, 128], strides = [1, 1]} : vector<24x1152xf32> to vector<2x128xf32>
    %100 = arith.addf %98, %99 : vector<2x128xf32>
    %c30 = arith.constant 30 : index
    %c0_53 = arith.constant 0 : index
    %101 = vector.load %arg5[%c30, %c0_53] : memref<104x128xf32, #tpu.memory_space<vmem>>, vector<2x128xf32>
    tpu.vector_store %arg5[%c30, %c0_53], %100 {strides = array<i32>} : memref<104x128xf32, #tpu.memory_space<vmem>>, vector<2x128xf32>,
    %102 = vector.extract_strided_slice %57 {offsets = [8, 0], sizes = [2, 128], strides = [1, 1]} : vector<24x1152xf32> to vector<2x128xf32>
    %103 = vector.extract_strided_slice %57 {offsets = [6, 256], sizes = [2, 128], strides = [1, 1]} : vector<24x1152xf32> to vector<2x128xf32>
    %104 = arith.addf %102, %103 : vector<2x128xf32>
    %105 = vector.extract_strided_slice %57 {offsets = [2, 768], sizes = [2, 128], strides = [1, 1]} : vector<24x1152xf32> to vector<2x128xf32>
    %106 = arith.addf %104, %105 : vector<2x128xf32>
    %107 = vector.extract_strided_slice %57 {offsets = [0, 1024], sizes = [2, 128], strides = [1, 1]} : vector<24x1152xf32> to vector<2x128xf32>
    %108 = arith.addf %106, %107 : vector<2x128xf32>
    %c32 = arith.constant 32 : index
    %c0_54 = arith.constant 0 : index
    %109 = vector.load %arg5[%c32, %c0_54] : memref<104x128xf32, #tpu.memory_space<vmem>>, vector<2x128xf32>
    tpu.vector_store %arg5[%c32, %c0_54], %108 {strides = array<i32>} : memref<104x128xf32, #tpu.memory_space<vmem>>, vector<2x128xf32>,
    %110 = vector.extract_strided_slice %57 {offsets = [8, 128], sizes = [2, 128], strides = [1, 1]} : vector<24x1152xf32> to vector<2x128xf32>
    %111 = vector.extract_strided_slice %57 {offsets = [2, 896], sizes = [2, 128], strides = [1, 1]} : vector<24x1152xf32> to vector<2x128xf32>
    %112 = arith.addf %110, %111 : vector<2x128xf32>
    %c34 = arith.constant 34 : index
    %c0_55 = arith.constant 0 : index
    %113 = vector.load %arg5[%c34, %c0_55] : memref<104x128xf32, #tpu.memory_space<vmem>>, vector<2x128xf32>
    tpu.vector_store %arg5[%c34, %c0_55], %112 {strides = array<i32>} : memref<104x128xf32, #tpu.memory_space<vmem>>, vector<2x128xf32>,
    %114 = vector.extract_strided_slice %57 {offsets = [10, 0], sizes = [2, 128], strides = [1, 1]} : vector<24x1152xf32> to vector<2x128xf32>
    %115 = vector.extract_strided_slice %57 {offsets = [8, 256], sizes = [2, 128], strides = [1, 1]} : vector<24x1152xf32> to vector<2x128xf32>
    %116 = arith.addf %114, %115 : vector<2x128xf32>
    %117 = vector.extract_strided_slice %57 {offsets = [4, 768], sizes = [2, 128], strides = [1, 1]} : vector<24x1152xf32> to vector<2x128xf32>
    %118 = arith.addf %116, %117 : vector<2x128xf32>
    %119 = vector.extract_strided_slice %57 {offsets = [2, 1024], sizes = [2, 128], strides = [1, 1]} : vector<24x1152xf32> to vector<2x128xf32>
    %120 = arith.addf %118, %119 : vector<2x128xf32>
    %c36 = arith.constant 36 : index
    %c0_56 = arith.constant 0 : index
    %121 = vector.load %arg5[%c36, %c0_56] : memref<104x128xf32, #tpu.memory_space<vmem>>, vector<2x128xf32>
    tpu.vector_store %arg5[%c36, %c0_56], %120 {strides = array<i32>} : memref<104x128xf32, #tpu.memory_space<vmem>>, vector<2x128xf32>,
    %122 = vector.extract_strided_slice %57 {offsets = [10, 128], sizes = [2, 128], strides = [1, 1]} : vector<24x1152xf32> to vector<2x128xf32>
    %123 = vector.extract_strided_slice %57 {offsets = [4, 896], sizes = [2, 128], strides = [1, 1]} : vector<24x1152xf32> to vector<2x128xf32>
    %124 = arith.addf %122, %123 : vector<2x128xf32>
    %c38 = arith.constant 38 : index
    %c0_57 = arith.constant 0 : index
    %125 = vector.load %arg5[%c38, %c0_57] : memref<104x128xf32, #tpu.memory_space<vmem>>, vector<2x128xf32>
    tpu.vector_store %arg5[%c38, %c0_57], %124 {strides = array<i32>} : memref<104x128xf32, #tpu.memory_space<vmem>>, vector<2x128xf32>,
    %126 = vector.extract_strided_slice %57 {offsets = [10, 256], sizes = [2, 128], strides = [1, 1]} : vector<24x1152xf32> to vector<2x128xf32>
    %127 = vector.extract_strided_slice %57 {offsets = [4, 1024], sizes = [2, 128], strides = [1, 1]} : vector<24x1152xf32> to vector<2x128xf32>
    %128 = arith.addf %126, %127 : vector<2x128xf32>
    %c40 = arith.constant 40 : index
    %c0_58 = arith.constant 0 : index
    %129 = vector.load %arg5[%c40, %c0_58] : memref<104x128xf32, #tpu.memory_space<vmem>>, vector<2x128xf32>
    tpu.vector_store %arg5[%c40, %c0_58], %128 {strides = array<i32>} : memref<104x128xf32, #tpu.memory_space<vmem>>, vector<2x128xf32>,
    %130 = vector.extract_strided_slice %57 {offsets = [6, 384], sizes = [2, 128], strides = [1, 1]} : vector<24x1152xf32> to vector<2x128xf32>
    %c42 = arith.constant 42 : index
    %c0_59 = arith.constant 0 : index
    %131 = vector.load %arg5[%c42, %c0_59] : memref<104x128xf32, #tpu.memory_space<vmem>>, vector<2x128xf32>
    tpu.vector_store %arg5[%c42, %c0_59], %130 {strides = array<i32>} : memref<104x128xf32, #tpu.memory_space<vmem>>, vector<2x128xf32>,
    %132 = vector.extract_strided_slice %57 {offsets = [6, 512], sizes = [2, 128], strides = [1, 1]} : vector<24x1152xf32> to vector<2x128xf32>
    %c44 = arith.constant 44 : index
    %c0_60 = arith.constant 0 : index
    %133 = vector.load %arg5[%c44, %c0_60] : memref<104x128xf32, #tpu.memory_space<vmem>>, vector<2x128xf32>
    tpu.vector_store %arg5[%c44, %c0_60], %132 {strides = array<i32>} : memref<104x128xf32, #tpu.memory_space<vmem>>, vector<2x128xf32>,
    %134 = vector.extract_strided_slice %57 {offsets = [8, 384], sizes = [2, 128], strides = [1, 1]} : vector<24x1152xf32> to vector<2x128xf32>
    %135 = vector.extract_strided_slice %57 {offsets = [6, 640], sizes = [2, 128], strides = [1, 1]} : vector<24x1152xf32> to vector<2x128xf32>
    %136 = arith.addf %134, %135 : vector<2x128xf32>
    %c46 = arith.constant 46 : index
    %c0_61 = arith.constant 0 : index
    %137 = vector.load %arg5[%c46, %c0_61] : memref<104x128xf32, #tpu.memory_space<vmem>>, vector<2x128xf32>
    tpu.vector_store %arg5[%c46, %c0_61], %136 {strides = array<i32>} : memref<104x128xf32, #tpu.memory_space<vmem>>, vector<2x128xf32>,
    %138 = vector.extract_strided_slice %57 {offsets = [8, 512], sizes = [2, 128], strides = [1, 1]} : vector<24x1152xf32> to vector<2x128xf32>
    %c48 = arith.constant 48 : index
    %c0_62 = arith.constant 0 : index
    %139 = vector.load %arg5[%c48, %c0_62] : memref<104x128xf32, #tpu.memory_space<vmem>>, vector<2x128xf32>
    tpu.vector_store %arg5[%c48, %c0_62], %138 {strides = array<i32>} : memref<104x128xf32, #tpu.memory_space<vmem>>, vector<2x128xf32>,
    %140 = vector.extract_strided_slice %57 {offsets = [10, 384], sizes = [2, 128], strides = [1, 1]} : vector<24x1152xf32> to vector<2x128xf32>
    %141 = vector.extract_strided_slice %57 {offsets = [8, 640], sizes = [2, 128], strides = [1, 1]} : vector<24x1152xf32> to vector<2x128xf32>
    %142 = arith.addf %140, %141 : vector<2x128xf32>
    %c50 = arith.constant 50 : index
    %c0_63 = arith.constant 0 : index
    %143 = vector.load %arg5[%c50, %c0_63] : memref<104x128xf32, #tpu.memory_space<vmem>>, vector<2x128xf32>
    tpu.vector_store %arg5[%c50, %c0_63], %142 {strides = array<i32>} : memref<104x128xf32, #tpu.memory_space<vmem>>, vector<2x128xf32>,
    %144 = vector.extract_strided_slice %57 {offsets = [10, 512], sizes = [2, 128], strides = [1, 1]} : vector<24x1152xf32> to vector<2x128xf32>
    %c52 = arith.constant 52 : index
    %c0_64 = arith.constant 0 : index
    %145 = vector.load %arg5[%c52, %c0_64] : memref<104x128xf32, #tpu.memory_space<vmem>>, vector<2x128xf32>
    tpu.vector_store %arg5[%c52, %c0_64], %144 {strides = array<i32>} : memref<104x128xf32, #tpu.memory_space<vmem>>, vector<2x128xf32>,
    %146 = vector.extract_strided_slice %57 {offsets = [10, 640], sizes = [2, 128], strides = [1, 1]} : vector<24x1152xf32> to vector<2x128xf32>
    %c54 = arith.constant 54 : index
    %c0_65 = arith.constant 0 : index
    %147 = vector.load %arg5[%c54, %c0_65] : memref<104x128xf32, #tpu.memory_space<vmem>>, vector<2x128xf32>
    tpu.vector_store %arg5[%c54, %c0_65], %146 {strides = array<i32>} : memref<104x128xf32, #tpu.memory_space<vmem>>, vector<2x128xf32>,
    %148 = vector.extract_strided_slice %57 {offsets = [12, 0], sizes = [2, 128], strides = [1, 1]} : vector<24x1152xf32> to vector<2x128xf32>
    %149 = vector.extract_strided_slice %57 {offsets = [6, 768], sizes = [2, 128], strides = [1, 1]} : vector<24x1152xf32> to vector<2x128xf32>
    %150 = arith.addf %148, %149 : vector<2x128xf32>
    %c56 = arith.constant 56 : index
    %c0_66 = arith.constant 0 : index
    %151 = vector.load %arg5[%c56, %c0_66] : memref<104x128xf32, #tpu.memory_space<vmem>>, vector<2x128xf32>
    tpu.vector_store %arg5[%c56, %c0_66], %150 {strides = array<i32>} : memref<104x128xf32, #tpu.memory_space<vmem>>, vector<2x128xf32>,
    %152 = vector.extract_strided_slice %57 {offsets = [12, 128], sizes = [2, 128], strides = [1, 1]} : vector<24x1152xf32> to vector<2x128xf32>
    %153 = vector.extract_strided_slice %57 {offsets = [6, 896], sizes = [2, 128], strides = [1, 1]} : vector<24x1152xf32> to vector<2x128xf32>
    %154 = arith.addf %152, %153 : vector<2x128xf32>
    %c58 = arith.constant 58 : index
    %c0_67 = arith.constant 0 : index
    %155 = vector.load %arg5[%c58, %c0_67] : memref<104x128xf32, #tpu.memory_space<vmem>>, vector<2x128xf32>
    tpu.vector_store %arg5[%c58, %c0_67], %154 {strides = array<i32>} : memref<104x128xf32, #tpu.memory_space<vmem>>, vector<2x128xf32>,
    %156 = vector.extract_strided_slice %57 {offsets = [14, 0], sizes = [2, 128], strides = [1, 1]} : vector<24x1152xf32> to vector<2x128xf32>
    %157 = vector.extract_strided_slice %57 {offsets = [12, 256], sizes = [2, 128], strides = [1, 1]} : vector<24x1152xf32> to vector<2x128xf32>
    %158 = arith.addf %156, %157 : vector<2x128xf32>
    %159 = vector.extract_strided_slice %57 {offsets = [8, 768], sizes = [2, 128], strides = [1, 1]} : vector<24x1152xf32> to vector<2x128xf32>
    %160 = arith.addf %158, %159 : vector<2x128xf32>
    %161 = vector.extract_strided_slice %57 {offsets = [6, 1024], sizes = [2, 128], strides = [1, 1]} : vector<24x1152xf32> to vector<2x128xf32>
    %162 = arith.addf %160, %161 : vector<2x128xf32>
    %c60 = arith.constant 60 : index
    %c0_68 = arith.constant 0 : index
    %163 = vector.load %arg5[%c60, %c0_68] : memref<104x128xf32, #tpu.memory_space<vmem>>, vector<2x128xf32>
    tpu.vector_store %arg5[%c60, %c0_68], %162 {strides = array<i32>} : memref<104x128xf32, #tpu.memory_space<vmem>>, vector<2x128xf32>,
    %164 = vector.extract_strided_slice %57 {offsets = [14, 128], sizes = [2, 128], strides = [1, 1]} : vector<24x1152xf32> to vector<2x128xf32>
    %165 = vector.extract_strided_slice %57 {offsets = [8, 896], sizes = [2, 128], strides = [1, 1]} : vector<24x1152xf32> to vector<2x128xf32>
    %166 = arith.addf %164, %165 : vector<2x128xf32>
    %c62 = arith.constant 62 : index
    %c0_69 = arith.constant 0 : index
    %167 = vector.load %arg5[%c62, %c0_69] : memref<104x128xf32, #tpu.memory_space<vmem>>, vector<2x128xf32>
    tpu.vector_store %arg5[%c62, %c0_69], %166 {strides = array<i32>} : memref<104x128xf32, #tpu.memory_space<vmem>>, vector<2x128xf32>,
    %168 = vector.extract_strided_slice %57 {offsets = [16, 0], sizes = [2, 128], strides = [1, 1]} : vector<24x1152xf32> to vector<2x128xf32>
    %169 = vector.extract_strided_slice %57 {offsets = [14, 256], sizes = [2, 128], strides = [1, 1]} : vector<24x1152xf32> to vector<2x128xf32>
    %170 = arith.addf %168, %169 : vector<2x128xf32>
    %171 = vector.extract_strided_slice %57 {offsets = [10, 768], sizes = [2, 128], strides = [1, 1]} : vector<24x1152xf32> to vector<2x128xf32>
    %172 = arith.addf %170, %171 : vector<2x128xf32>
    %173 = vector.extract_strided_slice %57 {offsets = [8, 1024], sizes = [2, 128], strides = [1, 1]} : vector<24x1152xf32> to vector<2x128xf32>
    %174 = arith.addf %172, %173 : vector<2x128xf32>
    %c64 = arith.constant 64 : index
    %c0_70 = arith.constant 0 : index
    %175 = vector.load %arg5[%c64, %c0_70] : memref<104x128xf32, #tpu.memory_space<vmem>>, vector<2x128xf32>
    tpu.vector_store %arg5[%c64, %c0_70], %174 {strides = array<i32>} : memref<104x128xf32, #tpu.memory_space<vmem>>, vector<2x128xf32>,
    %176 = vector.extract_strided_slice %57 {offsets = [16, 128], sizes = [2, 128], strides = [1, 1]} : vector<24x1152xf32> to vector<2x128xf32>
    %177 = vector.extract_strided_slice %57 {offsets = [10, 896], sizes = [2, 128], strides = [1, 1]} : vector<24x1152xf32> to vector<2x128xf32>
    %178 = arith.addf %176, %177 : vector<2x128xf32>
    %c66 = arith.constant 66 : index
    %c0_71 = arith.constant 0 : index
    %179 = vector.load %arg5[%c66, %c0_71] : memref<104x128xf32, #tpu.memory_space<vmem>>, vector<2x128xf32>
    tpu.vector_store %arg5[%c66, %c0_71], %178 {strides = array<i32>} : memref<104x128xf32, #tpu.memory_space<vmem>>, vector<2x128xf32>,
    %180 = vector.extract_strided_slice %57 {offsets = [16, 256], sizes = [2, 128], strides = [1, 1]} : vector<24x1152xf32> to vector<2x128xf32>
    %181 = vector.extract_strided_slice %57 {offsets = [10, 1024], sizes = [2, 128], strides = [1, 1]} : vector<24x1152xf32> to vector<2x128xf32>
    %182 = arith.addf %180, %181 : vector<2x128xf32>
    %c68 = arith.constant 68 : index
    %c0_72 = arith.constant 0 : index
    %183 = vector.load %arg5[%c68, %c0_72] : memref<104x128xf32, #tpu.memory_space<vmem>>, vector<2x128xf32>
    tpu.vector_store %arg5[%c68, %c0_72], %182 {strides = array<i32>} : memref<104x128xf32, #tpu.memory_space<vmem>>, vector<2x128xf32>,
    %184 = vector.extract_strided_slice %57 {offsets = [12, 384], sizes = [2, 128], strides = [1, 1]} : vector<24x1152xf32> to vector<2x128xf32>
    %c70 = arith.constant 70 : index
    %c0_73 = arith.constant 0 : index
    %185 = vector.load %arg5[%c70, %c0_73] : memref<104x128xf32, #tpu.memory_space<vmem>>, vector<2x128xf32>
    tpu.vector_store %arg5[%c70, %c0_73], %184 {strides = array<i32>} : memref<104x128xf32, #tpu.memory_space<vmem>>, vector<2x128xf32>,
    %186 = vector.extract_strided_slice %57 {offsets = [12, 512], sizes = [2, 128], strides = [1, 1]} : vector<24x1152xf32> to vector<2x128xf32>
    %c72 = arith.constant 72 : index
    %c0_74 = arith.constant 0 : index
    %187 = vector.load %arg5[%c72, %c0_74] : memref<104x128xf32, #tpu.memory_space<vmem>>, vector<2x128xf32>
    tpu.vector_store %arg5[%c72, %c0_74], %186 {strides = array<i32>} : memref<104x128xf32, #tpu.memory_space<vmem>>, vector<2x128xf32>,
    %188 = vector.extract_strided_slice %57 {offsets = [14, 384], sizes = [2, 128], strides = [1, 1]} : vector<24x1152xf32> to vector<2x128xf32>
    %189 = vector.extract_strided_slice %57 {offsets = [12, 640], sizes = [2, 128], strides = [1, 1]} : vector<24x1152xf32> to vector<2x128xf32>
    %190 = arith.addf %188, %189 : vector<2x128xf32>
    %c74 = arith.constant 74 : index
    %c0_75 = arith.constant 0 : index
    %191 = vector.load %arg5[%c74, %c0_75] : memref<104x128xf32, #tpu.memory_space<vmem>>, vector<2x128xf32>
    tpu.vector_store %arg5[%c74, %c0_75], %190 {strides = array<i32>} : memref<104x128xf32, #tpu.memory_space<vmem>>, vector<2x128xf32>,
    %192 = vector.extract_strided_slice %57 {offsets = [14, 512], sizes = [2, 128], strides = [1, 1]} : vector<24x1152xf32> to vector<2x128xf32>
    %c76 = arith.constant 76 : index
    %c0_76 = arith.constant 0 : index
    %193 = vector.load %arg5[%c76, %c0_76] : memref<104x128xf32, #tpu.memory_space<vmem>>, vector<2x128xf32>
    tpu.vector_store %arg5[%c76, %c0_76], %192 {strides = array<i32>} : memref<104x128xf32, #tpu.memory_space<vmem>>, vector<2x128xf32>,
    %194 = vector.extract_strided_slice %57 {offsets = [16, 384], sizes = [2, 128], strides = [1, 1]} : vector<24x1152xf32> to vector<2x128xf32>
    %195 = vector.extract_strided_slice %57 {offsets = [14, 640], sizes = [2, 128], strides = [1, 1]} : vector<24x1152xf32> to vector<2x128xf32>
    %196 = arith.addf %194, %195 : vector<2x128xf32>
    %c78 = arith.constant 78 : index
    %c0_77 = arith.constant 0 : index
    %197 = vector.load %arg5[%c78, %c0_77] : memref<104x128xf32, #tpu.memory_space<vmem>>, vector<2x128xf32>
    tpu.vector_store %arg5[%c78, %c0_77], %196 {strides = array<i32>} : memref<104x128xf32, #tpu.memory_space<vmem>>, vector<2x128xf32>,
    %198 = vector.extract_strided_slice %57 {offsets = [16, 512], sizes = [2, 128], strides = [1, 1]} : vector<24x1152xf32> to vector<2x128xf32>
    %c80 = arith.constant 80 : index
    %c0_78 = arith.constant 0 : index
    %199 = vector.load %arg5[%c80, %c0_78] : memref<104x128xf32, #tpu.memory_space<vmem>>, vector<2x128xf32>
    tpu.vector_store %arg5[%c80, %c0_78], %198 {strides = array<i32>} : memref<104x128xf32, #tpu.memory_space<vmem>>, vector<2x128xf32>,
    %200 = vector.extract_strided_slice %57 {offsets = [16, 640], sizes = [2, 128], strides = [1, 1]} : vector<24x1152xf32> to vector<2x128xf32>
    %c82 = arith.constant 82 : index
    %c0_79 = arith.constant 0 : index
    %201 = vector.load %arg5[%c82, %c0_79] : memref<104x128xf32, #tpu.memory_space<vmem>>, vector<2x128xf32>
    tpu.vector_store %arg5[%c82, %c0_79], %200 {strides = array<i32>} : memref<104x128xf32, #tpu.memory_space<vmem>>, vector<2x128xf32>,
    %202 = vector.extract_strided_slice %57 {offsets = [12, 768], sizes = [2, 128], strides = [1, 1]} : vector<24x1152xf32> to vector<2x128xf32>
    %c84 = arith.constant 84 : index
    %c0_80 = arith.constant 0 : index
    %203 = vector.load %arg5[%c84, %c0_80] : memref<104x128xf32, #tpu.memory_space<vmem>>, vector<2x128xf32>
    tpu.vector_store %arg5[%c84, %c0_80], %202 {strides = array<i32>} : memref<104x128xf32, #tpu.memory_space<vmem>>, vector<2x128xf32>,
    %204 = vector.extract_strided_slice %57 {offsets = [12, 896], sizes = [2, 128], strides = [1, 1]} : vector<24x1152xf32> to vector<2x128xf32>
    %c86 = arith.constant 86 : index
    %c0_81 = arith.constant 0 : index
    %205 = vector.load %arg5[%c86, %c0_81] : memref<104x128xf32, #tpu.memory_space<vmem>>, vector<2x128xf32>
    tpu.vector_store %arg5[%c86, %c0_81], %204 {strides = array<i32>} : memref<104x128xf32, #tpu.memory_space<vmem>>, vector<2x128xf32>,
    %206 = vector.extract_strided_slice %57 {offsets = [14, 768], sizes = [2, 128], strides = [1, 1]} : vector<24x1152xf32> to vector<2x128xf32>
    %207 = vector.extract_strided_slice %57 {offsets = [12, 1024], sizes = [2, 128], strides = [1, 1]} : vector<24x1152xf32> to vector<2x128xf32>
    %208 = arith.addf %206, %207 : vector<2x128xf32>
    %c88 = arith.constant 88 : index
    %c0_82 = arith.constant 0 : index
    %209 = vector.load %arg5[%c88, %c0_82] : memref<104x128xf32, #tpu.memory_space<vmem>>, vector<2x128xf32>
    tpu.vector_store %arg5[%c88, %c0_82], %208 {strides = array<i32>} : memref<104x128xf32, #tpu.memory_space<vmem>>, vector<2x128xf32>,
    %210 = vector.extract_strided_slice %57 {offsets = [14, 896], sizes = [2, 128], strides = [1, 1]} : vector<24x1152xf32> to vector<2x128xf32>
    %c90 = arith.constant 90 : index
    %c0_83 = arith.constant 0 : index
    %211 = vector.load %arg5[%c90, %c0_83] : memref<104x128xf32, #tpu.memory_space<vmem>>, vector<2x128xf32>
    tpu.vector_store %arg5[%c90, %c0_83], %210 {strides = array<i32>} : memref<104x128xf32, #tpu.memory_space<vmem>>, vector<2x128xf32>,
    %212 = vector.extract_strided_slice %57 {offsets = [16, 768], sizes = [2, 128], strides = [1, 1]} : vector<24x1152xf32> to vector<2x128xf32>
    %213 = vector.extract_strided_slice %57 {offsets = [14, 1024], sizes = [2, 128], strides = [1, 1]} : vector<24x1152xf32> to vector<2x128xf32>
    %214 = arith.addf %212, %213 : vector<2x128xf32>
    %c92 = arith.constant 92 : index
    %c0_84 = arith.constant 0 : index
    %215 = vector.load %arg5[%c92, %c0_84] : memref<104x128xf32, #tpu.memory_space<vmem>>, vector<2x128xf32>
    tpu.vector_store %arg5[%c92, %c0_84], %214 {strides = array<i32>} : memref<104x128xf32, #tpu.memory_space<vmem>>, vector<2x128xf32>,
    %216 = vector.extract_strided_slice %57 {offsets = [16, 896], sizes = [2, 128], strides = [1, 1]} : vector<24x1152xf32> to vector<2x128xf32>
    %c94 = arith.constant 94 : index
    %c0_85 = arith.constant 0 : index
    %217 = vector.load %arg5[%c94, %c0_85] : memref<104x128xf32, #tpu.memory_space<vmem>>, vector<2x128xf32>
    tpu.vector_store %arg5[%c94, %c0_85], %216 {strides = array<i32>} : memref<104x128xf32, #tpu.memory_space<vmem>>, vector<2x128xf32>,
    %218 = vector.extract_strided_slice %57 {offsets = [16, 1024], sizes = [2, 128], strides = [1, 1]} : vector<24x1152xf32> to vector<2x128xf32>
    %c96 = arith.constant 96 : index
    %c0_86 = arith.constant 0 : index
    %219 = vector.load %arg5[%c96, %c0_86] : memref<104x128xf32, #tpu.memory_space<vmem>>, vector<2x128xf32>
    tpu.vector_store %arg5[%c96, %c0_86], %218 {strides = array<i32>} : memref<104x128xf32, #tpu.memory_space<vmem>>, vector<2x128xf32>,
    %cst_87 = arith.constant 0.000000e+00 : f32
    %220 = vector.broadcast %cst_87 : f32 to vector<6x128xf32>
    %c98 = arith.constant 98 : index
    %c0_88 = arith.constant 0 : index
    %221 = vector.load %arg5[%c98, %c0_88] : memref<104x128xf32, #tpu.memory_space<vmem>>, vector<6x128xf32>
    tpu.vector_store %arg5[%c98, %c0_88], %220 {strides = array<i32>} : memref<104x128xf32, #tpu.memory_space<vmem>>, vector<6x128xf32>,
    %222 = vector.extract_strided_slice %0 {offsets = [3, 0], sizes = [1, 128], strides = [1, 1]} : vector<8x256xf32> to vector<1x128xf32>
    %c0_89 = arith.constant 0 : index
    %c0_90 = arith.constant 0 : index
    %223 = vector.load %arg5[%c0_89, %c0_90] : memref<104x128xf32, #tpu.memory_space<vmem>>, vector<104x128xf32>
    %224 = vector.broadcast %222 : vector<1x128xf32> to vector<104x128xf32>
    %225 = arith.addf %223, %224 : vector<104x128xf32>
    %226 = arith.negf %225 : vector<104x128xf32>
    %227 = math.exp %226 : vector<104x128xf32>
    %cst_91 = arith.constant 1.000000e+00 : f32
    %228 = vector.broadcast %cst_91 : f32 to vector<104x128xf32>
    %229 = arith.addf %228, %227 : vector<104x128xf32>
    %230 = arith.divf %228, %229 : vector<104x128xf32>
    %c0_92 = arith.constant 0 : index
    %c0_93 = arith.constant 0 : index
    %231 = vector.load %arg5[%c0_92, %c0_93] : memref<104x128xf32, #tpu.memory_space<vmem>>, vector<104x128xf32>
    tpu.vector_store %arg5[%c0_92, %c0_93], %230 {strides = array<i32>} : memref<104x128xf32, #tpu.memory_space<vmem>>, vector<104x128xf32>,
    return
  }
  func.func @transform_0(%arg0: i32) -> (i32, i32) {
    %c0_i32 = arith.constant 0 : i32
    %c0_i32_0 = arith.constant 0 : i32
    %c0_i32_1 = arith.constant 0 : i32
    return %c0_i32, %c0_i32_0 : i32, i32
  }
  func.func @transform_1(%arg0: i32) -> (i32, i32) {
    %c0_i32 = arith.constant 0 : i32
    %c0_i32_0 = arith.constant 0 : i32
    %c0_i32_1 = arith.constant 0 : i32
    return %c0_i32, %c0_i32_0 : i32, i32
  }
  func.func @transform_2(%arg0: i32) -> (i32, i32) {
    %c0_i32 = arith.constant 0 : i32
    %c0_i32_0 = arith.constant 0 : i32
    %c0_i32_1 = arith.constant 0 : i32
    return %c0_i32, %c0_i32_0 : i32, i32
  }
  func.func @transform_3(%arg0: i32) -> (i32, i32) {
    %c0_i32 = arith.constant 0 : i32
    %c0_i32_0 = arith.constant 0 : i32
    %c0_i32_1 = arith.constant 0 : i32
    return %c0_i32, %c0_i32_0 : i32, i32
  }
  func.func @transform_4(%arg0: i32) -> (i32, i32) {
    %c0_i32 = arith.constant 0 : i32
    %c0_i32_0 = arith.constant 0 : i32
    %c0_i32_1 = arith.constant 0 : i32
    return %c0_i32, %c0_i32_0 : i32, i32
  }
}

</mosaic_0001>

<llo_original>
// kernel: _lambda_.1
$region0: #{_lambda_.1}
  #allocation0 [shape = 'u32[]', space=smem, size = 0x4, offset = 0x4, fixed_abs, tag = 'smem constant byte address 0x4 - core index']
  #allocation1 [shape = 'u32[144,128]{1,0:T(1,128)}', space=vmem, size = 0x12000, scoped, tag = 'internal scratch']
  #allocation2 [shape = 'f32[24,256]{1,0:T(8,128)}', space=vmem, size = 0x6000, scoped, tag = 'scratch operand']
  %s0 = inlined_call_operand.vmem [shape: f32[8,128], index: 0, kind: input, shape index: {}]
  %s1 = inlined_call_operand.vmem [shape: bf16[128,2304], index: 1, kind: input, shape index: {}]
  %s2 = inlined_call_operand.vmem [shape: bf16[256,1152], index: 2, kind: input, shape index: {}]
  %s3 = inlined_call_operand.vmem [shape: f32[8,256], index: 3, kind: input, shape index: {}]
  %s4 = inlined_call_operand.vmem [shape: f32[104,128], index: 4, kind: output, shape index: {}]
  %s5 = sld [smem:[#allocation0]]
  $region26: #{_lambda_.1} parent=0
    _
  %s7 = ssub.s32 1, %s5
  %s8 = scalar_select 0, %s7, %s5
  // Predicated region
  $region2: #{_lambda_.1} parent=0 // pred_check
    _
  $region3: #{_lambda_.1} parent=0 // pred_check_branch
    %10 = sbr.rel (0) target = $region5
  $region4: #{_lambda_.1} parent=0 // pred_region
    _
  $region5: #{_lambda_.1} parent=0 // pred_fallthru
    _
  // Predicated region
  $region6: #{_lambda_.1} parent=0 // pred_check
    _
  $region7: #{_lambda_.1} parent=0 // pred_check_branch
    %12 = sbr.rel (0) target = $region9
  $region8: #{_lambda_.1} parent=0 // pred_region
    _
  $region9: #{_lambda_.1} parent=0 // pred_fallthru
    _
  // Predicated region
  $region10: #{_lambda_.1} parent=0 // pred_check
    _
  $region11: #{_lambda_.1} parent=0 // pred_check_branch
    %14 = sbr.rel (0) target = $region13
  $region12: #{_lambda_.1} parent=0 // pred_region
    _
  $region13: #{_lambda_.1} parent=0 // pred_fallthru
    _
  // Predicated region
  $region14: #{_lambda_.1} parent=0 // pred_check
    _
  $region15: #{_lambda_.1} parent=0 // pred_check_branch
    %16 = sbr.rel (0) target = $region17
  $region16: #{_lambda_.1} parent=0 // pred_region
    _
  $region17: #{_lambda_.1} parent=0 // pred_fallthru
    _
  %v18 = vld [vmem:[%s3] sm:$0xff]
  %v19 = vld [vmem:[%s3 + $0x8] sm:$0xff]
  %v20 = vld [vmem:[%s0] sm:$0xff]
  %v21 = vpack.c.bf16 %v20, %v20
  %v22 = vld [vmem:[%s1] sm:$0xff]
  %v23 = vld [vmem:[%s1 + $0x8] sm:$0xff]
  %v24 = vld [vmem:[%s1 + $0x10] sm:$0xff]
  %v25 = vld [vmem:[%s1 + $0x18] sm:$0xff]
  %v26 = vld [vmem:[%s1 + $0x20] sm:$0xff]
  %v27 = vld [vmem:[%s1 + $0x28] sm:$0xff]
  %v28 = vld [vmem:[%s1 + $0x30] sm:$0xff]
  %v29 = vld [vmem:[%s1 + $0x38] sm:$0xff]
  %v30 = vld [vmem:[%s1 + $0x40] sm:$0xff]
  %v31 = vld [vmem:[%s1 + $0x48] sm:$0xff]
  %v32 = vld [vmem:[%s1 + $0x50] sm:$0xff]
  %v33 = vld [vmem:[%s1 + $0x58] sm:$0xff]
  %v34 = vld [vmem:[%s1 + $0x60] sm:$0xff]
  %v35 = vld [vmem:[%s1 + $0x68] sm:$0xff]
  %v36 = vld [vmem:[%s1 + $0x70] sm:$0xff]
  %v37 = vld [vmem:[%s1 + $0x78] sm:$0xff]
  %v38 = vld [vmem:[%s1 + $0x80] sm:$0xff]
  %v39 = vld [vmem:[%s1 + $0x88] sm:$0xff]
  %v40 = vld [vmem:[%s1 + $0x90] sm:$0xff]
  %v41 = vld [vmem:[%s1 + $0x98] sm:$0xff]
  %v42 = vld [vmem:[%s1 + $0xa0] sm:$0xff]
  %v43 = vld [vmem:[%s1 + $0xa8] sm:$0xff]
  %v44 = vld [vmem:[%s1 + $0xb0] sm:$0xff]
  %v45 = vld [vmem:[%s1 + $0xb8] sm:$0xff]
  %v46 = vld [vmem:[%s1 + $0xc0] sm:$0xff]
  %v47 = vld [vmem:[%s1 + $0xc8] sm:$0xff]
  %v48 = vld [vmem:[%s1 + $0xd0] sm:$0xff]
  %v49 = vld [vmem:[%s1 + $0xd8] sm:$0xff]
  %v50 = vld [vmem:[%s1 + $0xe0] sm:$0xff]
  %v51 = vld [vmem:[%s1 + $0xe8] sm:$0xff]
  %v52 = vld [vmem:[%s1 + $0xf0] sm:$0xff]
  %v53 = vld [vmem:[%s1 + $0xf8] sm:$0xff]
  %v54 = vld [vmem:[%s1 + $0x100] sm:$0xff]
  %v55 = vld [vmem:[%s1 + $0x108] sm:$0xff]
  %v56 = vld [vmem:[%s1 + $0x110] sm:$0xff]
  %v57 = vld [vmem:[%s1 + $0x118] sm:$0xff]
  %v58 = vld [vmem:[%s1 + $0x120] sm:$0xff]
  %v59 = vld [vmem:[%s1 + $0x128] sm:$0xff]
  %v60 = vld [vmem:[%s1 + $0x130] sm:$0xff]
  %v61 = vld [vmem:[%s1 + $0x138] sm:$0xff]
  %v62 = vld [vmem:[%s1 + $0x140] sm:$0xff]
  %v63 = vld [vmem:[%s1 + $0x148] sm:$0xff]
  %v64 = vld [vmem:[%s1 + $0x150] sm:$0xff]
  %v65 = vld [vmem:[%s1 + $0x158] sm:$0xff]
  %v66 = vld [vmem:[%s1 + $0x160] sm:$0xff]
  %v67 = vld [vmem:[%s1 + $0x168] sm:$0xff]
  %v68 = vld [vmem:[%s1 + $0x170] sm:$0xff]
  %v69 = vld [vmem:[%s1 + $0x178] sm:$0xff]
  %v70 = vld [vmem:[%s1 + $0x180] sm:$0xff]
  %v71 = vld [vmem:[%s1 + $0x188] sm:$0xff]
  %v72 = vld [vmem:[%s1 + $0x190] sm:$0xff]
  %v73 = vld [vmem:[%s1 + $0x198] sm:$0xff]
  %v74 = vld [vmem:[%s1 + $0x1a0] sm:$0xff]
  %v75 = vld [vmem:[%s1 + $0x1a8] sm:$0xff]
  %v76 = vld [vmem:[%s1 + $0x1b0] sm:$0xff]
  %v77 = vld [vmem:[%s1 + $0x1b8] sm:$0xff]
  %v78 = vld [vmem:[%s1 + $0x1c0] sm:$0xff]
  %v79 = vld [vmem:[%s1 + $0x1c8] sm:$0xff]
  %v80 = vld [vmem:[%s1 + $0x1d0] sm:$0xff]
  %v81 = vld [vmem:[%s1 + $0x1d8] sm:$0xff]
  %v82 = vld [vmem:[%s1 + $0x1e0] sm:$0xff]
  %v83 = vld [vmem:[%s1 + $0x1e8] sm:$0xff]
  %v84 = vld [vmem:[%s1 + $0x1f0] sm:$0xff]
  %v85 = vld [vmem:[%s1 + $0x1f8] sm:$0xff]
  %v86 = vld [vmem:[%s1 + $0x200] sm:$0xff]
  %v87 = vld [vmem:[%s1 + $0x208] sm:$0xff]
  %v88 = vld [vmem:[%s1 + $0x210] sm:$0xff]
  %v89 = vld [vmem:[%s1 + $0x218] sm:$0xff]
  %v90 = vld [vmem:[%s1 + $0x220] sm:$0xff]
  %v91 = vld [vmem:[%s1 + $0x228] sm:$0xff]
  %v92 = vld [vmem:[%s1 + $0x230] sm:$0xff]
  %v93 = vld [vmem:[%s1 + $0x238] sm:$0xff]
  %v94 = vld [vmem:[%s1 + $0x240] sm:$0xff]
  %v95 = vld [vmem:[%s1 + $0x248] sm:$0xff]
  %v96 = vld [vmem:[%s1 + $0x250] sm:$0xff]
  %v97 = vld [vmem:[%s1 + $0x258] sm:$0xff]
  %v98 = vld [vmem:[%s1 + $0x260] sm:$0xff]
  %v99 = vld [vmem:[%s1 + $0x268] sm:$0xff]
  %v100 = vld [vmem:[%s1 + $0x270] sm:$0xff]
  %v101 = vld [vmem:[%s1 + $0x278] sm:$0xff]
  %v102 = vld [vmem:[%s1 + $0x280] sm:$0xff]
  %v103 = vld [vmem:[%s1 + $0x288] sm:$0xff]
  %v104 = vld [vmem:[%s1 + $0x290] sm:$0xff]
  %v105 = vld [vmem:[%s1 + $0x298] sm:$0xff]
  %v106 = vld [vmem:[%s1 + $0x2a0] sm:$0xff]
  %v107 = vld [vmem:[%s1 + $0x2a8] sm:$0xff]
  %v108 = vld [vmem:[%s1 + $0x2b0] sm:$0xff]
  %v109 = vld [vmem:[%s1 + $0x2b8] sm:$0xff]
  %v110 = vld [vmem:[%s1 + $0x2c0] sm:$0xff]
  %v111 = vld [vmem:[%s1 + $0x2c8] sm:$0xff]
  %v112 = vld [vmem:[%s1 + $0x2d0] sm:$0xff]
  %v113 = vld [vmem:[%s1 + $0x2d8] sm:$0xff]
  %v114 = vld [vmem:[%s1 + $0x2e0] sm:$0xff]
  %v115 = vld [vmem:[%s1 + $0x2e8] sm:$0xff]
  %v116 = vld [vmem:[%s1 + $0x2f0] sm:$0xff]
  %v117 = vld [vmem:[%s1 + $0x2f8] sm:$0xff]
  %v118 = vld [vmem:[%s1 + $0x300] sm:$0xff]
  %v119 = vld [vmem:[%s1 + $0x308] sm:$0xff]
  %v120 = vld [vmem:[%s1 + $0x310] sm:$0xff]
  %v121 = vld [vmem:[%s1 + $0x318] sm:$0xff]
  %v122 = vld [vmem:[%s1 + $0x320] sm:$0xff]
  %v123 = vld [vmem:[%s1 + $0x328] sm:$0xff]
  %v124 = vld [vmem:[%s1 + $0x330] sm:$0xff]
  %v125 = vld [vmem:[%s1 + $0x338] sm:$0xff]
  %v126 = vld [vmem:[%s1 + $0x340] sm:$0xff]
  %v127 = vld [vmem:[%s1 + $0x348] sm:$0xff]
  %v128 = vld [vmem:[%s1 + $0x350] sm:$0xff]
  %v129 = vld [vmem:[%s1 + $0x358] sm:$0xff]
  %v130 = vld [vmem:[%s1 + $0x360] sm:$0xff]
  %v131 = vld [vmem:[%s1 + $0x368] sm:$0xff]
  %v132 = vld [vmem:[%s1 + $0x370] sm:$0xff]
  %v133 = vld [vmem:[%s1 + $0x378] sm:$0xff]
  %v134 = vld [vmem:[%s1 + $0x380] sm:$0xff]
  %v135 = vld [vmem:[%s1 + $0x388] sm:$0xff]
  %v136 = vld [vmem:[%s1 + $0x390] sm:$0xff]
  %v137 = vld [vmem:[%s1 + $0x398] sm:$0xff]
  %v138 = vld [vmem:[%s1 + $0x3a0] sm:$0xff]
  %v139 = vld [vmem:[%s1 + $0x3a8] sm:$0xff]
  %v140 = vld [vmem:[%s1 + $0x3b0] sm:$0xff]
  %v141 = vld [vmem:[%s1 + $0x3b8] sm:$0xff]
  %v142 = vld [vmem:[%s1 + $0x3c0] sm:$0xff]
  %v143 = vld [vmem:[%s1 + $0x3c8] sm:$0xff]
  %v144 = vld [vmem:[%s1 + $0x3d0] sm:$0xff]
  %v145 = vld [vmem:[%s1 + $0x3d8] sm:$0xff]
  %v146 = vld [vmem:[%s1 + $0x3e0] sm:$0xff]
  %v147 = vld [vmem:[%s1 + $0x3e8] sm:$0xff]
  %v148 = vld [vmem:[%s1 + $0x3f0] sm:$0xff]
  %v149 = vld [vmem:[%s1 + $0x3f8] sm:$0xff]
  %v150 = vld [vmem:[%s1 + $0x400] sm:$0xff]
  %v151 = vld [vmem:[%s1 + $0x408] sm:$0xff]
  %v152 = vld [vmem:[%s1 + $0x410] sm:$0xff]
  %v153 = vld [vmem:[%s1 + $0x418] sm:$0xff]
  %v154 = vld [vmem:[%s1 + $0x420] sm:$0xff]
  %v155 = vld [vmem:[%s1 + $0x428] sm:$0xff]
  %v156 = vld [vmem:[%s1 + $0x430] sm:$0xff]
  %v157 = vld [vmem:[%s1 + $0x438] sm:$0xff]
  %v158 = vld [vmem:[%s1 + $0x440] sm:$0xff]
  %v159 = vld [vmem:[%s1 + $0x448] sm:$0xff]
  %v160 = vld [vmem:[%s1 + $0x450] sm:$0xff]
  %v161 = vld [vmem:[%s1 + $0x458] sm:$0xff]
  %v162 = vld [vmem:[%s1 + $0x460] sm:$0xff]
  %v163 = vld [vmem:[%s1 + $0x468] sm:$0xff]
  %v164 = vld [vmem:[%s1 + $0x470] sm:$0xff]
  %v165 = vld [vmem:[%s1 + $0x478] sm:$0xff]
  %v310 = vunpack.c.l.b16 %v22
  %v311 = vunpack.c.h.b16 %v22
  %v312 = vunpack.c.l.b16 %v23
  %v313 = vunpack.c.h.b16 %v23
  %v314 = vunpack.c.l.b16 %v24
  %v315 = vunpack.c.h.b16 %v24
  %v316 = vunpack.c.l.b16 %v25
  %v317 = vunpack.c.h.b16 %v25
  %v318 = vunpack.c.l.b16 %v26
  %v319 = vunpack.c.h.b16 %v26
  %v320 = vunpack.c.l.b16 %v27
  %v321 = vunpack.c.h.b16 %v27
  %v322 = vunpack.c.l.b16 %v28
  %v323 = vunpack.c.h.b16 %v28
  %v324 = vunpack.c.l.b16 %v29
  %v325 = vunpack.c.h.b16 %v29
  %v326 = vunpack.c.l.b16 %v30
  %v327 = vunpack.c.h.b16 %v30
  %v328 = vunpack.c.l.b16 %v31
  %v329 = vunpack.c.h.b16 %v31
  %v330 = vunpack.c.l.b16 %v32
  %v331 = vunpack.c.h.b16 %v32
  %v332 = vunpack.c.l.b16 %v33
  %v333 = vunpack.c.h.b16 %v33
  %v334 = vunpack.c.l.b16 %v34
  %v335 = vunpack.c.h.b16 %v34
  %v336 = vunpack.c.l.b16 %v35
  %v337 = vunpack.c.h.b16 %v35
  %v338 = vunpack.c.l.b16 %v36
  %v339 = vunpack.c.h.b16 %v36
  %v340 = vunpack.c.l.b16 %v37
  %v341 = vunpack.c.h.b16 %v37
  %v342 = vunpack.c.l.b16 %v38
  %v343 = vunpack.c.h.b16 %v38
  %v344 = vunpack.c.l.b16 %v39
  %v345 = vunpack.c.h.b16 %v39
  %v346 = vunpack.c.l.b16 %v40
  %v347 = vunpack.c.h.b16 %v40
  %v348 = vunpack.c.l.b16 %v41
  %v349 = vunpack.c.h.b16 %v41
  %v350 = vunpack.c.l.b16 %v42
  %v351 = vunpack.c.h.b16 %v42
  %v352 = vunpack.c.l.b16 %v43
  %v353 = vunpack.c.h.b16 %v43
  %v354 = vunpack.c.l.b16 %v44
  %v355 = vunpack.c.h.b16 %v44
  %v356 = vunpack.c.l.b16 %v45
  %v357 = vunpack.c.h.b16 %v45
  %v358 = vunpack.c.l.b16 %v46
  %v359 = vunpack.c.h.b16 %v46
  %v360 = vunpack.c.l.b16 %v47
  %v361 = vunpack.c.h.b16 %v47
  %v362 = vunpack.c.l.b16 %v48
  %v363 = vunpack.c.h.b16 %v48
  %v364 = vunpack.c.l.b16 %v49
  %v365 = vunpack.c.h.b16 %v49
  %v366 = vunpack.c.l.b16 %v50
  %v367 = vunpack.c.h.b16 %v50
  %v368 = vunpack.c.l.b16 %v51
  %v369 = vunpack.c.h.b16 %v51
  %v370 = vunpack.c.l.b16 %v52
  %v371 = vunpack.c.h.b16 %v52
  %v372 = vunpack.c.l.b16 %v53
  %v373 = vunpack.c.h.b16 %v53
  %v374 = vunpack.c.l.b16 %v54
  %v375 = vunpack.c.h.b16 %v54
  %v376 = vunpack.c.l.b16 %v55
  %v377 = vunpack.c.h.b16 %v55
  %v378 = vunpack.c.l.b16 %v56
  %v379 = vunpack.c.h.b16 %v56
  %v380 = vunpack.c.l.b16 %v57
  %v381 = vunpack.c.h.b16 %v57
  %v382 = vunpack.c.l.b16 %v58
  %v383 = vunpack.c.h.b16 %v58
  %v384 = vunpack.c.l.b16 %v59
  %v385 = vunpack.c.h.b16 %v59
  %v386 = vunpack.c.l.b16 %v60
  %v387 = vunpack.c.h.b16 %v60
  %v388 = vunpack.c.l.b16 %v61
  %v389 = vunpack.c.h.b16 %v61
  %v390 = vunpack.c.l.b16 %v62
  %v391 = vunpack.c.h.b16 %v62
  %v392 = vunpack.c.l.b16 %v63
  %v393 = vunpack.c.h.b16 %v63
  %v394 = vunpack.c.l.b16 %v64
  %v395 = vunpack.c.h.b16 %v64
  %v396 = vunpack.c.l.b16 %v65
  %v397 = vunpack.c.h.b16 %v65
  %v398 = vunpack.c.l.b16 %v66
  %v399 = vunpack.c.h.b16 %v66
  %v400 = vunpack.c.l.b16 %v67
  %v401 = vunpack.c.h.b16 %v67
  %v402 = vunpack.c.l.b16 %v68
  %v403 = vunpack.c.h.b16 %v68
  %v404 = vunpack.c.l.b16 %v69
  %v405 = vunpack.c.h.b16 %v69
  %v406 = vunpack.c.l.b16 %v70
  %v407 = vunpack.c.h.b16 %v70
  %v408 = vunpack.c.l.b16 %v71
  %v409 = vunpack.c.h.b16 %v71
  %v410 = vunpack.c.l.b16 %v72
  %v411 = vunpack.c.h.b16 %v72
  %v412 = vunpack.c.l.b16 %v73
  %v413 = vunpack.c.h.b16 %v73
  %v414 = vunpack.c.l.b16 %v74
  %v415 = vunpack.c.h.b16 %v74
  %v416 = vunpack.c.l.b16 %v75
  %v417 = vunpack.c.h.b16 %v75
  %v418 = vunpack.c.l.b16 %v76
  %v419 = vunpack.c.h.b16 %v76
  %v420 = vunpack.c.l.b16 %v77
  %v421 = vunpack.c.h.b16 %v77
  %v422 = vunpack.c.l.b16 %v78
  %v423 = vunpack.c.h.b16 %v78
  %v424 = vunpack.c.l.b16 %v79
  %v425 = vunpack.c.h.b16 %v79
  %v426 = vunpack.c.l.b16 %v80
  %v427 = vunpack.c.h.b16 %v80
  %v428 = vunpack.c.l.b16 %v81
  %v429 = vunpack.c.h.b16 %v81
  %v430 = vunpack.c.l.b16 %v82
  %v431 = vunpack.c.h.b16 %v82
  %v432 = vunpack.c.l.b16 %v83
  %v433 = vunpack.c.h.b16 %v83
  %v434 = vunpack.c.l.b16 %v84
  %v435 = vunpack.c.h.b16 %v84
  %v436 = vunpack.c.l.b16 %v85
  %v437 = vunpack.c.h.b16 %v85
  %v438 = vunpack.c.l.b16 %v86
  %v439 = vunpack.c.h.b16 %v86
  %v440 = vunpack.c.l.b16 %v87
  %v441 = vunpack.c.h.b16 %v87
  %v442 = vunpack.c.l.b16 %v88
  %v443 = vunpack.c.h.b16 %v88
  %v444 = vunpack.c.l.b16 %v89
  %v445 = vunpack.c.h.b16 %v89
  %v446 = vunpack.c.l.b16 %v90
  %v447 = vunpack.c.h.b16 %v90
  %v448 = vunpack.c.l.b16 %v91
  %v449 = vunpack.c.h.b16 %v91
  %v450 = vunpack.c.l.b16 %v92
  %v451 = vunpack.c.h.b16 %v92
  %v452 = vunpack.c.l.b16 %v93
  %v453 = vunpack.c.h.b16 %v93
  %v454 = vunpack.c.l.b16 %v94
  %v455 = vunpack.c.h.b16 %v94
  %v456 = vunpack.c.l.b16 %v95
  %v457 = vunpack.c.h.b16 %v95
  %v458 = vunpack.c.l.b16 %v96
  %v459 = vunpack.c.h.b16 %v96
  %v460 = vunpack.c.l.b16 %v97
  %v461 = vunpack.c.h.b16 %v97
  %v462 = vunpack.c.l.b16 %v98
  %v463 = vunpack.c.h.b16 %v98
  %v464 = vunpack.c.l.b16 %v99
  %v465 = vunpack.c.h.b16 %v99
  %v466 = vunpack.c.l.b16 %v100
  %v467 = vunpack.c.h.b16 %v100
  %v468 = vunpack.c.l.b16 %v101
  %v469 = vunpack.c.h.b16 %v101
  %v470 = vunpack.c.l.b16 %v102
  %v471 = vunpack.c.h.b16 %v102
  %v472 = vunpack.c.l.b16 %v103
  %v473 = vunpack.c.h.b16 %v103
  %v474 = vunpack.c.l.b16 %v104
  %v475 = vunpack.c.h.b16 %v104
  %v476 = vunpack.c.l.b16 %v105
  %v477 = vunpack.c.h.b16 %v105
  %v478 = vunpack.c.l.b16 %v106
  %v479 = vunpack.c.h.b16 %v106
  %v480 = vunpack.c.l.b16 %v107
  %v481 = vunpack.c.h.b16 %v107
  %v482 = vunpack.c.l.b16 %v108
  %v483 = vunpack.c.h.b16 %v108
  %v484 = vunpack.c.l.b16 %v109
  %v485 = vunpack.c.h.b16 %v109
  %v486 = vunpack.c.l.b16 %v110
  %v487 = vunpack.c.h.b16 %v110
  %v488 = vunpack.c.l.b16 %v111
  %v489 = vunpack.c.h.b16 %v111
  %v490 = vunpack.c.l.b16 %v112
  %v491 = vunpack.c.h.b16 %v112
  %v492 = vunpack.c.l.b16 %v113
  %v493 = vunpack.c.h.b16 %v113
  %v494 = vunpack.c.l.b16 %v114
  %v495 = vunpack.c.h.b16 %v114
  %v496 = vunpack.c.l.b16 %v115
  %v497 = vunpack.c.h.b16 %v115
  %v498 = vunpack.c.l.b16 %v116
  %v499 = vunpack.c.h.b16 %v116
  %v500 = vunpack.c.l.b16 %v117
  %v501 = vunpack.c.h.b16 %v117
  %v502 = vunpack.c.l.b16 %v118
  %v503 = vunpack.c.h.b16 %v118
  %v504 = vunpack.c.l.b16 %v119
  %v505 = vunpack.c.h.b16 %v119
  %v506 = vunpack.c.l.b16 %v120
  %v507 = vunpack.c.h.b16 %v120
  %v508 = vunpack.c.l.b16 %v121
  %v509 = vunpack.c.h.b16 %v121
  %v510 = vunpack.c.l.b16 %v122
  %v511 = vunpack.c.h.b16 %v122
  %v512 = vunpack.c.l.b16 %v123
  %v513 = vunpack.c.h.b16 %v123
  %v514 = vunpack.c.l.b16 %v124
  %v515 = vunpack.c.h.b16 %v124
  %v516 = vunpack.c.l.b16 %v125
  %v517 = vunpack.c.h.b16 %v125
  %v518 = vunpack.c.l.b16 %v126
  %v519 = vunpack.c.h.b16 %v126
  %v520 = vunpack.c.l.b16 %v127
  %v521 = vunpack.c.h.b16 %v127
  %v522 = vunpack.c.l.b16 %v128
  %v523 = vunpack.c.h.b16 %v128
  %v524 = vunpack.c.l.b16 %v129
  %v525 = vunpack.c.h.b16 %v129
  %v526 = vunpack.c.l.b16 %v130
  %v527 = vunpack.c.h.b16 %v130
  %v528 = vunpack.c.l.b16 %v131
  %v529 = vunpack.c.h.b16 %v131
  %v530 = vunpack.c.l.b16 %v132
  %v531 = vunpack.c.h.b16 %v132
  %v532 = vunpack.c.l.b16 %v133
  %v533 = vunpack.c.h.b16 %v133
  %v534 = vunpack.c.l.b16 %v134
  %v535 = vunpack.c.h.b16 %v134
  %v536 = vunpack.c.l.b16 %v135
  %v537 = vunpack.c.h.b16 %v135
  %v538 = vunpack.c.l.b16 %v136
  %v539 = vunpack.c.h.b16 %v136
  %v540 = vunpack.c.l.b16 %v137
  %v541 = vunpack.c.h.b16 %v137
  %v542 = vunpack.c.l.b16 %v138
  %v543 = vunpack.c.h.b16 %v138
  %v544 = vunpack.c.l.b16 %v139
  %v545 = vunpack.c.h.b16 %v139
  %v546 = vunpack.c.l.b16 %v140
  %v547 = vunpack.c.h.b16 %v140
  %v548 = vunpack.c.l.b16 %v141
  %v549 = vunpack.c.h.b16 %v141
  %v550 = vunpack.c.l.b16 %v142
  %v551 = vunpack.c.h.b16 %v142
  %v552 = vunpack.c.l.b16 %v143
  %v553 = vunpack.c.h.b16 %v143
  %v554 = vunpack.c.l.b16 %v144
  %v555 = vunpack.c.h.b16 %v144
  %v556 = vunpack.c.l.b16 %v145
  %v557 = vunpack.c.h.b16 %v145
  %v558 = vunpack.c.l.b16 %v146
  %v559 = vunpack.c.h.b16 %v146
  %v560 = vunpack.c.l.b16 %v147
  %v561 = vunpack.c.h.b16 %v147
  %v562 = vunpack.c.l.b16 %v148
  %v563 = vunpack.c.h.b16 %v148
  %v564 = vunpack.c.l.b16 %v149
  %v565 = vunpack.c.h.b16 %v149
  %v566 = vunpack.c.l.b16 %v150
  %v567 = vunpack.c.h.b16 %v150
  %v568 = vunpack.c.l.b16 %v151
  %v569 = vunpack.c.h.b16 %v151
  %v570 = vunpack.c.l.b16 %v152
  %v571 = vunpack.c.h.b16 %v152
  %v572 = vunpack.c.l.b16 %v153
  %v573 = vunpack.c.h.b16 %v153
  %v574 = vunpack.c.l.b16 %v154
  %v575 = vunpack.c.h.b16 %v154
  %v576 = vunpack.c.l.b16 %v155
  %v577 = vunpack.c.h.b16 %v155
  %v578 = vunpack.c.l.b16 %v156
  %v579 = vunpack.c.h.b16 %v156
  %v580 = vunpack.c.l.b16 %v157
  %v581 = vunpack.c.h.b16 %v157
  %v582 = vunpack.c.l.b16 %v158
  %v583 = vunpack.c.h.b16 %v158
  %v584 = vunpack.c.l.b16 %v159
  %v585 = vunpack.c.h.b16 %v159
  %v586 = vunpack.c.l.b16 %v160
  %v587 = vunpack.c.h.b16 %v160
  %v588 = vunpack.c.l.b16 %v161
  %v589 = vunpack.c.h.b16 %v161
  %v590 = vunpack.c.l.b16 %v162
  %v591 = vunpack.c.h.b16 %v162
  %v592 = vunpack.c.l.b16 %v163
  %v593 = vunpack.c.h.b16 %v163
  %v594 = vunpack.c.l.b16 %v164
  %v595 = vunpack.c.h.b16 %v164
  %v596 = vunpack.c.l.b16 %v165
  %v597 = vunpack.c.h.b16 %v165
  %v598 = vpack.c.b16 %v328, %v310
  %v599 = vpack.c.b16 %v329, %v311
  %v600 = vpack.c.b16 %v330, %v312
  %v601 = vpack.c.b16 %v331, %v313
  %v602 = vpack.c.b16 %v332, %v314
  %v603 = vpack.c.b16 %v333, %v315
  %v604 = vpack.c.b16 %v334, %v316
  %v605 = vpack.c.b16 %v335, %v317
  %v606 = vpack.c.b16 %v336, %v318
  %v607 = vpack.c.b16 %v337, %v319
  %v608 = vpack.c.b16 %v338, %v320
  %v609 = vpack.c.b16 %v339, %v321
  %v610 = vpack.c.b16 %v340, %v322
  %v611 = vpack.c.b16 %v341, %v323
  %v612 = vpack.c.b16 %v342, %v324
  %v613 = vpack.c.b16 %v343, %v325
  %v614 = vpack.c.b16 %v344, %v326
  %v615 = vpack.c.b16 %v345, %v327
  %v616 = vpack.c.b16 %v364, %v346
  %v617 = vpack.c.b16 %v365, %v347
  %v618 = vpack.c.b16 %v366, %v348
  %v619 = vpack.c.b16 %v367, %v349
  %v620 = vpack.c.b16 %v368, %v350
  %v621 = vpack.c.b16 %v369, %v351
  %v622 = vpack.c.b16 %v370, %v352
  %v623 = vpack.c.b16 %v371, %v353
  %v624 = vpack.c.b16 %v372, %v354
  %v625 = vpack.c.b16 %v373, %v355
  %v626 = vpack.c.b16 %v374, %v356
  %v627 = vpack.c.b16 %v375, %v357
  %v628 = vpack.c.b16 %v376, %v358
  %v629 = vpack.c.b16 %v377, %v359
  %v630 = vpack.c.b16 %v378, %v360
  %v631 = vpack.c.b16 %v379, %v361
  %v632 = vpack.c.b16 %v380, %v362
  %v633 = vpack.c.b16 %v381, %v363
  %v634 = vpack.c.b16 %v400, %v382
  %v635 = vpack.c.b16 %v401, %v383
  %v636 = vpack.c.b16 %v402, %v384
  %v637 = vpack.c.b16 %v403, %v385
  %v638 = vpack.c.b16 %v404, %v386
  %v639 = vpack.c.b16 %v405, %v387
  %v640 = vpack.c.b16 %v406, %v388
  %v641 = vpack.c.b16 %v407, %v389
  %v642 = vpack.c.b16 %v408, %v390
  %v643 = vpack.c.b16 %v409, %v391
  %v644 = vpack.c.b16 %v410, %v392
  %v645 = vpack.c.b16 %v411, %v393
  %v646 = vpack.c.b16 %v412, %v394
  %v647 = vpack.c.b16 %v413, %v395
  %v648 = vpack.c.b16 %v414, %v396
  %v649 = vpack.c.b16 %v415, %v397
  %v650 = vpack.c.b16 %v416, %v398
  %v651 = vpack.c.b16 %v417, %v399
  %v652 = vpack.c.b16 %v436, %v418
  %v653 = vpack.c.b16 %v437, %v419
  %v654 = vpack.c.b16 %v438, %v420
  %v655 = vpack.c.b16 %v439, %v421
  %v656 = vpack.c.b16 %v440, %v422
  %v657 = vpack.c.b16 %v441, %v423
  %v658 = vpack.c.b16 %v442, %v424
  %v659 = vpack.c.b16 %v443, %v425
  %v660 = vpack.c.b16 %v444, %v426
  %v661 = vpack.c.b16 %v445, %v427
  %v662 = vpack.c.b16 %v446, %v428
  %v663 = vpack.c.b16 %v447, %v429
  %v664 = vpack.c.b16 %v448, %v430
  %v665 = vpack.c.b16 %v449, %v431
  %v666 = vpack.c.b16 %v450, %v432
  %v667 = vpack.c.b16 %v451, %v433
  %v668 = vpack.c.b16 %v452, %v434
  %v669 = vpack.c.b16 %v453, %v435
  %v670 = vpack.c.b16 %v472, %v454
  %v671 = vpack.c.b16 %v473, %v455
  %v672 = vpack.c.b16 %v474, %v456
  %v673 = vpack.c.b16 %v475, %v457
  %v674 = vpack.c.b16 %v476, %v458
  %v675 = vpack.c.b16 %v477, %v459
  %v676 = vpack.c.b16 %v478, %v460
  %v677 = vpack.c.b16 %v479, %v461
  %v678 = vpack.c.b16 %v480, %v462
  %v679 = vpack.c.b16 %v481, %v463
  %v680 = vpack.c.b16 %v482, %v464
  %v681 = vpack.c.b16 %v483, %v465
  %v682 = vpack.c.b16 %v484, %v466
  %v683 = vpack.c.b16 %v485, %v467
  %v684 = vpack.c.b16 %v486, %v468
  %v685 = vpack.c.b16 %v487, %v469
  %v686 = vpack.c.b16 %v488, %v470
  %v687 = vpack.c.b16 %v489, %v471
  %v688 = vpack.c.b16 %v508, %v490
  %v689 = vpack.c.b16 %v509, %v491
  %v690 = vpack.c.b16 %v510, %v492
  %v691 = vpack.c.b16 %v511, %v493
  %v692 = vpack.c.b16 %v512, %v494
  %v693 = vpack.c.b16 %v513, %v495
  %v694 = vpack.c.b16 %v514, %v496
  %v695 = vpack.c.b16 %v515, %v497
  %v696 = vpack.c.b16 %v516, %v498
  %v697 = vpack.c.b16 %v517, %v499
  %v698 = vpack.c.b16 %v518, %v500
  %v699 = vpack.c.b16 %v519, %v501
  %v700 = vpack.c.b16 %v520, %v502
  %v701 = vpack.c.b16 %v521, %v503
  %v702 = vpack.c.b16 %v522, %v504
  %v703 = vpack.c.b16 %v523, %v505
  %v704 = vpack.c.b16 %v524, %v506
  %v705 = vpack.c.b16 %v525, %v507
  %v706 = vpack.c.b16 %v544, %v526
  %v707 = vpack.c.b16 %v545, %v527
  %v708 = vpack.c.b16 %v546, %v528
  %v709 = vpack.c.b16 %v547, %v529
  %v710 = vpack.c.b16 %v548, %v530
  %v711 = vpack.c.b16 %v549, %v531
  %v712 = vpack.c.b16 %v550, %v532
  %v713 = vpack.c.b16 %v551, %v533
  %v714 = vpack.c.b16 %v552, %v534
  %v715 = vpack.c.b16 %v553, %v535
  %v716 = vpack.c.b16 %v554, %v536
  %v717 = vpack.c.b16 %v555, %v537
  %v718 = vpack.c.b16 %v556, %v538
  %v719 = vpack.c.b16 %v557, %v539
  %v720 = vpack.c.b16 %v558, %v540
  %v721 = vpack.c.b16 %v559, %v541
  %v722 = vpack.c.b16 %v560, %v542
  %v723 = vpack.c.b16 %v561, %v543
  %v724 = vpack.c.b16 %v580, %v562
  %v725 = vpack.c.b16 %v581, %v563
  %v726 = vpack.c.b16 %v582, %v564
  %v727 = vpack.c.b16 %v583, %v565
  %v728 = vpack.c.b16 %v584, %v566
  %v729 = vpack.c.b16 %v585, %v567
  %v730 = vpack.c.b16 %v586, %v568
  %v731 = vpack.c.b16 %v587, %v569
  %v732 = vpack.c.b16 %v588, %v570
  %v733 = vpack.c.b16 %v589, %v571
  %v734 = vpack.c.b16 %v590, %v572
  %v735 = vpack.c.b16 %v591, %v573
  %v736 = vpack.c.b16 %v592, %v574
  %v737 = vpack.c.b16 %v593, %v575
  %v738 = vpack.c.b16 %v594, %v576
  %v739 = vpack.c.b16 %v595, %v577
  %v740 = vpack.c.b16 %v596, %v578
  %v741 = vpack.c.b16 %v597, %v579
  %886 = vmatprep.subr.bf16.mxu0 %v599
  %887 = vmatpush1.bf16.msra.mxu0 %v598
  %888 = vmatprep.subr.bf16.mxu0 %v617
  %889 = vmatpush1.bf16.msra.mxu0 %v616
  %890 = vmatprep.subr.bf16.mxu0 %v635
  %891 = vmatpush1.bf16.msra.mxu0 %v634
  %892 = vmatprep.subr.bf16.mxu0 %v653
  %893 = vmatpush1.bf16.msra.mxu0 %v652
  %894 = vmatprep.subr.bf16.mxu0 %v671
  %895 = vmatpush1.bf16.msra.mxu0 %v670
  %896 = vmatprep.subr.bf16.mxu0 %v689
  %897 = vmatpush1.bf16.msra.mxu0 %v688
  %898 = vmatprep.subr.bf16.mxu0 %v707
  %899 = vmatpush1.bf16.msra.mxu0 %v706
  %900 = vmatprep.subr.bf16.mxu0 %v725
  %901 = vmatpush1.bf16.msra.mxu0 %v724
  %902 = vmatprep.subr.bf16.mxu0 0
  %903 = vmatpush1.bf16.msra.mxu0 0
  %904 = vmatprep.subr.bf16.mxu0 0
  %905 = vmatpush1.bf16.msra.mxu0 0
  %906 = vmatprep.subr.bf16.mxu0 0
  %907 = vmatpush1.bf16.msra.mxu0 0
  %908 = vmatprep.subr.bf16.mxu0 0
  %909 = vmatpush1.bf16.msra.mxu0 0
  %910 = vmatprep.subr.bf16.mxu0 0
  %911 = vmatpush1.bf16.msra.mxu0 0
  %912 = vmatprep.subr.bf16.mxu0 0
  %913 = vmatpush1.bf16.msra.mxu0 0
  %914 = vmatprep.subr.bf16.mxu0 0
  %915 = vmatpush1.bf16.msra.mxu0 0
  %916 = vmatprep.subr.bf16.mxu0 0
  %917 = vmatpush1.bf16.msra.mxu0 0
  %918 = vmatprep.mubr.bf16.mxu0 0
  %919 = vmatmul.mubr.bf16.gmra.mrb[0].mxu0 %v21
  %v920 = vpop.f32.mrb[0].mxu0
  %v921 = vadd.f32 0.0, %v920
  %v922 = vpop.f32.mrb[0].mxu0
  %v923 = vadd.f32 0.0, %v922
  %v924 = vpop.f32.mrb[0].mxu0
  %v925 = vpop.f32.mrb[0].mxu0
  %926 = vdwg.mxu0
  %927 = vmatprep.subr.bf16.mxu0 %v601
  %928 = vmatpush1.bf16.msra.mxu0 %v600
  %929 = vmatprep.subr.bf16.mxu0 %v619
  %930 = vmatpush1.bf16.msra.mxu0 %v618
  %931 = vmatprep.subr.bf16.mxu0 %v637
  %932 = vmatpush1.bf16.msra.mxu0 %v636
  %933 = vmatprep.subr.bf16.mxu0 %v655
  %934 = vmatpush1.bf16.msra.mxu0 %v654
  %935 = vmatprep.subr.bf16.mxu0 %v673
  %936 = vmatpush1.bf16.msra.mxu0 %v672
  %937 = vmatprep.subr.bf16.mxu0 %v691
  %938 = vmatpush1.bf16.msra.mxu0 %v690
  %939 = vmatprep.subr.bf16.mxu0 %v709
  %940 = vmatpush1.bf16.msra.mxu0 %v708
  %941 = vmatprep.subr.bf16.mxu0 %v727
  %942 = vmatpush1.bf16.msra.mxu0 %v726
  %943 = vmatprep.subr.bf16.mxu0 0
  %944 = vmatpush1.bf16.msra.mxu0 0
  %945 = vmatprep.subr.bf16.mxu0 0
  %946 = vmatpush1.bf16.msra.mxu0 0
  %947 = vmatprep.subr.bf16.mxu0 0
  %948 = vmatpush1.bf16.msra.mxu0 0
  %949 = vmatprep.subr.bf16.mxu0 0
  %950 = vmatpush1.bf16.msra.mxu0 0
  %951 = vmatprep.subr.bf16.mxu0 0
  %952 = vmatpush1.bf16.msra.mxu0 0
  %953 = vmatprep.subr.bf16.mxu0 0
  %954 = vmatpush1.bf16.msra.mxu0 0
  %955 = vmatprep.subr.bf16.mxu0 0
  %956 = vmatpush1.bf16.msra.mxu0 0
  %957 = vmatprep.subr.bf16.mxu0 0
  %958 = vmatpush1.bf16.msra.mxu0 0
  %959 = vmatprep.mubr.bf16.mxu0 0
  %960 = vmatmul.mubr.bf16.gmra.mrb[0].mxu0 %v21
  %v961 = vpop.f32.mrb[0].mxu0
  %v962 = vadd.f32 0.0, %v961
  %v963 = vpop.f32.mrb[0].mxu0
  %v964 = vadd.f32 0.0, %v963
  %v965 = vpop.f32.mrb[0].mxu0
  %v966 = vpop.f32.mrb[0].mxu0
  %967 = vdwg.mxu0
  %968 = vmatprep.subr.bf16.mxu0 %v603
  %969 = vmatpush1.bf16.msra.mxu0 %v602
  %970 = vmatprep.subr.bf16.mxu0 %v621
  %971 = vmatpush1.bf16.msra.mxu0 %v620
  %972 = vmatprep.subr.bf16.mxu0 %v639
  %973 = vmatpush1.bf16.msra.mxu0 %v638
  %974 = vmatprep.subr.bf16.mxu0 %v657
  %975 = vmatpush1.bf16.msra.mxu0 %v656
  %976 = vmatprep.subr.bf16.mxu0 %v675
  %977 = vmatpush1.bf16.msra.mxu0 %v674
  %978 = vmatprep.subr.bf16.mxu0 %v693
  %979 = vmatpush1.bf16.msra.mxu0 %v692
  %980 = vmatprep.subr.bf16.mxu0 %v711
  %981 = vmatpush1.bf16.msra.mxu0 %v710
  %982 = vmatprep.subr.bf16.mxu0 %v729
  %983 = vmatpush1.bf16.msra.mxu0 %v728
  %984 = vmatprep.subr.bf16.mxu0 0
  %985 = vmatpush1.bf16.msra.mxu0 0
  %986 = vmatprep.subr.bf16.mxu0 0
  %987 = vmatpush1.bf16.msra.mxu0 0
  %988 = vmatprep.subr.bf16.mxu0 0
  %989 = vmatpush1.bf16.msra.mxu0 0
  %990 = vmatprep.subr.bf16.mxu0 0
  %991 = vmatpush1.bf16.msra.mxu0 0
  %992 = vmatprep.subr.bf16.mxu0 0
  %993 = vmatpush1.bf16.msra.mxu0 0
  %994 = vmatprep.subr.bf16.mxu0 0
  %995 = vmatpush1.bf16.msra.mxu0 0
  %996 = vmatprep.subr.bf16.mxu0 0
  %997 = vmatpush1.bf16.msra.mxu0 0
  %998 = vmatprep.subr.bf16.mxu0 0
  %999 = vmatpush1.bf16.msra.mxu0 0
  %1000 = vmatprep.mubr.bf16.mxu0 0
  %1001 = vmatmul.mubr.bf16.gmra.mrb[0].mxu0 %v21
  %v1002 = vpop.f32.mrb[0].mxu0
  %v1003 = vadd.f32 0.0, %v1002
  %v1004 = vpop.f32.mrb[0].mxu0
  %v1005 = vadd.f32 0.0, %v1004
  %v1006 = vpop.f32.mrb[0].mxu0
  %v1007 = vpop.f32.mrb[0].mxu0
  %1008 = vdwg.mxu0
  %1009 = vmatprep.subr.bf16.mxu0 %v605
  %1010 = vmatpush1.bf16.msra.mxu0 %v604
  %1011 = vmatprep.subr.bf16.mxu0 %v623
  %1012 = vmatpush1.bf16.msra.mxu0 %v622
  %1013 = vmatprep.subr.bf16.mxu0 %v641
  %1014 = vmatpush1.bf16.msra.mxu0 %v640
  %1015 = vmatprep.subr.bf16.mxu0 %v659
  %1016 = vmatpush1.bf16.msra.mxu0 %v658
  %1017 = vmatprep.subr.bf16.mxu0 %v677
  %1018 = vmatpush1.bf16.msra.mxu0 %v676
  %1019 = vmatprep.subr.bf16.mxu0 %v695
  %1020 = vmatpush1.bf16.msra.mxu0 %v694
  %1021 = vmatprep.subr.bf16.mxu0 %v713
  %1022 = vmatpush1.bf16.msra.mxu0 %v712
  %1023 = vmatprep.subr.bf16.mxu0 %v731
  %1024 = vmatpush1.bf16.msra.mxu0 %v730
  %1025 = vmatprep.subr.bf16.mxu0 0
  %1026 = vmatpush1.bf16.msra.mxu0 0
  %1027 = vmatprep.subr.bf16.mxu0 0
  %1028 = vmatpush1.bf16.msra.mxu0 0
  %1029 = vmatprep.subr.bf16.mxu0 0
  %1030 = vmatpush1.bf16.msra.mxu0 0
  %1031 = vmatprep.subr.bf16.mxu0 0
  %1032 = vmatpush1.bf16.msra.mxu0 0
  %1033 = vmatprep.subr.bf16.mxu0 0
  %1034 = vmatpush1.bf16.msra.mxu0 0
  %1035 = vmatprep.subr.bf16.mxu0 0
  %1036 = vmatpush1.bf16.msra.mxu0 0
  %1037 = vmatprep.subr.bf16.mxu0 0
  %1038 = vmatpush1.bf16.msra.mxu0 0
  %1039 = vmatprep.subr.bf16.mxu0 0
  %1040 = vmatpush1.bf16.msra.mxu0 0
  %1041 = vmatprep.mubr.bf16.mxu0 0
  %1042 = vmatmul.mubr.bf16.gmra.mrb[0].mxu0 %v21
  %v1043 = vpop.f32.mrb[0].mxu0
  %v1044 = vadd.f32 0.0, %v1043
  %v1045 = vpop.f32.mrb[0].mxu0
  %v1046 = vadd.f32 0.0, %v1045
  %v1047 = vpop.f32.mrb[0].mxu0
  %v1048 = vpop.f32.mrb[0].mxu0
  %1049 = vdwg.mxu0
  %1050 = vmatprep.subr.bf16.mxu0 %v607
  %1051 = vmatpush1.bf16.msra.mxu0 %v606
  %1052 = vmatprep.subr.bf16.mxu0 %v625
  %1053 = vmatpush1.bf16.msra.mxu0 %v624
  %1054 = vmatprep.subr.bf16.mxu0 %v643
  %1055 = vmatpush1.bf16.msra.mxu0 %v642
  %1056 = vmatprep.subr.bf16.mxu0 %v661
  %1057 = vmatpush1.bf16.msra.mxu0 %v660
  %1058 = vmatprep.subr.bf16.mxu0 %v679
  %1059 = vmatpush1.bf16.msra.mxu0 %v678
  %1060 = vmatprep.subr.bf16.mxu0 %v697
  %1061 = vmatpush1.bf16.msra.mxu0 %v696
  %1062 = vmatprep.subr.bf16.mxu0 %v715
  %1063 = vmatpush1.bf16.msra.mxu0 %v714
  %1064 = vmatprep.subr.bf16.mxu0 %v733
  %1065 = vmatpush1.bf16.msra.mxu0 %v732
  %1066 = vmatprep.subr.bf16.mxu0 0
  %1067 = vmatpush1.bf16.msra.mxu0 0
  %1068 = vmatprep.subr.bf16.mxu0 0
  %1069 = vmatpush1.bf16.msra.mxu0 0
  %1070 = vmatprep.subr.bf16.mxu0 0
  %1071 = vmatpush1.bf16.msra.mxu0 0
  %1072 = vmatprep.subr.bf16.mxu0 0
  %1073 = vmatpush1.bf16.msra.mxu0 0
  %1074 = vmatprep.subr.bf16.mxu0 0
  %1075 = vmatpush1.bf16.msra.mxu0 0
  %1076 = vmatprep.subr.bf16.mxu0 0
  %1077 = vmatpush1.bf16.msra.mxu0 0
  %1078 = vmatprep.subr.bf16.mxu0 0
  %1079 = vmatpush1.bf16.msra.mxu0 0
  %1080 = vmatprep.subr.bf16.mxu0 0
  %1081 = vmatpush1.bf16.msra.mxu0 0
  %1082 = vmatprep.mubr.bf16.mxu0 0
  %1083 = vmatmul.mubr.bf16.gmra.mrb[0].mxu0 %v21
  %v1084 = vpop.f32.mrb[0].mxu0
  %v1085 = vadd.f32 0.0, %v1084
  %v1086 = vpop.f32.mrb[0].mxu0
  %v1087 = vadd.f32 0.0, %v1086
  %v1088 = vpop.f32.mrb[0].mxu0
  %v1089 = vpop.f32.mrb[0].mxu0
  %1090 = vdwg.mxu0
  %1091 = vmatprep.subr.bf16.mxu0 %v609
  %1092 = vmatpush1.bf16.msra.mxu0 %v608
  %1093 = vmatprep.subr.bf16.mxu0 %v627
  %1094 = vmatpush1.bf16.msra.mxu0 %v626
  %1095 = vmatprep.subr.bf16.mxu0 %v645
  %1096 = vmatpush1.bf16.msra.mxu0 %v644
  %1097 = vmatprep.subr.bf16.mxu0 %v663
  %1098 = vmatpush1.bf16.msra.mxu0 %v662
  %1099 = vmatprep.subr.bf16.mxu0 %v681
  %1100 = vmatpush1.bf16.msra.mxu0 %v680
  %1101 = vmatprep.subr.bf16.mxu0 %v699
  %1102 = vmatpush1.bf16.msra.mxu0 %v698
  %1103 = vmatprep.subr.bf16.mxu0 %v717
  %1104 = vmatpush1.bf16.msra.mxu0 %v716
  %1105 = vmatprep.subr.bf16.mxu0 %v735
  %1106 = vmatpush1.bf16.msra.mxu0 %v734
  %1107 = vmatprep.subr.bf16.mxu0 0
  %1108 = vmatpush1.bf16.msra.mxu0 0
  %1109 = vmatprep.subr.bf16.mxu0 0
  %1110 = vmatpush1.bf16.msra.mxu0 0
  %1111 = vmatprep.subr.bf16.mxu0 0
  %1112 = vmatpush1.bf16.msra.mxu0 0
  %1113 = vmatprep.subr.bf16.mxu0 0
  %1114 = vmatpush1.bf16.msra.mxu0 0
  %1115 = vmatprep.subr.bf16.mxu0 0
  %1116 = vmatpush1.bf16.msra.mxu0 0
  %1117 = vmatprep.subr.bf16.mxu0 0
  %1118 = vmatpush1.bf16.msra.mxu0 0
  %1119 = vmatprep.subr.bf16.mxu0 0
  %1120 = vmatpush1.bf16.msra.mxu0 0
  %1121 = vmatprep.subr.bf16.mxu0 0
  %1122 = vmatpush1.bf16.msra.mxu0 0
  %1123 = vmatprep.mubr.bf16.mxu0 0
  %1124 = vmatmul.mubr.bf16.gmra.mrb[0].mxu0 %v21
  %v1125 = vpop.f32.mrb[0].mxu0
  %v1126 = vadd.f32 0.0, %v1125
  %v1127 = vpop.f32.mrb[0].mxu0
  %v1128 = vadd.f32 0.0, %v1127
  %v1129 = vpop.f32.mrb[0].mxu0
  %v1130 = vpop.f32.mrb[0].mxu0
  %1131 = vdwg.mxu0
  %1132 = vmatprep.subr.bf16.mxu0 %v611
  %1133 = vmatpush1.bf16.msra.mxu0 %v610
  %1134 = vmatprep.subr.bf16.mxu0 %v629
  %1135 = vmatpush1.bf16.msra.mxu0 %v628
  %1136 = vmatprep.subr.bf16.mxu0 %v647
  %1137 = vmatpush1.bf16.msra.mxu0 %v646
  %1138 = vmatprep.subr.bf16.mxu0 %v665
  %1139 = vmatpush1.bf16.msra.mxu0 %v664
  %1140 = vmatprep.subr.bf16.mxu0 %v683
  %1141 = vmatpush1.bf16.msra.mxu0 %v682
  %1142 = vmatprep.subr.bf16.mxu0 %v701
  %1143 = vmatpush1.bf16.msra.mxu0 %v700
  %1144 = vmatprep.subr.bf16.mxu0 %v719
  %1145 = vmatpush1.bf16.msra.mxu0 %v718
  %1146 = vmatprep.subr.bf16.mxu0 %v737
  %1147 = vmatpush1.bf16.msra.mxu0 %v736
  %1148 = vmatprep.subr.bf16.mxu0 0
  %1149 = vmatpush1.bf16.msra.mxu0 0
  %1150 = vmatprep.subr.bf16.mxu0 0
  %1151 = vmatpush1.bf16.msra.mxu0 0
  %1152 = vmatprep.subr.bf16.mxu0 0
  %1153 = vmatpush1.bf16.msra.mxu0 0
  %1154 = vmatprep.subr.bf16.mxu0 0
  %1155 = vmatpush1.bf16.msra.mxu0 0
  %1156 = vmatprep.subr.bf16.mxu0 0
  %1157 = vmatpush1.bf16.msra.mxu0 0
  %1158 = vmatprep.subr.bf16.mxu0 0
  %1159 = vmatpush1.bf16.msra.mxu0 0
  %1160 = vmatprep.subr.bf16.mxu0 0
  %1161 = vmatpush1.bf16.msra.mxu0 0
  %1162 = vmatprep.subr.bf16.mxu0 0
  %1163 = vmatpush1.bf16.msra.mxu0 0
  %1164 = vmatprep.mubr.bf16.mxu0 0
  %1165 = vmatmul.mubr.bf16.gmra.mrb[0].mxu0 %v21
  %v1166 = vpop.f32.mrb[0].mxu0
  %v1167 = vadd.f32 0.0, %v1166
  %v1168 = vpop.f32.mrb[0].mxu0
  %v1169 = vadd.f32 0.0, %v1168
  %v1170 = vpop.f32.mrb[0].mxu0
  %v1171 = vpop.f32.mrb[0].mxu0
  %1172 = vdwg.mxu0
  %1173 = vmatprep.subr.bf16.mxu0 %v613
  %1174 = vmatpush1.bf16.msra.mxu0 %v612
  %1175 = vmatprep.subr.bf16.mxu0 %v631
  %1176 = vmatpush1.bf16.msra.mxu0 %v630
  %1177 = vmatprep.subr.bf16.mxu0 %v649
  %1178 = vmatpush1.bf16.msra.mxu0 %v648
  %1179 = vmatprep.subr.bf16.mxu0 %v667
  %1180 = vmatpush1.bf16.msra.mxu0 %v666
  %1181 = vmatprep.subr.bf16.mxu0 %v685
  %1182 = vmatpush1.bf16.msra.mxu0 %v684
  %1183 = vmatprep.subr.bf16.mxu0 %v703
  %1184 = vmatpush1.bf16.msra.mxu0 %v702
  %1185 = vmatprep.subr.bf16.mxu0 %v721
  %1186 = vmatpush1.bf16.msra.mxu0 %v720
  %1187 = vmatprep.subr.bf16.mxu0 %v739
  %1188 = vmatpush1.bf16.msra.mxu0 %v738
  %1189 = vmatprep.subr.bf16.mxu0 0
  %1190 = vmatpush1.bf16.msra.mxu0 0
  %1191 = vmatprep.subr.bf16.mxu0 0
  %1192 = vmatpush1.bf16.msra.mxu0 0
  %1193 = vmatprep.subr.bf16.mxu0 0
  %1194 = vmatpush1.bf16.msra.mxu0 0
  %1195 = vmatprep.subr.bf16.mxu0 0
  %1196 = vmatpush1.bf16.msra.mxu0 0
  %1197 = vmatprep.subr.bf16.mxu0 0
  %1198 = vmatpush1.bf16.msra.mxu0 0
  %1199 = vmatprep.subr.bf16.mxu0 0
  %1200 = vmatpush1.bf16.msra.mxu0 0
  %1201 = vmatprep.subr.bf16.mxu0 0
  %1202 = vmatpush1.bf16.msra.mxu0 0
  %1203 = vmatprep.subr.bf16.mxu0 0
  %1204 = vmatpush1.bf16.msra.mxu0 0
  %1205 = vmatprep.mubr.bf16.mxu0 0
  %1206 = vmatmul.mubr.bf16.gmra.mrb[0].mxu0 %v21
  %v1207 = vpop.f32.mrb[0].mxu0
  %v1208 = vadd.f32 0.0, %v1207
  %v1209 = vpop.f32.mrb[0].mxu0
  %v1210 = vadd.f32 0.0, %v1209
  %v1211 = vpop.f32.mrb[0].mxu0
  %v1212 = vpop.f32.mrb[0].mxu0
  %1213 = vdwg.mxu0
  %1214 = vmatprep.subr.bf16.mxu0 %v615
  %1215 = vmatpush1.bf16.msra.mxu0 %v614
  %1216 = vmatprep.subr.bf16.mxu0 %v633
  %1217 = vmatpush1.bf16.msra.mxu0 %v632
  %1218 = vmatprep.subr.bf16.mxu0 %v651
  %1219 = vmatpush1.bf16.msra.mxu0 %v650
  %1220 = vmatprep.subr.bf16.mxu0 %v669
  %1221 = vmatpush1.bf16.msra.mxu0 %v668
  %1222 = vmatprep.subr.bf16.mxu0 %v687
  %1223 = vmatpush1.bf16.msra.mxu0 %v686
  %1224 = vmatprep.subr.bf16.mxu0 %v705
  %1225 = vmatpush1.bf16.msra.mxu0 %v704
  %1226 = vmatprep.subr.bf16.mxu0 %v723
  %1227 = vmatpush1.bf16.msra.mxu0 %v722
  %1228 = vmatprep.subr.bf16.mxu0 %v741
  %1229 = vmatpush1.bf16.msra.mxu0 %v740
  %1230 = vmatprep.subr.bf16.mxu0 0
  %1231 = vmatpush1.bf16.msra.mxu0 0
  %1232 = vmatprep.subr.bf16.mxu0 0
  %1233 = vmatpush1.bf16.msra.mxu0 0
  %1234 = vmatprep.subr.bf16.mxu0 0
  %1235 = vmatpush1.bf16.msra.mxu0 0
  %1236 = vmatprep.subr.bf16.mxu0 0
  %1237 = vmatpush1.bf16.msra.mxu0 0
  %1238 = vmatprep.subr.bf16.mxu0 0
  %1239 = vmatpush1.bf16.msra.mxu0 0
  %1240 = vmatprep.subr.bf16.mxu0 0
  %1241 = vmatpush1.bf16.msra.mxu0 0
  %1242 = vmatprep.subr.bf16.mxu0 0
  %1243 = vmatpush1.bf16.msra.mxu0 0
  %1244 = vmatprep.subr.bf16.mxu0 0
  %1245 = vmatpush1.bf16.msra.mxu0 0
  %1246 = vmatprep.mubr.bf16.mxu0 0
  %1247 = vmatmul.mubr.bf16.gmra.mrb[0].mxu0 %v21
  %v1248 = vpop.f32.mrb[0].mxu0
  %v1249 = vadd.f32 0.0, %v1248
  %v1250 = vpop.f32.mrb[0].mxu0
  %v1251 = vadd.f32 0.0, %v1250
  %v1252 = vpop.f32.mrb[0].mxu0
  %v1253 = vpop.f32.mrb[0].mxu0
  %1254 = vdwg.mxu0
  %1255 = vst [vmem:[#allocation2] sm:$0x3] %v921
  %1256 = vst [vmem:[#allocation2 + $0x8] sm:$0x3] %v923
  %v1259 = vrot.slane %v962, 6
  %v1260 = vrot.slane %v964, 6
  %1263 = vst [vmem:[#allocation2] sm:$0xc] %v1259
  %1264 = vst [vmem:[#allocation2 + $0x8] sm:$0xc] %v1260
  %v1267 = vrot.slane %v1003, 4
  %v1268 = vrot.slane %v1005, 4
  %1271 = vst [vmem:[#allocation2] sm:$0x30] %v1267
  %1272 = vst [vmem:[#allocation2 + $0x8] sm:$0x30] %v1268
  %v1275 = vrot.slane %v1044, 2
  %v1276 = vrot.slane %v1046, 2
  %1279 = vst [vmem:[#allocation2] sm:$0xc0] %v1275
  %1280 = vst [vmem:[#allocation2 + $0x8] sm:$0xc0] %v1276
  %1281 = vst [vmem:[#allocation2 + $0x10] sm:$0x3] %v1085
  %1282 = vst [vmem:[#allocation2 + $0x18] sm:$0x3] %v1087
  %v1285 = vrot.slane %v1126, 6
  %v1286 = vrot.slane %v1128, 6
  %1289 = vst [vmem:[#allocation2 + $0x10] sm:$0xc] %v1285
  %1290 = vst [vmem:[#allocation2 + $0x18] sm:$0xc] %v1286
  %v1293 = vrot.slane %v1167, 4
  %v1294 = vrot.slane %v1169, 4
  %1297 = vst [vmem:[#allocation2 + $0x10] sm:$0x30] %v1293
  %1298 = vst [vmem:[#allocation2 + $0x18] sm:$0x30] %v1294
  %v1301 = vrot.slane %v1208, 2
  %v1302 = vrot.slane %v1210, 2
  %1305 = vst [vmem:[#allocation2 + $0x10] sm:$0xc0] %v1301
  %1306 = vst [vmem:[#allocation2 + $0x18] sm:$0xc0] %v1302
  %1307 = vst [vmem:[#allocation2 + $0x20] sm:$0x3] %v1249
  %1308 = vst [vmem:[#allocation2 + $0x28] sm:$0x3] %v1251
  %1309 = vst [vmem:[#allocation2 + $0x20] sm:$0xfc] 0.0
  %1310 = vst [vmem:[#allocation2 + $0x28] sm:$0xfc] 0.0
  %v1311 = vld [vmem:[#allocation2] sm:$0xff]
  %v1312 = vld [vmem:[#allocation2 + $0x8] sm:$0xff]
  %v1313 = vld [vmem:[#allocation2 + $0x10] sm:$0xff]
  %v1314 = vld [vmem:[#allocation2 + $0x18] sm:$0xff]
  %v1315 = vld [vmem:[#allocation2 + $0x20] sm:$0xff]
  %v1316 = vld [vmem:[#allocation2 + $0x28] sm:$0xff]
  %v1317 = vlaneseq
  %v1318 = vshrl.u32 %v1317, 7
  %v1319 = vsub.s32 0, %v1318
  %v1320 = vrot.slane %v18, %v1319
  %v1321 = vlaneseq
  %v1322 = vshrl.u32 %v1321, 7
  %v1323 = vsub.s32 0, %v1322
  %v1324 = vrot.slane %v19, %v1323
  %v1325 = vadd.f32 %v1311, %v1320
  %v1326 = vadd.f32 %v1312, %v1324
  %v1327 = vadd.f32 %v1313, %v1320
  %v1328 = vadd.f32 %v1314, %v1324
  %v1329 = vadd.f32 %v1315, %v1320
  %v1330 = vadd.f32 %v1316, %v1324
  %v1331 = vmax.f32 %v1325, 0.0
  %v1332 = vmax.f32 %v1326, 0.0
  %v1333 = vmax.f32 %v1327, 0.0
  %v1334 = vmax.f32 %v1328, 0.0
  %v1335 = vmax.f32 %v1329, 0.0
  %v1336 = vmax.f32 %v1330, 0.0
  %v1337 = vadd.f32 %v1331, %v1333
  %vm1338 = vcmask 1041408
  %v1339 = vsel %vm1338, %v1335, 0.0
  %v1340 = vadd.f32 %v1337, %v1339
  %v1341 = vrot.slane %v1340, 4
  %v1342 = vadd.f32 %v1340, %v1341
  %v1343 = vrot.slane %v1342, 2
  %v1344 = vadd.f32 %v1342, %v1343
  %v1345 = vrot.slane %v1344, 1
  %v1346 = vadd.f32 %v1344, %v1345
  %v1347 = vadd.f32 %v1332, %v1334
  %v1348 = vsel %vm1338, %v1336, 0.0
  %v1349 = vadd.f32 %v1347, %v1348
  %v1350 = vrot.slane %v1349, 4
  %v1351 = vadd.f32 %v1349, %v1350
  %v1352 = vrot.slane %v1351, 2
  %v1353 = vadd.f32 %v1351, %v1352
  %v1354 = vrot.slane %v1353, 1
  %v1355 = vadd.f32 %v1353, %v1354
  %v1356 = vmul.f32 %v1346, 0.055555556
  %v1357 = vmul.f32 %v1355, 0.055555556
  %v1358 = vmul.f32 %v1331, %v1331
  %v1359 = vmul.f32 %v1332, %v1332
  %v1360 = vmul.f32 %v1333, %v1333
  %v1361 = vmul.f32 %v1334, %v1334
  %v1362 = vmul.f32 %v1335, %v1335
  %v1363 = vmul.f32 %v1336, %v1336
  %v1364 = vadd.f32 %v1358, %v1360
  %v1365 = vsel %vm1338, %v1362, 0.0
  %v1366 = vadd.f32 %v1364, %v1365
  %v1367 = vrot.slane %v1366, 4
  %v1368 = vadd.f32 %v1366, %v1367
  %v1369 = vrot.slane %v1368, 2
  %v1370 = vadd.f32 %v1368, %v1369
  %v1371 = vrot.slane %v1370, 1
  %v1372 = vadd.f32 %v1370, %v1371
  %v1373 = vadd.f32 %v1359, %v1361
  %v1374 = vsel %vm1338, %v1363, 0.0
  %v1375 = vadd.f32 %v1373, %v1374
  %v1376 = vrot.slane %v1375, 4
  %v1377 = vadd.f32 %v1375, %v1376
  %v1378 = vrot.slane %v1377, 2
  %v1379 = vadd.f32 %v1377, %v1378
  %v1380 = vrot.slane %v1379, 1
  %v1381 = vadd.f32 %v1379, %v1380
  %v1382 = vmul.f32 %v1372, 0.055555556
  %v1383 = vmul.f32 %v1381, 0.055555556
  %v1384 = vmul.f32 %v1356, %v1356
  %v1385 = vmul.f32 %v1357, %v1357
  %v1386 = vsub.f32 %v1382, %v1384
  %v1387 = vsub.f32 %v1383, %v1385
  %v1388 = vadd.f32 %v1386, 1e-05
  %v1389 = vadd.f32 %v1387, 1e-05
  %v1390 = vrsqrt.pop %v1388
  %v1391 = vrsqrt.pop %v1389
  %v1392 = vmul.f32 %v18, %v1390
  %v1393 = vmul.f32 %v19, %v1391
  %v1394 = vmul.f32 %v1356, %v1392
  %v1395 = vmul.f32 %v1357, %v1393
  %v1398 = vrot.slane %v1394, 7
  %v1399 = vrot.slane %v1395, 7
  %v1402 = vsub.f32 %v18, %v1398
  %v1403 = vsub.f32 %v19, %v1399
  %v1404 = vlaneseq
  %v1405 = vshrl.u32 %v1404, 7
  %v1406 = vsub.s32 1, %v1405
  %v1407 = vrot.slane %v1392, %v1406
  %v1408 = vlaneseq
  %v1409 = vshrl.u32 %v1408, 7
  %v1410 = vsub.s32 1, %v1409
  %v1411 = vrot.slane %v1393, %v1410
  %v1412 = vmul.f32 %v1331, %v1407
  %v1413 = vmul.f32 %v1332, %v1411
  %v1414 = vmul.f32 %v1333, %v1407
  %v1415 = vmul.f32 %v1334, %v1411
  %v1416 = vmul.f32 %v1335, %v1407
  %v1417 = vmul.f32 %v1336, %v1411
  %v1418 = vlaneseq
  %v1419 = vshrl.u32 %v1418, 7
  %v1420 = vsub.s32 2, %v1419
  %v1421 = vrot.slane %v1402, %v1420
  %v1422 = vlaneseq
  %v1423 = vshrl.u32 %v1422, 7
  %v1424 = vsub.s32 2, %v1423
  %v1425 = vrot.slane %v1403, %v1424
  %v1426 = vadd.f32 %v1412, %v1421
  %v1427 = vadd.f32 %v1413, %v1425
  %v1428 = vadd.f32 %v1414, %v1421
  %v1429 = vadd.f32 %v1415, %v1425
  %v1430 = vadd.f32 %v1416, %v1421
  %v1431 = vadd.f32 %v1417, %v1425
  %v1432 = vpack.c.bf16 %v1428, %v1426
  %v1433 = vpack.c.bf16 %v1429, %v1427
  %v1434 = vpack.c.bf16 %v1430, %v1430
  %v1435 = vpack.c.bf16 %v1431, %v1431
  %v1436 = vld [vmem:[%s2] sm:$0xff]
  %v1437 = vld [vmem:[%s2 + $0x8] sm:$0xff]
  %v1438 = vld [vmem:[%s2 + $0x10] sm:$0xff]
  %v1439 = vld [vmem:[%s2 + $0x18] sm:$0xff]
  %v1440 = vld [vmem:[%s2 + $0x20] sm:$0xf]
  %v1441 = vld [vmem:[%s2 + $0x24] sm:$0xff]
  %v1442 = vld [vmem:[%s2 + $0x2c] sm:$0xff]
  %v1443 = vld [vmem:[%s2 + $0x34] sm:$0xff]
  %v1444 = vld [vmem:[%s2 + $0x3c] sm:$0xff]
  %v1445 = vld [vmem:[%s2 + $0x44] sm:$0xf]
  %v1446 = vld [vmem:[%s2 + $0x48] sm:$0xff]
  %v1447 = vld [vmem:[%s2 + $0x50] sm:$0xff]
  %v1448 = vld [vmem:[%s2 + $0x58] sm:$0xff]
  %v1449 = vld [vmem:[%s2 + $0x60] sm:$0xff]
  %v1450 = vld [vmem:[%s2 + $0x68] sm:$0xf]
  %v1451 = vld [vmem:[%s2 + $0x6c] sm:$0xff]
  %v1452 = vld [vmem:[%s2 + $0x74] sm:$0xff]
  %v1453 = vld [vmem:[%s2 + $0x7c] sm:$0xff]
  %v1454 = vld [vmem:[%s2 + $0x84] sm:$0xff]
  %v1455 = vld [vmem:[%s2 + $0x8c] sm:$0xf]
  %v1456 = vld [vmem:[%s2 + $0x90] sm:$0xff]
  %v1457 = vld [vmem:[%s2 + $0x98] sm:$0xff]
  %v1458 = vld [vmem:[%s2 + $0xa0] sm:$0xff]
  %v1459 = vld [vmem:[%s2 + $0xa8] sm:$0xff]
  %v1460 = vld [vmem:[%s2 + $0xb0] sm:$0xf]
  %v1461 = vld [vmem:[%s2 + $0xb4] sm:$0xff]
  %v1462 = vld [vmem:[%s2 + $0xbc] sm:$0xff]
  %v1463 = vld [vmem:[%s2 + $0xc4] sm:$0xff]
  %v1464 = vld [vmem:[%s2 + $0xcc] sm:$0xff]
  %v1465 = vld [vmem:[%s2 + $0xd4] sm:$0xf]
  %v1466 = vld [vmem:[%s2 + $0xd8] sm:$0xff]
  %v1467 = vld [vmem:[%s2 + $0xe0] sm:$0xff]
  %v1468 = vld [vmem:[%s2 + $0xe8] sm:$0xff]
  %v1469 = vld [vmem:[%s2 + $0xf0] sm:$0xff]
  %v1470 = vld [vmem:[%s2 + $0xf8] sm:$0xf]
  %v1471 = vld [vmem:[%s2 + $0xfc] sm:$0xff]
  %v1472 = vld [vmem:[%s2 + $0x104] sm:$0xff]
  %v1473 = vld [vmem:[%s2 + $0x10c] sm:$0xff]
  %v1474 = vld [vmem:[%s2 + $0x114] sm:$0xff]
  %v1475 = vld [vmem:[%s2 + $0x11c] sm:$0xf]
  %v1476 = vld [vmem:[%s2 + $0x120] sm:$0xff]
  %v1477 = vld [vmem:[%s2 + $0x128] sm:$0xff]
  %v1478 = vld [vmem:[%s2 + $0x130] sm:$0xff]
  %v1479 = vld [vmem:[%s2 + $0x138] sm:$0xff]
  %v1480 = vld [vmem:[%s2 + $0x140] sm:$0xf]
  %v1481 = vld [vmem:[%s2 + $0x144] sm:$0xff]
  %v1482 = vld [vmem:[%s2 + $0x14c] sm:$0xff]
  %v1483 = vld [vmem:[%s2 + $0x154] sm:$0xff]
  %v1484 = vld [vmem:[%s2 + $0x15c] sm:$0xff]
  %v1485 = vld [vmem:[%s2 + $0x164] sm:$0xf]
  %v1486 = vld [vmem:[%s2 + $0x168] sm:$0xff]
  %v1487 = vld [vmem:[%s2 + $0x170] sm:$0xff]
  %v1488 = vld [vmem:[%s2 + $0x178] sm:$0xff]
  %v1489 = vld [vmem:[%s2 + $0x180] sm:$0xff]
  %v1490 = vld [vmem:[%s2 + $0x188] sm:$0xf]
  %v1491 = vld [vmem:[%s2 + $0x18c] sm:$0xff]
  %v1492 = vld [vmem:[%s2 + $0x194] sm:$0xff]
  %v1493 = vld [vmem:[%s2 + $0x19c] sm:$0xff]
  %v1494 = vld [vmem:[%s2 + $0x1a4] sm:$0xff]
  %v1495 = vld [vmem:[%s2 + $0x1ac] sm:$0xf]
  %v1496 = vld [vmem:[%s2 + $0x1b0] sm:$0xff]
  %v1497 = vld [vmem:[%s2 + $0x1b8] sm:$0xff]
  %v1498 = vld [vmem:[%s2 + $0x1c0] sm:$0xff]
  %v1499 = vld [vmem:[%s2 + $0x1c8] sm:$0xff]
  %v1500 = vld [vmem:[%s2 + $0x1d0] sm:$0xf]
  %v1501 = vld [vmem:[%s2 + $0x1d4] sm:$0xff]
  %v1502 = vld [vmem:[%s2 + $0x1dc] sm:$0xff]
  %v1503 = vld [vmem:[%s2 + $0x1e4] sm:$0xff]
  %v1504 = vld [vmem:[%s2 + $0x1ec] sm:$0xff]
  %v1505 = vld [vmem:[%s2 + $0x1f4] sm:$0xf]
  %v1506 = vld [vmem:[%s2 + $0x1f8] sm:$0xff]
  %v1507 = vld [vmem:[%s2 + $0x200] sm:$0xff]
  %v1508 = vld [vmem:[%s2 + $0x208] sm:$0xff]
  %v1509 = vld [vmem:[%s2 + $0x210] sm:$0xff]
  %v1510 = vld [vmem:[%s2 + $0x218] sm:$0xf]
  %v1511 = vld [vmem:[%s2 + $0x21c] sm:$0xff]
  %v1512 = vld [vmem:[%s2 + $0x224] sm:$0xff]
  %v1513 = vld [vmem:[%s2 + $0x22c] sm:$0xff]
  %v1514 = vld [vmem:[%s2 + $0x234] sm:$0xff]
  %v1515 = vld [vmem:[%s2 + $0x23c] sm:$0xf]
  %v1516 = vld [vmem:[%s2 + $0x240] sm:$0xff]
  %v1517 = vld [vmem:[%s2 + $0x248] sm:$0xff]
  %v1518 = vld [vmem:[%s2 + $0x250] sm:$0xff]
  %v1519 = vld [vmem:[%s2 + $0x258] sm:$0xff]
  %v1520 = vld [vmem:[%s2 + $0x260] sm:$0xf]
  %v1521 = vld [vmem:[%s2 + $0x264] sm:$0xff]
  %v1522 = vld [vmem:[%s2 + $0x26c] sm:$0xff]
  %v1523 = vld [vmem:[%s2 + $0x274] sm:$0xff]
  %v1524 = vld [vmem:[%s2 + $0x27c] sm:$0xff]
  %v1525 = vld [vmem:[%s2 + $0x284] sm:$0xf]
  %v1526 = vld [vmem:[%s2 + $0x288] sm:$0xff]
  %v1527 = vld [vmem:[%s2 + $0x290] sm:$0xff]
  %v1528 = vld [vmem:[%s2 + $0x298] sm:$0xff]
  %v1529 = vld [vmem:[%s2 + $0x2a0] sm:$0xff]
  %v1530 = vld [vmem:[%s2 + $0x2a8] sm:$0xf]
  %v1531 = vld [vmem:[%s2 + $0x2ac] sm:$0xff]
  %v1532 = vld [vmem:[%s2 + $0x2b4] sm:$0xff]
  %v1533 = vld [vmem:[%s2 + $0x2bc] sm:$0xff]
  %v1534 = vld [vmem:[%s2 + $0x2c4] sm:$0xff]
  %v1535 = vld [vmem:[%s2 + $0x2cc] sm:$0xf]
  %v1536 = vld [vmem:[%s2 + $0x2d0] sm:$0xff]
  %v1537 = vld [vmem:[%s2 + $0x2d8] sm:$0xff]
  %v1538 = vld [vmem:[%s2 + $0x2e0] sm:$0xff]
  %v1539 = vld [vmem:[%s2 + $0x2e8] sm:$0xff]
  %v1540 = vld [vmem:[%s2 + $0x2f0] sm:$0xf]
  %v1541 = vld [vmem:[%s2 + $0x2f4] sm:$0xff]
  %v1542 = vld [vmem:[%s2 + $0x2fc] sm:$0xff]
  %v1543 = vld [vmem:[%s2 + $0x304] sm:$0xff]
  %v1544 = vld [vmem:[%s2 + $0x30c] sm:$0xff]
  %v1545 = vld [vmem:[%s2 + $0x314] sm:$0xf]
  %v1546 = vld [vmem:[%s2 + $0x318] sm:$0xff]
  %v1547 = vld [vmem:[%s2 + $0x320] sm:$0xff]
  %v1548 = vld [vmem:[%s2 + $0x328] sm:$0xff]
  %v1549 = vld [vmem:[%s2 + $0x330] sm:$0xff]
  %v1550 = vld [vmem:[%s2 + $0x338] sm:$0xf]
  %v1551 = vld [vmem:[%s2 + $0x33c] sm:$0xff]
  %v1552 = vld [vmem:[%s2 + $0x344] sm:$0xff]
  %v1553 = vld [vmem:[%s2 + $0x34c] sm:$0xff]
  %v1554 = vld [vmem:[%s2 + $0x354] sm:$0xff]
  %v1555 = vld [vmem:[%s2 + $0x35c] sm:$0xf]
  %v1556 = vld [vmem:[%s2 + $0x360] sm:$0xff]
  %v1557 = vld [vmem:[%s2 + $0x368] sm:$0xff]
  %v1558 = vld [vmem:[%s2 + $0x370] sm:$0xff]
  %v1559 = vld [vmem:[%s2 + $0x378] sm:$0xff]
  %v1560 = vld [vmem:[%s2 + $0x380] sm:$0xf]
  %v1561 = vld [vmem:[%s2 + $0x384] sm:$0xff]
  %v1562 = vld [vmem:[%s2 + $0x38c] sm:$0xff]
  %v1563 = vld [vmem:[%s2 + $0x394] sm:$0xff]
  %v1564 = vld [vmem:[%s2 + $0x39c] sm:$0xff]
  %v1565 = vld [vmem:[%s2 + $0x3a4] sm:$0xf]
  %v1566 = vld [vmem:[%s2 + $0x3a8] sm:$0xff]
  %v1567 = vld [vmem:[%s2 + $0x3b0] sm:$0xff]
  %v1568 = vld [vmem:[%s2 + $0x3b8] sm:$0xff]
  %v1569 = vld [vmem:[%s2 + $0x3c0] sm:$0xff]
  %v1570 = vld [vmem:[%s2 + $0x3c8] sm:$0xf]
  %v1571 = vld [vmem:[%s2 + $0x3cc] sm:$0xff]
  %v1572 = vld [vmem:[%s2 + $0x3d4] sm:$0xff]
  %v1573 = vld [vmem:[%s2 + $0x3dc] sm:$0xff]
  %v1574 = vld [vmem:[%s2 + $0x3e4] sm:$0xff]
  %v1575 = vld [vmem:[%s2 + $0x3ec] sm:$0xf]
  %v1576 = vld [vmem:[%s2 + $0x3f0] sm:$0xff]
  %v1577 = vld [vmem:[%s2 + $0x3f8] sm:$0xff]
  %v1578 = vld [vmem:[%s2 + $0x400] sm:$0xff]
  %v1579 = vld [vmem:[%s2 + $0x408] sm:$0xff]
  %v1580 = vld [vmem:[%s2 + $0x410] sm:$0xf]
  %v1581 = vld [vmem:[%s2 + $0x414] sm:$0xff]
  %v1582 = vld [vmem:[%s2 + $0x41c] sm:$0xff]
  %v1583 = vld [vmem:[%s2 + $0x424] sm:$0xff]
  %v1584 = vld [vmem:[%s2 + $0x42c] sm:$0xff]
  %v1585 = vld [vmem:[%s2 + $0x434] sm:$0xf]
  %v1586 = vld [vmem:[%s2 + $0x438] sm:$0xff]
  %v1587 = vld [vmem:[%s2 + $0x440] sm:$0xff]
  %v1588 = vld [vmem:[%s2 + $0x448] sm:$0xff]
  %v1589 = vld [vmem:[%s2 + $0x450] sm:$0xff]
  %v1590 = vld [vmem:[%s2 + $0x458] sm:$0xf]
  %v1591 = vld [vmem:[%s2 + $0x45c] sm:$0xff]
  %v1592 = vld [vmem:[%s2 + $0x464] sm:$0xff]
  %v1593 = vld [vmem:[%s2 + $0x46c] sm:$0xff]
  %v1594 = vld [vmem:[%s2 + $0x474] sm:$0xff]
  %v1595 = vld [vmem:[%s2 + $0x47c] sm:$0xf]
  %v1756 = vunpack.c.l.b16 %v1436
  %v1757 = vunpack.c.h.b16 %v1436
  %v1758 = vunpack.c.l.b16 %v1437
  %v1759 = vunpack.c.h.b16 %v1437
  %v1760 = vunpack.c.l.b16 %v1438
  %v1761 = vunpack.c.h.b16 %v1438
  %v1762 = vunpack.c.l.b16 %v1439
  %v1763 = vunpack.c.h.b16 %v1439
  %v1764 = vunpack.c.l.b16 %v1440
  %v1765 = vunpack.c.l.b16 %v1441
  %v1766 = vunpack.c.h.b16 %v1441
  %v1767 = vunpack.c.l.b16 %v1442
  %v1768 = vunpack.c.h.b16 %v1442
  %v1769 = vunpack.c.l.b16 %v1443
  %v1770 = vunpack.c.h.b16 %v1443
  %v1771 = vunpack.c.l.b16 %v1444
  %v1772 = vunpack.c.h.b16 %v1444
  %v1773 = vunpack.c.l.b16 %v1445
  %v1774 = vunpack.c.l.b16 %v1446
  %v1775 = vunpack.c.h.b16 %v1446
  %v1776 = vunpack.c.l.b16 %v1447
  %v1777 = vunpack.c.h.b16 %v1447
  %v1778 = vunpack.c.l.b16 %v1448
  %v1779 = vunpack.c.h.b16 %v1448
  %v1780 = vunpack.c.l.b16 %v1449
  %v1781 = vunpack.c.h.b16 %v1449
  %v1782 = vunpack.c.l.b16 %v1450
  %v1783 = vunpack.c.l.b16 %v1451
  %v1784 = vunpack.c.h.b16 %v1451
  %v1785 = vunpack.c.l.b16 %v1452
  %v1786 = vunpack.c.h.b16 %v1452
  %v1787 = vunpack.c.l.b16 %v1453
  %v1788 = vunpack.c.h.b16 %v1453
  %v1789 = vunpack.c.l.b16 %v1454
  %v1790 = vunpack.c.h.b16 %v1454
  %v1791 = vunpack.c.l.b16 %v1455
  %v1792 = vunpack.c.l.b16 %v1456
  %v1793 = vunpack.c.h.b16 %v1456
  %v1794 = vunpack.c.l.b16 %v1457
  %v1795 = vunpack.c.h.b16 %v1457
  %v1796 = vunpack.c.l.b16 %v1458
  %v1797 = vunpack.c.h.b16 %v1458
  %v1798 = vunpack.c.l.b16 %v1459
  %v1799 = vunpack.c.h.b16 %v1459
  %v1800 = vunpack.c.l.b16 %v1460
  %v1801 = vunpack.c.l.b16 %v1461
  %v1802 = vunpack.c.h.b16 %v1461
  %v1803 = vunpack.c.l.b16 %v1462
  %v1804 = vunpack.c.h.b16 %v1462
  %v1805 = vunpack.c.l.b16 %v1463
  %v1806 = vunpack.c.h.b16 %v1463
  %v1807 = vunpack.c.l.b16 %v1464
  %v1808 = vunpack.c.h.b16 %v1464
  %v1809 = vunpack.c.l.b16 %v1465
  %v1810 = vunpack.c.l.b16 %v1466
  %v1811 = vunpack.c.h.b16 %v1466
  %v1812 = vunpack.c.l.b16 %v1467
  %v1813 = vunpack.c.h.b16 %v1467
  %v1814 = vunpack.c.l.b16 %v1468
  %v1815 = vunpack.c.h.b16 %v1468
  %v1816 = vunpack.c.l.b16 %v1469
  %v1817 = vunpack.c.h.b16 %v1469
  %v1818 = vunpack.c.l.b16 %v1470
  %v1819 = vunpack.c.l.b16 %v1471
  %v1820 = vunpack.c.h.b16 %v1471
  %v1821 = vunpack.c.l.b16 %v1472
  %v1822 = vunpack.c.h.b16 %v1472
  %v1823 = vunpack.c.l.b16 %v1473
  %v1824 = vunpack.c.h.b16 %v1473
  %v1825 = vunpack.c.l.b16 %v1474
  %v1826 = vunpack.c.h.b16 %v1474
  %v1827 = vunpack.c.l.b16 %v1475
  %v1828 = vunpack.c.l.b16 %v1476
  %v1829 = vunpack.c.h.b16 %v1476
  %v1830 = vunpack.c.l.b16 %v1477
  %v1831 = vunpack.c.h.b16 %v1477
  %v1832 = vunpack.c.l.b16 %v1478
  %v1833 = vunpack.c.h.b16 %v1478
  %v1834 = vunpack.c.l.b16 %v1479
  %v1835 = vunpack.c.h.b16 %v1479
  %v1836 = vunpack.c.l.b16 %v1480
  %v1837 = vunpack.c.l.b16 %v1481
  %v1838 = vunpack.c.h.b16 %v1481
  %v1839 = vunpack.c.l.b16 %v1482
  %v1840 = vunpack.c.h.b16 %v1482
  %v1841 = vunpack.c.l.b16 %v1483
  %v1842 = vunpack.c.h.b16 %v1483
  %v1843 = vunpack.c.l.b16 %v1484
  %v1844 = vunpack.c.h.b16 %v1484
  %v1845 = vunpack.c.l.b16 %v1485
  %v1846 = vunpack.c.l.b16 %v1486
  %v1847 = vunpack.c.h.b16 %v1486
  %v1848 = vunpack.c.l.b16 %v1487
  %v1849 = vunpack.c.h.b16 %v1487
  %v1850 = vunpack.c.l.b16 %v1488
  %v1851 = vunpack.c.h.b16 %v1488
  %v1852 = vunpack.c.l.b16 %v1489
  %v1853 = vunpack.c.h.b16 %v1489
  %v1854 = vunpack.c.l.b16 %v1490
  %v1855 = vunpack.c.l.b16 %v1491
  %v1856 = vunpack.c.h.b16 %v1491
  %v1857 = vunpack.c.l.b16 %v1492
  %v1858 = vunpack.c.h.b16 %v1492
  %v1859 = vunpack.c.l.b16 %v1493
  %v1860 = vunpack.c.h.b16 %v1493
  %v1861 = vunpack.c.l.b16 %v1494
  %v1862 = vunpack.c.h.b16 %v1494
  %v1863 = vunpack.c.l.b16 %v1495
  %v1864 = vunpack.c.l.b16 %v1496
  %v1865 = vunpack.c.h.b16 %v1496
  %v1866 = vunpack.c.l.b16 %v1497
  %v1867 = vunpack.c.h.b16 %v1497
  %v1868 = vunpack.c.l.b16 %v1498
  %v1869 = vunpack.c.h.b16 %v1498
  %v1870 = vunpack.c.l.b16 %v1499
  %v1871 = vunpack.c.h.b16 %v1499
  %v1872 = vunpack.c.l.b16 %v1500
  %v1873 = vunpack.c.l.b16 %v1501
  %v1874 = vunpack.c.h.b16 %v1501
  %v1875 = vunpack.c.l.b16 %v1502
  %v1876 = vunpack.c.h.b16 %v1502
  %v1877 = vunpack.c.l.b16 %v1503
  %v1878 = vunpack.c.h.b16 %v1503
  %v1879 = vunpack.c.l.b16 %v1504
  %v1880 = vunpack.c.h.b16 %v1504
  %v1881 = vunpack.c.l.b16 %v1505
  %v1882 = vunpack.c.l.b16 %v1506
  %v1883 = vunpack.c.h.b16 %v1506
  %v1884 = vunpack.c.l.b16 %v1507
  %v1885 = vunpack.c.h.b16 %v1507
  %v1886 = vunpack.c.l.b16 %v1508
  %v1887 = vunpack.c.h.b16 %v1508
  %v1888 = vunpack.c.l.b16 %v1509
  %v1889 = vunpack.c.h.b16 %v1509
  %v1890 = vunpack.c.l.b16 %v1510
  %v1891 = vunpack.c.l.b16 %v1511
  %v1892 = vunpack.c.h.b16 %v1511
  %v1893 = vunpack.c.l.b16 %v1512
  %v1894 = vunpack.c.h.b16 %v1512
  %v1895 = vunpack.c.l.b16 %v1513
  %v1896 = vunpack.c.h.b16 %v1513
  %v1897 = vunpack.c.l.b16 %v1514
  %v1898 = vunpack.c.h.b16 %v1514
  %v1899 = vunpack.c.l.b16 %v1515
  %v1900 = vunpack.c.l.b16 %v1516
  %v1901 = vunpack.c.h.b16 %v1516
  %v1902 = vunpack.c.l.b16 %v1517
  %v1903 = vunpack.c.h.b16 %v1517
  %v1904 = vunpack.c.l.b16 %v1518
  %v1905 = vunpack.c.h.b16 %v1518
  %v1906 = vunpack.c.l.b16 %v1519
  %v1907 = vunpack.c.h.b16 %v1519
  %v1908 = vunpack.c.l.b16 %v1520
  %v1909 = vunpack.c.l.b16 %v1521
  %v1910 = vunpack.c.h.b16 %v1521
  %v1911 = vunpack.c.l.b16 %v1522
  %v1912 = vunpack.c.h.b16 %v1522
  %v1913 = vunpack.c.l.b16 %v1523
  %v1914 = vunpack.c.h.b16 %v1523
  %v1915 = vunpack.c.l.b16 %v1524
  %v1916 = vunpack.c.h.b16 %v1524
  %v1917 = vunpack.c.l.b16 %v1525
  %v1918 = vunpack.c.l.b16 %v1526
  %v1919 = vunpack.c.h.b16 %v1526
  %v1920 = vunpack.c.l.b16 %v1527
  %v1921 = vunpack.c.h.b16 %v1527
  %v1922 = vunpack.c.l.b16 %v1528
  %v1923 = vunpack.c.h.b16 %v1528
  %v1924 = vunpack.c.l.b16 %v1529
  %v1925 = vunpack.c.h.b16 %v1529
  %v1926 = vunpack.c.l.b16 %v1530
  %v1927 = vunpack.c.l.b16 %v1531
  %v1928 = vunpack.c.h.b16 %v1531
  %v1929 = vunpack.c.l.b16 %v1532
  %v1930 = vunpack.c.h.b16 %v1532
  %v1931 = vunpack.c.l.b16 %v1533
  %v1932 = vunpack.c.h.b16 %v1533
  %v1933 = vunpack.c.l.b16 %v1534
  %v1934 = vunpack.c.h.b16 %v1534
  %v1935 = vunpack.c.l.b16 %v1535
  %v1936 = vunpack.c.l.b16 %v1536
  %v1937 = vunpack.c.h.b16 %v1536
  %v1938 = vunpack.c.l.b16 %v1537
  %v1939 = vunpack.c.h.b16 %v1537
  %v1940 = vunpack.c.l.b16 %v1538
  %v1941 = vunpack.c.h.b16 %v1538
  %v1942 = vunpack.c.l.b16 %v1539
  %v1943 = vunpack.c.h.b16 %v1539
  %v1944 = vunpack.c.l.b16 %v1540
  %v1945 = vunpack.c.l.b16 %v1541
  %v1946 = vunpack.c.h.b16 %v1541
  %v1947 = vunpack.c.l.b16 %v1542
  %v1948 = vunpack.c.h.b16 %v1542
  %v1949 = vunpack.c.l.b16 %v1543
  %v1950 = vunpack.c.h.b16 %v1543
  %v1951 = vunpack.c.l.b16 %v1544
  %v1952 = vunpack.c.h.b16 %v1544
  %v1953 = vunpack.c.l.b16 %v1545
  %v1954 = vunpack.c.l.b16 %v1546
  %v1955 = vunpack.c.h.b16 %v1546
  %v1956 = vunpack.c.l.b16 %v1547
  %v1957 = vunpack.c.h.b16 %v1547
  %v1958 = vunpack.c.l.b16 %v1548
  %v1959 = vunpack.c.h.b16 %v1548
  %v1960 = vunpack.c.l.b16 %v1549
  %v1961 = vunpack.c.h.b16 %v1549
  %v1962 = vunpack.c.l.b16 %v1550
  %v1963 = vunpack.c.l.b16 %v1551
  %v1964 = vunpack.c.h.b16 %v1551
  %v1965 = vunpack.c.l.b16 %v1552
  %v1966 = vunpack.c.h.b16 %v1552
  %v1967 = vunpack.c.l.b16 %v1553
  %v1968 = vunpack.c.h.b16 %v1553
  %v1969 = vunpack.c.l.b16 %v1554
  %v1970 = vunpack.c.h.b16 %v1554
  %v1971 = vunpack.c.l.b16 %v1555
  %v1972 = vunpack.c.l.b16 %v1556
  %v1973 = vunpack.c.h.b16 %v1556
  %v1974 = vunpack.c.l.b16 %v1557
  %v1975 = vunpack.c.h.b16 %v1557
  %v1976 = vunpack.c.l.b16 %v1558
  %v1977 = vunpack.c.h.b16 %v1558
  %v1978 = vunpack.c.l.b16 %v1559
  %v1979 = vunpack.c.h.b16 %v1559
  %v1980 = vunpack.c.l.b16 %v1560
  %v1981 = vunpack.c.l.b16 %v1561
  %v1982 = vunpack.c.h.b16 %v1561
  %v1983 = vunpack.c.l.b16 %v1562
  %v1984 = vunpack.c.h.b16 %v1562
  %v1985 = vunpack.c.l.b16 %v1563
  %v1986 = vunpack.c.h.b16 %v1563
  %v1987 = vunpack.c.l.b16 %v1564
  %v1988 = vunpack.c.h.b16 %v1564
  %v1989 = vunpack.c.l.b16 %v1565
  %v1990 = vunpack.c.l.b16 %v1566
  %v1991 = vunpack.c.h.b16 %v1566
  %v1992 = vunpack.c.l.b16 %v1567
  %v1993 = vunpack.c.h.b16 %v1567
  %v1994 = vunpack.c.l.b16 %v1568
  %v1995 = vunpack.c.h.b16 %v1568
  %v1996 = vunpack.c.l.b16 %v1569
  %v1997 = vunpack.c.h.b16 %v1569
  %v1998 = vunpack.c.l.b16 %v1570
  %v1999 = vunpack.c.l.b16 %v1571
  %v2000 = vunpack.c.h.b16 %v1571
  %v2001 = vunpack.c.l.b16 %v1572
  %v2002 = vunpack.c.h.b16 %v1572
  %v2003 = vunpack.c.l.b16 %v1573
  %v2004 = vunpack.c.h.b16 %v1573
  %v2005 = vunpack.c.l.b16 %v1574
  %v2006 = vunpack.c.h.b16 %v1574
  %v2007 = vunpack.c.l.b16 %v1575
  %v2008 = vunpack.c.l.b16 %v1576
  %v2009 = vunpack.c.h.b16 %v1576
  %v2010 = vunpack.c.l.b16 %v1577
  %v2011 = vunpack.c.h.b16 %v1577
  %v2012 = vunpack.c.l.b16 %v1578
  %v2013 = vunpack.c.h.b16 %v1578
  %v2014 = vunpack.c.l.b16 %v1579
  %v2015 = vunpack.c.h.b16 %v1579
  %v2016 = vunpack.c.l.b16 %v1580
  %v2017 = vunpack.c.l.b16 %v1581
  %v2018 = vunpack.c.h.b16 %v1581
  %v2019 = vunpack.c.l.b16 %v1582
  %v2020 = vunpack.c.h.b16 %v1582
  %v2021 = vunpack.c.l.b16 %v1583
  %v2022 = vunpack.c.h.b16 %v1583
  %v2023 = vunpack.c.l.b16 %v1584
  %v2024 = vunpack.c.h.b16 %v1584
  %v2025 = vunpack.c.l.b16 %v1585
  %v2026 = vunpack.c.l.b16 %v1586
  %v2027 = vunpack.c.h.b16 %v1586
  %v2028 = vunpack.c.l.b16 %v1587
  %v2029 = vunpack.c.h.b16 %v1587
  %v2030 = vunpack.c.l.b16 %v1588
  %v2031 = vunpack.c.h.b16 %v1588
  %v2032 = vunpack.c.l.b16 %v1589
  %v2033 = vunpack.c.h.b16 %v1589
  %v2034 = vunpack.c.l.b16 %v1590
  %v2035 = vunpack.c.l.b16 %v1591
  %v2036 = vunpack.c.h.b16 %v1591
  %v2037 = vunpack.c.l.b16 %v1592
  %v2038 = vunpack.c.h.b16 %v1592
  %v2039 = vunpack.c.l.b16 %v1593
  %v2040 = vunpack.c.h.b16 %v1593
  %v2041 = vunpack.c.l.b16 %v1594
  %v2042 = vunpack.c.h.b16 %v1594
  %v2043 = vunpack.c.l.b16 %v1595
  %v2044 = vpack.c.b16 %v1765, %v1756
  %v2045 = vpack.c.b16 %v1766, %v1757
  %v2046 = vpack.c.b16 %v1767, %v1758
  %v2047 = vpack.c.b16 %v1768, %v1759
  %v2048 = vpack.c.b16 %v1769, %v1760
  %v2049 = vpack.c.b16 %v1770, %v1761
  %v2050 = vpack.c.b16 %v1771, %v1762
  %v2051 = vpack.c.b16 %v1772, %v1763
  %v2052 = vpack.c.b16 %v1773, %v1764
  %v2053 = vpack.c.b16 %v1783, %v1774
  %v2054 = vpack.c.b16 %v1784, %v1775
  %v2055 = vpack.c.b16 %v1785, %v1776
  %v2056 = vpack.c.b16 %v1786, %v1777
  %v2057 = vpack.c.b16 %v1787, %v1778
  %v2058 = vpack.c.b16 %v1788, %v1779
  %v2059 = vpack.c.b16 %v1789, %v1780
  %v2060 = vpack.c.b16 %v1790, %v1781
  %v2061 = vpack.c.b16 %v1791, %v1782
  %v2062 = vpack.c.b16 %v1801, %v1792
  %v2063 = vpack.c.b16 %v1802, %v1793
  %v2064 = vpack.c.b16 %v1803, %v1794
  %v2065 = vpack.c.b16 %v1804, %v1795
  %v2066 = vpack.c.b16 %v1805, %v1796
  %v2067 = vpack.c.b16 %v1806, %v1797
  %v2068 = vpack.c.b16 %v1807, %v1798
  %v2069 = vpack.c.b16 %v1808, %v1799
  %v2070 = vpack.c.b16 %v1809, %v1800
  %v2071 = vpack.c.b16 %v1819, %v1810
  %v2072 = vpack.c.b16 %v1820, %v1811
  %v2073 = vpack.c.b16 %v1821, %v1812
  %v2074 = vpack.c.b16 %v1822, %v1813
  %v2075 = vpack.c.b16 %v1823, %v1814
  %v2076 = vpack.c.b16 %v1824, %v1815
  %v2077 = vpack.c.b16 %v1825, %v1816
  %v2078 = vpack.c.b16 %v1826, %v1817
  %v2079 = vpack.c.b16 %v1827, %v1818
  %v2080 = vpack.c.b16 %v1837, %v1828
  %v2081 = vpack.c.b16 %v1838, %v1829
  %v2082 = vpack.c.b16 %v1839, %v1830
  %v2083 = vpack.c.b16 %v1840, %v1831
  %v2084 = vpack.c.b16 %v1841, %v1832
  %v2085 = vpack.c.b16 %v1842, %v1833
  %v2086 = vpack.c.b16 %v1843, %v1834
  %v2087 = vpack.c.b16 %v1844, %v1835
  %v2088 = vpack.c.b16 %v1845, %v1836
  %v2089 = vpack.c.b16 %v1855, %v1846
  %v2090 = vpack.c.b16 %v1856, %v1847
  %v2091 = vpack.c.b16 %v1857, %v1848
  %v2092 = vpack.c.b16 %v1858, %v1849
  %v2093 = vpack.c.b16 %v1859, %v1850
  %v2094 = vpack.c.b16 %v1860, %v1851
  %v2095 = vpack.c.b16 %v1861, %v1852
  %v2096 = vpack.c.b16 %v1862, %v1853
  %v2097 = vpack.c.b16 %v1863, %v1854
  %v2098 = vpack.c.b16 %v1873, %v1864
  %v2099 = vpack.c.b16 %v1874, %v1865
  %v2100 = vpack.c.b16 %v1875, %v1866
  %v2101 = vpack.c.b16 %v1876, %v1867
  %v2102 = vpack.c.b16 %v1877, %v1868
  %v2103 = vpack.c.b16 %v1878, %v1869
  %v2104 = vpack.c.b16 %v1879, %v1870
  %v2105 = vpack.c.b16 %v1880, %v1871
  %v2106 = vpack.c.b16 %v1881, %v1872
  %v2107 = vpack.c.b16 %v1891, %v1882
  %v2108 = vpack.c.b16 %v1892, %v1883
  %v2109 = vpack.c.b16 %v1893, %v1884
  %v2110 = vpack.c.b16 %v1894, %v1885
  %v2111 = vpack.c.b16 %v1895, %v1886
  %v2112 = vpack.c.b16 %v1896, %v1887
  %v2113 = vpack.c.b16 %v1897, %v1888
  %v2114 = vpack.c.b16 %v1898, %v1889
  %v2115 = vpack.c.b16 %v1899, %v1890
  %v2116 = vpack.c.b16 %v1909, %v1900
  %v2117 = vpack.c.b16 %v1910, %v1901
  %v2118 = vpack.c.b16 %v1911, %v1902
  %v2119 = vpack.c.b16 %v1912, %v1903
  %v2120 = vpack.c.b16 %v1913, %v1904
  %v2121 = vpack.c.b16 %v1914, %v1905
  %v2122 = vpack.c.b16 %v1915, %v1906
  %v2123 = vpack.c.b16 %v1916, %v1907
  %v2124 = vpack.c.b16 %v1917, %v1908
  %v2125 = vpack.c.b16 %v1927, %v1918
  %v2126 = vpack.c.b16 %v1928, %v1919
  %v2127 = vpack.c.b16 %v1929, %v1920
  %v2128 = vpack.c.b16 %v1930, %v1921
  %v2129 = vpack.c.b16 %v1931, %v1922
  %v2130 = vpack.c.b16 %v1932, %v1923
  %v2131 = vpack.c.b16 %v1933, %v1924
  %v2132 = vpack.c.b16 %v1934, %v1925
  %v2133 = vpack.c.b16 %v1935, %v1926
  %v2134 = vpack.c.b16 %v1945, %v1936
  %v2135 = vpack.c.b16 %v1946, %v1937
  %v2136 = vpack.c.b16 %v1947, %v1938
  %v2137 = vpack.c.b16 %v1948, %v1939
  %v2138 = vpack.c.b16 %v1949, %v1940
  %v2139 = vpack.c.b16 %v1950, %v1941
  %v2140 = vpack.c.b16 %v1951, %v1942
  %v2141 = vpack.c.b16 %v1952, %v1943
  %v2142 = vpack.c.b16 %v1953, %v1944
  %v2143 = vpack.c.b16 %v1963, %v1954
  %v2144 = vpack.c.b16 %v1964, %v1955
  %v2145 = vpack.c.b16 %v1965, %v1956
  %v2146 = vpack.c.b16 %v1966, %v1957
  %v2147 = vpack.c.b16 %v1967, %v1958
  %v2148 = vpack.c.b16 %v1968, %v1959
  %v2149 = vpack.c.b16 %v1969, %v1960
  %v2150 = vpack.c.b16 %v1970, %v1961
  %v2151 = vpack.c.b16 %v1971, %v1962
  %v2152 = vpack.c.b16 %v1981, %v1972
  %v2153 = vpack.c.b16 %v1982, %v1973
  %v2154 = vpack.c.b16 %v1983, %v1974
  %v2155 = vpack.c.b16 %v1984, %v1975
  %v2156 = vpack.c.b16 %v1985, %v1976
  %v2157 = vpack.c.b16 %v1986, %v1977
  %v2158 = vpack.c.b16 %v1987, %v1978
  %v2159 = vpack.c.b16 %v1988, %v1979
  %v2160 = vpack.c.b16 %v1989, %v1980
  %v2161 = vpack.c.b16 %v1999, %v1990
  %v2162 = vpack.c.b16 %v2000, %v1991
  %v2163 = vpack.c.b16 %v2001, %v1992
  %v2164 = vpack.c.b16 %v2002, %v1993
  %v2165 = vpack.c.b16 %v2003, %v1994
  %v2166 = vpack.c.b16 %v2004, %v1995
  %v2167 = vpack.c.b16 %v2005, %v1996
  %v2168 = vpack.c.b16 %v2006, %v1997
  %v2169 = vpack.c.b16 %v2007, %v1998
  %v2170 = vpack.c.b16 %v2017, %v2008
  %v2171 = vpack.c.b16 %v2018, %v2009
  %v2172 = vpack.c.b16 %v2019, %v2010
  %v2173 = vpack.c.b16 %v2020, %v2011
  %v2174 = vpack.c.b16 %v2021, %v2012
  %v2175 = vpack.c.b16 %v2022, %v2013
  %v2176 = vpack.c.b16 %v2023, %v2014
  %v2177 = vpack.c.b16 %v2024, %v2015
  %v2178 = vpack.c.b16 %v2025, %v2016
  %v2179 = vpack.c.b16 %v2035, %v2026
  %v2180 = vpack.c.b16 %v2036, %v2027
  %v2181 = vpack.c.b16 %v2037, %v2028
  %v2182 = vpack.c.b16 %v2038, %v2029
  %v2183 = vpack.c.b16 %v2039, %v2030
  %v2184 = vpack.c.b16 %v2040, %v2031
  %v2185 = vpack.c.b16 %v2041, %v2032
  %v2186 = vpack.c.b16 %v2042, %v2033
  %v2187 = vpack.c.b16 %v2043, %v2034
  %2332 = vmatprep.subr.bf16.mxu0 %v2045
  %2333 = vmatpush1.bf16.msra.mxu0 %v2044
  %2334 = vmatprep.subr.bf16.mxu0 %v2054
  %2335 = vmatpush1.bf16.msra.mxu0 %v2053
  %2336 = vmatprep.subr.bf16.mxu0 %v2063
  %2337 = vmatpush1.bf16.msra.mxu0 %v2062
  %2338 = vmatprep.subr.bf16.mxu0 %v2072
  %2339 = vmatpush1.bf16.msra.mxu0 %v2071
  %2340 = vmatprep.subr.bf16.mxu0 %v2081
  %2341 = vmatpush1.bf16.msra.mxu0 %v2080
  %2342 = vmatprep.subr.bf16.mxu0 %v2090
  %2343 = vmatpush1.bf16.msra.mxu0 %v2089
  %2344 = vmatprep.subr.bf16.mxu0 %v2099
  %2345 = vmatpush1.bf16.msra.mxu0 %v2098
  %2346 = vmatprep.subr.bf16.mxu0 %v2108
  %2347 = vmatpush1.bf16.msra.mxu0 %v2107
  %2348 = vmatprep.subr.bf16.mxu0 %v2117
  %2349 = vmatpush1.bf16.msra.mxu0 %v2116
  %2350 = vmatprep.subr.bf16.mxu0 %v2126
  %2351 = vmatpush1.bf16.msra.mxu0 %v2125
  %2352 = vmatprep.subr.bf16.mxu0 %v2135
  %2353 = vmatpush1.bf16.msra.mxu0 %v2134
  %2354 = vmatprep.subr.bf16.mxu0 %v2144
  %2355 = vmatpush1.bf16.msra.mxu0 %v2143
  %2356 = vmatprep.subr.bf16.mxu0 %v2153
  %2357 = vmatpush1.bf16.msra.mxu0 %v2152
  %2358 = vmatprep.subr.bf16.mxu0 %v2162
  %2359 = vmatpush1.bf16.msra.mxu0 %v2161
  %2360 = vmatprep.subr.bf16.mxu0 %v2171
  %2361 = vmatpush1.bf16.msra.mxu0 %v2170
  %2362 = vmatprep.subr.bf16.mxu0 %v2180
  %2363 = vmatpush1.bf16.msra.mxu0 %v2179
  %2364 = vmatprep.mubr.bf16.mxu0 %v1433
  %2365 = vmatmul.mubr.bf16.gmra.mrb[0].mxu0 %v1432
  %v2366 = vpop.f32.mrb[0].mxu0
  %v2367 = vadd.f32 0.0, %v2366
  %v2368 = vpop.f32.mrb[0].mxu0
  %v2369 = vadd.f32 0.0, %v2368
  %v2370 = vpop.f32.mrb[0].mxu0
  %v2371 = vadd.f32 0.0, %v2370
  %v2372 = vpop.f32.mrb[0].mxu0
  %v2373 = vadd.f32 0.0, %v2372
  %2374 = vmatprep.mubr.bf16.mxu0 %v1435
  %2375 = vmatmul.mubr.bf16.gmra.mrb[0].mxu0 %v1434
  %v2376 = vpop.f32.mrb[0].mxu0
  %v2377 = vadd.f32 0.0, %v2376
  %v2378 = vpop.f32.mrb[0].mxu0
  %v2379 = vadd.f32 0.0, %v2378
  %v2380 = vpop.f32.mrb[0].mxu0
  %v2381 = vpop.f32.mrb[0].mxu0
  %2382 = vdwg.mxu0
  %2383 = vmatprep.subr.bf16.mxu0 %v2047
  %2384 = vmatpush1.bf16.msra.mxu0 %v2046
  %2385 = vmatprep.subr.bf16.mxu0 %v2056
  %2386 = vmatpush1.bf16.msra.mxu0 %v2055
  %2387 = vmatprep.subr.bf16.mxu0 %v2065
  %2388 = vmatpush1.bf16.msra.mxu0 %v2064
  %2389 = vmatprep.subr.bf16.mxu0 %v2074
  %2390 = vmatpush1.bf16.msra.mxu0 %v2073
  %2391 = vmatprep.subr.bf16.mxu0 %v2083
  %2392 = vmatpush1.bf16.msra.mxu0 %v2082
  %2393 = vmatprep.subr.bf16.mxu0 %v2092
  %2394 = vmatpush1.bf16.msra.mxu0 %v2091
  %2395 = vmatprep.subr.bf16.mxu0 %v2101
  %2396 = vmatpush1.bf16.msra.mxu0 %v2100
  %2397 = vmatprep.subr.bf16.mxu0 %v2110
  %2398 = vmatpush1.bf16.msra.mxu0 %v2109
  %2399 = vmatprep.subr.bf16.mxu0 %v2119
  %2400 = vmatpush1.bf16.msra.mxu0 %v2118
  %2401 = vmatprep.subr.bf16.mxu0 %v2128
  %2402 = vmatpush1.bf16.msra.mxu0 %v2127
  %2403 = vmatprep.subr.bf16.mxu0 %v2137
  %2404 = vmatpush1.bf16.msra.mxu0 %v2136
  %2405 = vmatprep.subr.bf16.mxu0 %v2146
  %2406 = vmatpush1.bf16.msra.mxu0 %v2145
  %2407 = vmatprep.subr.bf16.mxu0 %v2155
  %2408 = vmatpush1.bf16.msra.mxu0 %v2154
  %2409 = vmatprep.subr.bf16.mxu0 %v2164
  %2410 = vmatpush1.bf16.msra.mxu0 %v2163
  %2411 = vmatprep.subr.bf16.mxu0 %v2173
  %2412 = vmatpush1.bf16.msra.mxu0 %v2172
  %2413 = vmatprep.subr.bf16.mxu0 %v2182
  %2414 = vmatpush1.bf16.msra.mxu0 %v2181
  %2415 = vmatprep.mubr.bf16.mxu0 %v1433
  %2416 = vmatmul.mubr.bf16.gmra.mrb[0].mxu0 %v1432
  %v2417 = vpop.f32.mrb[0].mxu0
  %v2418 = vadd.f32 0.0, %v2417
  %v2419 = vpop.f32.mrb[0].mxu0
  %v2420 = vadd.f32 0.0, %v2419
  %v2421 = vpop.f32.mrb[0].mxu0
  %v2422 = vadd.f32 0.0, %v2421
  %v2423 = vpop.f32.mrb[0].mxu0
  %v2424 = vadd.f32 0.0, %v2423
  %2425 = vmatprep.mubr.bf16.mxu0 %v1435
  %2426 = vmatmul.mubr.bf16.gmra.mrb[0].mxu0 %v1434
  %v2427 = vpop.f32.mrb[0].mxu0
  %v2428 = vadd.f32 0.0, %v2427
  %v2429 = vpop.f32.mrb[0].mxu0
  %v2430 = vadd.f32 0.0, %v2429
  %v2431 = vpop.f32.mrb[0].mxu0
  %v2432 = vpop.f32.mrb[0].mxu0
  %2433 = vdwg.mxu0
  %2434 = vmatprep.subr.bf16.mxu0 %v2049
  %2435 = vmatpush1.bf16.msra.mxu0 %v2048
  %2436 = vmatprep.subr.bf16.mxu0 %v2058
  %2437 = vmatpush1.bf16.msra.mxu0 %v2057
  %2438 = vmatprep.subr.bf16.mxu0 %v2067
  %2439 = vmatpush1.bf16.msra.mxu0 %v2066
  %2440 = vmatprep.subr.bf16.mxu0 %v2076
  %2441 = vmatpush1.bf16.msra.mxu0 %v2075
  %2442 = vmatprep.subr.bf16.mxu0 %v2085
  %2443 = vmatpush1.bf16.msra.mxu0 %v2084
  %2444 = vmatprep.subr.bf16.mxu0 %v2094
  %2445 = vmatpush1.bf16.msra.mxu0 %v2093
  %2446 = vmatprep.subr.bf16.mxu0 %v2103
  %2447 = vmatpush1.bf16.msra.mxu0 %v2102
  %2448 = vmatprep.subr.bf16.mxu0 %v2112
  %2449 = vmatpush1.bf16.msra.mxu0 %v2111
  %2450 = vmatprep.subr.bf16.mxu0 %v2121
  %2451 = vmatpush1.bf16.msra.mxu0 %v2120
  %2452 = vmatprep.subr.bf16.mxu0 %v2130
  %2453 = vmatpush1.bf16.msra.mxu0 %v2129
  %2454 = vmatprep.subr.bf16.mxu0 %v2139
  %2455 = vmatpush1.bf16.msra.mxu0 %v2138
  %2456 = vmatprep.subr.bf16.mxu0 %v2148
  %2457 = vmatpush1.bf16.msra.mxu0 %v2147
  %2458 = vmatprep.subr.bf16.mxu0 %v2157
  %2459 = vmatpush1.bf16.msra.mxu0 %v2156
  %2460 = vmatprep.subr.bf16.mxu0 %v2166
  %2461 = vmatpush1.bf16.msra.mxu0 %v2165
  %2462 = vmatprep.subr.bf16.mxu0 %v2175
  %2463 = vmatpush1.bf16.msra.mxu0 %v2174
  %2464 = vmatprep.subr.bf16.mxu0 %v2184
  %2465 = vmatpush1.bf16.msra.mxu0 %v2183
  %2466 = vmatprep.mubr.bf16.mxu0 %v1433
  %2467 = vmatmul.mubr.bf16.gmra.mrb[0].mxu0 %v1432
  %v2468 = vpop.f32.mrb[0].mxu0
  %v2469 = vadd.f32 0.0, %v2468
  %v2470 = vpop.f32.mrb[0].mxu0
  %v2471 = vadd.f32 0.0, %v2470
  %v2472 = vpop.f32.mrb[0].mxu0
  %v2473 = vadd.f32 0.0, %v2472
  %v2474 = vpop.f32.mrb[0].mxu0
  %v2475 = vadd.f32 0.0, %v2474
  %2476 = vmatprep.mubr.bf16.mxu0 %v1435
  %2477 = vmatmul.mubr.bf16.gmra.mrb[0].mxu0 %v1434
  %v2478 = vpop.f32.mrb[0].mxu0
  %v2479 = vadd.f32 0.0, %v2478
  %v2480 = vpop.f32.mrb[0].mxu0
  %v2481 = vadd.f32 0.0, %v2480
  %v2482 = vpop.f32.mrb[0].mxu0
  %v2483 = vpop.f32.mrb[0].mxu0
  %2484 = vdwg.mxu0
  %2485 = vmatprep.subr.bf16.mxu0 %v2051
  %2486 = vmatpush1.bf16.msra.mxu0 %v2050
  %2487 = vmatprep.subr.bf16.mxu0 %v2060
  %2488 = vmatpush1.bf16.msra.mxu0 %v2059
  %2489 = vmatprep.subr.bf16.mxu0 %v2069
  %2490 = vmatpush1.bf16.msra.mxu0 %v2068
  %2491 = vmatprep.subr.bf16.mxu0 %v2078
  %2492 = vmatpush1.bf16.msra.mxu0 %v2077
  %2493 = vmatprep.subr.bf16.mxu0 %v2087
  %2494 = vmatpush1.bf16.msra.mxu0 %v2086
  %2495 = vmatprep.subr.bf16.mxu0 %v2096
  %2496 = vmatpush1.bf16.msra.mxu0 %v2095
  %2497 = vmatprep.subr.bf16.mxu0 %v2105
  %2498 = vmatpush1.bf16.msra.mxu0 %v2104
  %2499 = vmatprep.subr.bf16.mxu0 %v2114
  %2500 = vmatpush1.bf16.msra.mxu0 %v2113
  %2501 = vmatprep.subr.bf16.mxu0 %v2123
  %2502 = vmatpush1.bf16.msra.mxu0 %v2122
  %2503 = vmatprep.subr.bf16.mxu0 %v2132
  %2504 = vmatpush1.bf16.msra.mxu0 %v2131
  %2505 = vmatprep.subr.bf16.mxu0 %v2141
  %2506 = vmatpush1.bf16.msra.mxu0 %v2140
  %2507 = vmatprep.subr.bf16.mxu0 %v2150
  %2508 = vmatpush1.bf16.msra.mxu0 %v2149
  %2509 = vmatprep.subr.bf16.mxu0 %v2159
  %2510 = vmatpush1.bf16.msra.mxu0 %v2158
  %2511 = vmatprep.subr.bf16.mxu0 %v2168
  %2512 = vmatpush1.bf16.msra.mxu0 %v2167
  %2513 = vmatprep.subr.bf16.mxu0 %v2177
  %2514 = vmatpush1.bf16.msra.mxu0 %v2176
  %2515 = vmatprep.subr.bf16.mxu0 %v2186
  %2516 = vmatpush1.bf16.msra.mxu0 %v2185
  %2517 = vmatprep.mubr.bf16.mxu0 %v1433
  %2518 = vmatmul.mubr.bf16.gmra.mrb[0].mxu0 %v1432
  %v2519 = vpop.f32.mrb[0].mxu0
  %v2520 = vadd.f32 0.0, %v2519
  %v2521 = vpop.f32.mrb[0].mxu0
  %v2522 = vadd.f32 0.0, %v2521
  %v2523 = vpop.f32.mrb[0].mxu0
  %v2524 = vadd.f32 0.0, %v2523
  %v2525 = vpop.f32.mrb[0].mxu0
  %v2526 = vadd.f32 0.0, %v2525
  %2527 = vmatprep.mubr.bf16.mxu0 %v1435
  %2528 = vmatmul.mubr.bf16.gmra.mrb[0].mxu0 %v1434
  %v2529 = vpop.f32.mrb[0].mxu0
  %v2530 = vadd.f32 0.0, %v2529
  %v2531 = vpop.f32.mrb[0].mxu0
  %v2532 = vadd.f32 0.0, %v2531
  %v2533 = vpop.f32.mrb[0].mxu0
  %v2534 = vpop.f32.mrb[0].mxu0
  %2535 = vdwg.mxu0
  %2536 = vmatprep.subr.bf16.mxu0 0
  %2537 = vmatpush1.bf16.msra.mxu0 %v2052
  %2538 = vmatprep.subr.bf16.mxu0 0
  %2539 = vmatpush1.bf16.msra.mxu0 %v2061
  %2540 = vmatprep.subr.bf16.mxu0 0
  %2541 = vmatpush1.bf16.msra.mxu0 %v2070
  %2542 = vmatprep.subr.bf16.mxu0 0
  %2543 = vmatpush1.bf16.msra.mxu0 %v2079
  %2544 = vmatprep.subr.bf16.mxu0 0
  %2545 = vmatpush1.bf16.msra.mxu0 %v2088
  %2546 = vmatprep.subr.bf16.mxu0 0
  %2547 = vmatpush1.bf16.msra.mxu0 %v2097
  %2548 = vmatprep.subr.bf16.mxu0 0
  %2549 = vmatpush1.bf16.msra.mxu0 %v2106
  %2550 = vmatprep.subr.bf16.mxu0 0
  %2551 = vmatpush1.bf16.msra.mxu0 %v2115
  %2552 = vmatprep.subr.bf16.mxu0 0
  %2553 = vmatpush1.bf16.msra.mxu0 %v2124
  %2554 = vmatprep.subr.bf16.mxu0 0
  %2555 = vmatpush1.bf16.msra.mxu0 %v2133
  %2556 = vmatprep.subr.bf16.mxu0 0
  %2557 = vmatpush1.bf16.msra.mxu0 %v2142
  %2558 = vmatprep.subr.bf16.mxu0 0
  %2559 = vmatpush1.bf16.msra.mxu0 %v2151
  %2560 = vmatprep.subr.bf16.mxu0 0
  %2561 = vmatpush1.bf16.msra.mxu0 %v2160
  %2562 = vmatprep.subr.bf16.mxu0 0
  %2563 = vmatpush1.bf16.msra.mxu0 %v2169
  %2564 = vmatprep.subr.bf16.mxu0 0
  %2565 = vmatpush1.bf16.msra.mxu0 %v2178
  %2566 = vmatprep.subr.bf16.mxu0 0
  %2567 = vmatpush1.bf16.msra.mxu0 %v2187
  %2568 = vmatprep.mubr.bf16.mxu0 %v1433
  %2569 = vmatmul.mubr.bf16.gmra.mrb[0].mxu0 %v1432
  %v2570 = vpop.f32.mrb[0].mxu0
  %v2571 = vadd.f32 0.0, %v2570
  %v2572 = vpop.f32.mrb[0].mxu0
  %v2573 = vpop.f32.mrb[0].mxu0
  %v2574 = vadd.f32 0.0, %v2573
  %v2575 = vpop.f32.mrb[0].mxu0
  %2576 = vmatprep.mubr.bf16.mxu0 %v1435
  %2577 = vmatmul.mubr.bf16.gmra.mrb[0].mxu0 %v1434
  %v2578 = vpop.f32.mrb[0].mxu0
  %v2579 = vadd.f32 0.0, %v2578
  %v2580 = vpop.f32.mrb[0].mxu0
  %v2581 = vpop.f32.mrb[0].mxu0
  %v2582 = vpop.f32.mrb[0].mxu0
  %2583 = vdwg.mxu0
  %2584 = vst [vmem:[%s4] sm:$0x3] %v2367
  %2585 = vst [vmem:[%s4 + $0x2] sm:$0x3] %v2369
  %v2587 = vrot.slane %v2418, 6
  %v2589 = vadd.f32 %v2367, %v2587
  %2590 = vst [vmem:[%s4 + $0x2] sm:$0xc] %v2589
  %2591 = vst [vmem:[%s4 + $0x4] sm:$0xc] %v2369
  %2592 = vst [vmem:[%s4 + $0x4] sm:$0x30] %v2589
  %2593 = vst [vmem:[%s4 + $0x6] sm:$0x30] %v2369
  %2594 = vst [vmem:[%s4 + $0x8] sm:$0x30] %v2418
  %2595 = vst [vmem:[%s4 + $0xe] sm:$0x3] %v2420
  %2596 = vst [vmem:[%s4 + $0x10] sm:$0x3] %v2469
  %v2598 = vrot.slane %v2471, 6
  %v2600 = vadd.f32 %v2420, %v2598
  %2601 = vst [vmem:[%s4 + $0x10] sm:$0xc] %v2600
  %2602 = vst [vmem:[%s4 + $0x12] sm:$0xc] %v2469
  %2603 = vst [vmem:[%s4 + $0x12] sm:$0x30] %v2600
  %2604 = vst [vmem:[%s4 + $0x14] sm:$0x30] %v2469
  %2605 = vst [vmem:[%s4 + $0x16] sm:$0x30] %v2471
  %v2607 = vrot.slane %v2520, 2
  %v2609 = vadd.f32 %v2367, %v2607
  %2610 = vst [vmem:[%s4 + $0x16] sm:$0xc0] %v2609
  %v2612 = vrot.slane %v2522, 2
  %v2614 = vadd.f32 %v2369, %v2612
  %2615 = vst [vmem:[%s4 + $0x18] sm:$0xc0] %v2614
  %v2616 = vadd.f32 %v2371, %v2587
  %v2617 = vadd.f32 %v2616, %v2607
  %v2618 = vadd.f32 %v2617, %v2571
  %2619 = vst [vmem:[%s4 + $0x20] sm:$0x3] %v2618
  %v2620 = vadd.f32 %v2373, %v2612
  %2621 = vst [vmem:[%s4 + $0x22] sm:$0x3] %v2620
  %v2623 = vrot.slane %v2422, 6
  %v2625 = vadd.f32 %v2371, %v2623
  %v2626 = vadd.f32 %v2625, %v2607
  %v2627 = vadd.f32 %v2626, %v2571
  %2628 = vst [vmem:[%s4 + $0x22] sm:$0xc] %v2627
  %2629 = vst [vmem:[%s4 + $0x24] sm:$0xc] %v2620
  %v2631 = vrot.slane %v2571, 2
  %v2633 = vadd.f32 %v2422, %v2631
  %2634 = vst [vmem:[%s4 + $0x26] sm:$0xc] %v2633
  %2635 = vst [vmem:[%s4 + $0x24] sm:$0xc0] %v2420
  %2636 = vst [vmem:[%s4 + $0x26] sm:$0xc0] %v2469
  %v2637 = vadd.f32 %v2424, %v2598
  %2638 = vst [vmem:[%s4 + $0x2e] sm:$0x3] %v2637
  %2639 = vst [vmem:[%s4 + $0x30] sm:$0x3] %v2473
  %v2641 = vrot.slane %v2475, 6
  %v2643 = vadd.f32 %v2424, %v2641
  %2644 = vst [vmem:[%s4 + $0x30] sm:$0xc] %v2643
  %2645 = vst [vmem:[%s4 + $0x32] sm:$0xc] %v2473
  %2646 = vst [vmem:[%s4 + $0x34] sm:$0xc] %v2475
  %v2647 = vadd.f32 %v2371, %v2607
  %2648 = vst [vmem:[%s4 + $0x34] sm:$0x30] %v2647
  %2649 = vst [vmem:[%s4 + $0x36] sm:$0x30] %v2620
  %v2651 = vrot.slane %v2524, 2
  %v2653 = vadd.f32 %v2625, %v2651
  %v2654 = vadd.f32 %v2653, %v2571
  %2655 = vst [vmem:[%s4 + $0x36] sm:$0xc0] %v2654
  %v2657 = vrot.slane %v2526, 2
  %v2659 = vadd.f32 %v2373, %v2657
  %2660 = vst [vmem:[%s4 + $0x38] sm:$0xc0] %v2659
  %v2661 = vadd.f32 %v2377, %v2623
  %v2662 = vadd.f32 %v2661, %v2651
  %v2663 = vadd.f32 %v2662, %v2574
  %2664 = vst [vmem:[%s4 + $0x40] sm:$0x3] %v2663
  %v2665 = vadd.f32 %v2379, %v2657
  %2666 = vst [vmem:[%s4 + $0x42] sm:$0x3] %v2665
  %v2668 = vrot.slane %v2574, 2
  %v2670 = vadd.f32 %v2428, %v2668
  %2671 = vst [vmem:[%s4 + $0x44] sm:$0x3] %v2670
  %2672 = vst [vmem:[%s4 + $0x42] sm:$0x30] %v2424
  %2673 = vst [vmem:[%s4 + $0x44] sm:$0x30] %v2473
  %2674 = vst [vmem:[%s4 + $0x44] sm:$0xc0] %v2643
  %2675 = vst [vmem:[%s4 + $0x46] sm:$0xc0] %v2473
  %v2676 = vadd.f32 %v2430, %v2641
  %2677 = vst [vmem:[%s4 + $0x4e] sm:$0x3] %v2676
  %2678 = vst [vmem:[%s4 + $0x50] sm:$0x3] %v2479
  %2679 = vst [vmem:[%s4 + $0x52] sm:$0x3] %v2481
  %2680 = vst [vmem:[%s4 + $0x50] sm:$0x30] %v2524
  %2681 = vst [vmem:[%s4 + $0x52] sm:$0x30] %v2526
  %v2682 = vrot.slane %v2574, 6
  %v2684 = vadd.f32 %v2524, %v2682
  %2685 = vst [vmem:[%s4 + $0x52] sm:$0xc0] %v2684
  %2686 = vst [vmem:[%s4 + $0x54] sm:$0xc0] %v2526
  %v2687 = vadd.f32 %v2530, %v2682
  %2688 = vst [vmem:[%s4 + $0x5c] sm:$0x3] %v2687
  %2689 = vst [vmem:[%s4 + $0x5e] sm:$0x3] %v2532
  %2690 = vst [vmem:[%s4 + $0x60] sm:$0x3] %v2579
  %2691 = vst [vmem:[%s4 + $0x62] sm:$0x3f] 0.0
  %v2692 = vld [vmem:[%s4] sm:$0xff]
  %v2693 = vld [vmem:[%s4 + $0x8] sm:$0xff]
  %v2694 = vld [vmem:[%s4 + $0x10] sm:$0xff]
  %v2695 = vld [vmem:[%s4 + $0x18] sm:$0xff]
  %v2696 = vld [vmem:[%s4 + $0x20] sm:$0xff]
  %v2697 = vld [vmem:[%s4 + $0x28] sm:$0xff]
  %v2698 = vld [vmem:[%s4 + $0x30] sm:$0xff]
  %v2699 = vld [vmem:[%s4 + $0x38] sm:$0xff]
  %v2700 = vld [vmem:[%s4 + $0x40] sm:$0xff]
  %v2701 = vld [vmem:[%s4 + $0x48] sm:$0xff]
  %v2702 = vld [vmem:[%s4 + $0x50] sm:$0xff]
  %v2703 = vld [vmem:[%s4 + $0x58] sm:$0xff]
  %v2704 = vld [vmem:[%s4 + $0x60] sm:$0xff]
  %v2705 = vlaneseq
  %v2706 = vshrl.u32 %v2705, 7
  %v2707 = vsub.s32 3, %v2706
  %v2708 = vrot.slane %v18, %v2707
  %v2709 = vadd.f32 %v2692, %v2708
  %v2710 = vadd.f32 %v2693, %v2708
  %v2711 = vadd.f32 %v2694, %v2708
  %v2712 = vadd.f32 %v2695, %v2708
  %v2713 = vadd.f32 %v2696, %v2708
  %v2714 = vadd.f32 %v2697, %v2708
  %v2715 = vadd.f32 %v2698, %v2708
  %v2716 = vadd.f32 %v2699, %v2708
  %v2717 = vadd.f32 %v2700, %v2708
  %v2718 = vadd.f32 %v2701, %v2708
  %v2719 = vadd.f32 %v2702, %v2708
  %v2720 = vadd.f32 %v2703, %v2708
  %v2721 = vadd.f32 %v2704, %v2708
  %v2722 = vxor.u32 %v2709, 2147483648
  %v2723 = vxor.u32 %v2710, 2147483648
  %v2724 = vxor.u32 %v2711, 2147483648
  %v2725 = vxor.u32 %v2712, 2147483648
  %v2726 = vxor.u32 %v2713, 2147483648
  %v2727 = vxor.u32 %v2714, 2147483648
  %v2728 = vxor.u32 %v2715, 2147483648
  %v2729 = vxor.u32 %v2716, 2147483648
  %v2730 = vxor.u32 %v2717, 2147483648
  %v2731 = vxor.u32 %v2718, 2147483648
  %v2732 = vxor.u32 %v2719, 2147483648
  %v2733 = vxor.u32 %v2720, 2147483648
  %v2734 = vxor.u32 %v2721, 2147483648
  %v2735 = vmul.f32 %v2722, 1.442695
  %v2736 = vpow.pop %v2735
  %v2737 = vmul.f32 %v2723, 1.442695
  %v2738 = vpow.pop %v2737
  %v2739 = vmul.f32 %v2724, 1.442695
  %v2740 = vpow.pop %v2739
  %v2741 = vmul.f32 %v2725, 1.442695
  %v2742 = vpow.pop %v2741
  %v2743 = vmul.f32 %v2726, 1.442695
  %v2744 = vpow.pop %v2743
  %v2745 = vmul.f32 %v2727, 1.442695
  %v2746 = vpow.pop %v2745
  %v2747 = vmul.f32 %v2728, 1.442695
  %v2748 = vpow.pop %v2747
  %v2749 = vmul.f32 %v2729, 1.442695
  %v2750 = vpow.pop %v2749
  %v2751 = vmul.f32 %v2730, 1.442695
  %v2752 = vpow.pop %v2751
  %v2753 = vmul.f32 %v2731, 1.442695
  %v2754 = vpow.pop %v2753
  %v2755 = vmul.f32 %v2732, 1.442695
  %v2756 = vpow.pop %v2755
  %v2757 = vmul.f32 %v2733, 1.442695
  %v2758 = vpow.pop %v2757
  %v2759 = vmul.f32 %v2734, 1.442695
  %v2760 = vpow.pop %v2759
  %v2761 = vadd.f32 %v2736, 1.0
  %v2762 = vadd.f32 %v2738, 1.0
  %v2763 = vadd.f32 %v2740, 1.0
  %v2764 = vadd.f32 %v2742, 1.0
  %v2765 = vadd.f32 %v2744, 1.0
  %v2766 = vadd.f32 %v2746, 1.0
  %v2767 = vadd.f32 %v2748, 1.0
  %v2768 = vadd.f32 %v2750, 1.0
  %v2769 = vadd.f32 %v2752, 1.0
  %v2770 = vadd.f32 %v2754, 1.0
  %v2771 = vadd.f32 %v2756, 1.0
  %v2772 = vadd.f32 %v2758, 1.0
  %v2773 = vadd.f32 %v2760, 1.0
  %v2774 = vrcp.pop %v2761
  %v2775 = vmul.f32 1.0, %v2774
  %v2776 = vrcp.pop %v2762
  %v2777 = vmul.f32 1.0, %v2776
  %v2778 = vrcp.pop %v2763
  %v2779 = vmul.f32 1.0, %v2778
  %v2780 = vrcp.pop %v2764
  %v2781 = vmul.f32 1.0, %v2780
  %v2782 = vrcp.pop %v2765
  %v2783 = vmul.f32 1.0, %v2782
  %v2784 = vrcp.pop %v2766
  %v2785 = vmul.f32 1.0, %v2784
  %v2786 = vrcp.pop %v2767
  %v2787 = vmul.f32 1.0, %v2786
  %v2788 = vrcp.pop %v2768
  %v2789 = vmul.f32 1.0, %v2788
  %v2790 = vrcp.pop %v2769
  %v2791 = vmul.f32 1.0, %v2790
  %v2792 = vrcp.pop %v2770
  %v2793 = vmul.f32 1.0, %v2792
  %v2794 = vrcp.pop %v2771
  %v2795 = vmul.f32 1.0, %v2794
  %v2796 = vrcp.pop %v2772
  %v2797 = vmul.f32 1.0, %v2796
  %v2798 = vrcp.pop %v2773
  %v2799 = vmul.f32 1.0, %v2798
  %2800 = vst [vmem:[%s4] sm:$0xff] %v2775
  %2801 = vst [vmem:[%s4 + $0x8] sm:$0xff] %v2777
  %2802 = vst [vmem:[%s4 + $0x10] sm:$0xff] %v2779
  %2803 = vst [vmem:[%s4 + $0x18] sm:$0xff] %v2781
  %2804 = vst [vmem:[%s4 + $0x20] sm:$0xff] %v2783
  %2805 = vst [vmem:[%s4 + $0x28] sm:$0xff] %v2785
  %2806 = vst [vmem:[%s4 + $0x30] sm:$0xff] %v2787
  %2807 = vst [vmem:[%s4 + $0x38] sm:$0xff] %v2789
  %2808 = vst [vmem:[%s4 + $0x40] sm:$0xff] %v2791
  %2809 = vst [vmem:[%s4 + $0x48] sm:$0xff] %v2793
  %2810 = vst [vmem:[%s4 + $0x50] sm:$0xff] %v2795
  %2811 = vst [vmem:[%s4 + $0x58] sm:$0xff] %v2797
  %2812 = vst [vmem:[%s4 + $0x60] sm:$0xff] %v2799
  // Predicated region
  $region18: #{_lambda_.1} parent=0 // pred_check
    _
  $region19: #{_lambda_.1} parent=0 // pred_check_branch
    %2814 = sbr.rel (0) target = $region21
  $region20: #{_lambda_.1} parent=0 // pred_region
    _
  $region21: #{_lambda_.1} parent=0 // pred_fallthru
    _
  // Predicated region
  $region22: #{_lambda_.1} parent=0 // pred_check
    _
  $region23: #{_lambda_.1} parent=0 // pred_check_branch
    %2816 = sbr.rel (0) target = $region25
  $region24: #{_lambda_.1} parent=0 // pred_region
    _
  $region25: #{_lambda_.1} parent=0 // pred_fallthru
    _

</llo_original>
